<compile_context>
chip_gen: v7x
topology: tpu7x:2x2x1
jax: 0.10.0
libtpu: 0.0.40
codegen_flags: <defaults>
</compile_context>

<pallas_src>
import jax
import jax.numpy as jnp
from jax.experimental import pallas as pl
from jax.experimental.pallas import tpu as pltpu

EPS = 1e-5
REF_PREC = jax.lax.Precision.HIGHEST  # reference only; kernel uses bf16 MXU


def _conv3x3_bn(pad_ref, col_ref, w_ref, g, be, N, H, W, C, relu):
    """3x3 conv (zero-padded) + training-mode BatchNorm (+ optional fused ReLU).

    pad_ref: (N, H+2, W+2, C) bf16 zero-bordered activation in VMEM
    col_ref: (N*H*W, 9*C)     bf16 im2col scratch in VMEM, or None
    w_ref:   (9*C, C)         bf16, rows ordered (dy, dx, c_in)
    g, be:   (1, C)           f32 BN scale / shift
    returns: (N*H*W, C)       f32
    """
    M = N * H * W

    if col_ref is not None:
        # im2col: write the 9 shifted bf16 views side by side, then one big-K
        # MXU matmul (best MXU occupancy for C < 256 on v6e/v7x).
        t = 0
        for dy in range(3):
            for dx in range(3):
                col_ref[:, t * C:(t + 1) * C] = (
                    pad_ref[:, dy:dy + H, dx:dx + W, :].reshape(M, C))
                t += 1
        acc = jnp.dot(col_ref[...], w_ref[...],
                      preferred_element_type=jnp.float32)          # (M, C) f32
    else:
        # Nine accumulating K=C matmuls straight off the padded buffer: no
        # column scratch at all (preferred when K=C already fills the MXU or
        # when VMEM is the binding resource).
        acc = jnp.zeros((M, C), jnp.float32)
        t = 0
        for dy in range(3):
            for dx in range(3):
                lhs = pad_ref[:, dy:dy + H, dx:dx + W, :].reshape(M, C)
                acc = acc + jnp.dot(lhs, w_ref[t * C:(t + 1) * C, :],
                                    preferred_element_type=jnp.float32)
                t += 1

    # Conv bias intentionally omitted: under training-mode BN a per-channel
    # constant is exactly cancelled by the mean subtraction below.

    # Training-mode BatchNorm (biased batch stats over N,H,W).  The affine is
    # folded into two per-channel constants so the big tensor only sees a
    # single FMA pass (with the ReLU fused in when requested).
    # TODO(synk): when gridded/banded at production M, switch to a two-pass
    # variance (or per-band partial-stat merge) -- E[x^2]-E[x]^2 in one f32
    # pass can cancel catastrophically when mean >> std.
    inv_m = 1.0 / M
    s1 = jnp.sum(acc, axis=0, keepdims=True)
    s2 = jnp.sum(acc * acc, axis=0, keepdims=True)
    mean = s1 * inv_m
    var = s2 * inv_m - mean * mean
    scale = jax.lax.rsqrt(var + EPS) * g
    shift = be - mean * scale
    y = acc * scale + shift
    return jnp.maximum(y, 0.0) if relu else y


def resblock_kernel(x_ref, w1_ref, g1_ref, be1_ref,
                    w2_ref, g2_ref, be2_ref,
                    o_ref, pad_ref, *col_scratch):
    col_ref = col_scratch[0] if col_scratch else None
    N, H, W, C = x_ref.shape
    bdt = pad_ref.dtype  # bf16

    # Zero only the 1-pixel border of the padded scratch (4 thin writes); the
    # interior is always overwritten and the border stays zero for both convs.
    # TODO(synk): for small C the column strips / final store are lane-masked;
    # a (W,C)->lane-folded pad/out layout would make them dense, pending a
    # confirmed-cheap Mosaic value reshape (moot once production C >= 128).
    zrow = jnp.zeros((N, 1, W + 2, C), bdt)
    zcol = jnp.zeros((N, H, 1, C), bdt)
    pad_ref[:, 0:1, :, :] = zrow
    pad_ref[:, H + 1:H + 2, :, :] = zrow
    pad_ref[:, 1:H + 1, 0:1, :] = zcol
    pad_ref[:, 1:H + 1, W + 1:W + 2, :] = zcol

    # Interior <- x (cast to bf16 for the conv; x itself stays f32 for the
    # residual add).
    x = x_ref[...]
    pad_ref[:, 1:H + 1, 1:W + 1, :] = x.astype(bdt)

    # conv1 -> bn1 -> relu (ReLU fused into the BN FMA pass)
    h = _conv3x3_bn(pad_ref, col_ref, w1_ref, g1_ref[...], be1_ref[...],
                    N, H, W, C, relu=True)

    # Reuse the padded scratch for the second conv (border is still zero).
    pad_ref[:, 1:H + 1, 1:W + 1, :] = h.reshape(N, H, W, C).astype(bdt)

    # conv2 -> bn2
    h2 = _conv3x3_bn(pad_ref, col_ref, w2_ref, g2_ref[...], be2_ref[...],
                     N, H, W, C, relu=False)

    # residual add (f32) + relu
    o_ref[...] = jnp.maximum(h2.reshape(N, H, W, C) + x, 0.0)


def resblock_forward(x_nchw, params, *, use_im2col=None):
    """Fused Pallas ResBlock forward.  x_nchw: (N, C, H, W) f32 (PyTorch layout).

    use_im2col: None -> auto (im2col for C < 256).  On v5e production shapes
    (C >= 128) or whenever VMEM is tight (v7x), pass use_im2col=False.
    """
    # NOTE: for stacked blocks keep activations NHWC end-to-end and drop these
    # boundary transposes (each is a full HBM round trip in XLA).
    x = jnp.transpose(x_nchw, (0, 2, 3, 1)).astype(jnp.float32)   # -> NHWC
    N, H, W, C = x.shape
    if use_im2col is None:
        use_im2col = C < 256

    def prep_w(w):
        # torch Conv2d weight (C_out, C_in, 3, 3) -> (3, 3, C_in, C_out)
        # -> (9*C_in, C_out), bf16 for the single-pass MXU matmul.
        return jnp.transpose(w, (2, 3, 1, 0)).reshape(9 * C, C).astype(jnp.bfloat16)

    w1 = prep_w(params["w1"])
    w2 = prep_w(params["w2"])
    # Conv biases are NOT passed: they cancel exactly under training-mode BN.
    g1 = params["g1"].reshape(1, C).astype(jnp.float32)
    g2 = params["g2"].reshape(1, C).astype(jnp.float32)
    be1 = params["be1"].reshape(1, C).astype(jnp.float32)
    be2 = params["be2"].reshape(1, C).astype(jnp.float32)

    scratch_shapes = [pltpu.VMEM((N, H + 2, W + 2, C), jnp.bfloat16)]  # padded act
    if use_im2col:
        scratch_shapes.append(pltpu.VMEM((N * H * W, 9 * C), jnp.bfloat16))  # im2col

    # Scoped-VMEM budget sized from the actual footprint (the default scoped
    # limit is well below physical VMEM).  Tiny at this toy shape, so the
    # 16 MiB floor (<= default everywhere) is what gets used.
    pad_b = N * (H + 2) * (W + 2) * C * 2
    col_b = N * H * W * 9 * C * 2 if use_im2col else 0
    io_b = 2 * (N * H * W * C * 4)
    w_b = 2 * 9 * C * C * 2 + 4 * C * 4
    need = pad_b + col_b + io_b + w_b
    vmem_limit = int(min(max(2 * need, 16 * 2 ** 20), 48 * 2 ** 20))

    vmem = pl.BlockSpec(memory_space=pltpu.MemorySpace.VMEM)
    out = pl.pallas_call(
        resblock_kernel,
        out_shape=jax.ShapeDtypeStruct((N, H, W, C), jnp.float32),
        in_specs=[vmem] * 7,
        out_specs=vmem,
        scratch_shapes=scratch_shapes,
        compiler_params=pltpu.CompilerParams(vmem_limit_bytes=vmem_limit),
    )(x, w1, g1, be1, w2, g2, be2)

    return jnp.transpose(out, (0, 3, 1, 2))                        # -> NCHW


def resblock_reference(x, params):
    """Pure-JAX reference of the PyTorch forward (NCHW), for verification."""
    def conv(y, w, b):
        o = jax.lax.conv_general_dilated(
            y, w, window_strides=(1, 1), padding=((1, 1), (1, 1)),
            dimension_numbers=("NCHW", "OIHW", "NCHW"), precision=REF_PREC)
        return o + b[None, :, None, None]

    def bn(y, g, be):
        mean = jnp.mean(y, axis=(0, 2, 3), keepdims=True)
        var = jnp.mean((y - mean) ** 2, axis=(0, 2, 3), keepdims=True)
        return (y - mean) * jax.lax.rsqrt(var + EPS) * g[None, :, None, None] \
               + be[None, :, None, None]

    h = jax.nn.relu(bn(conv(x, params["w1"], params["b1"]), params["g1"], params["be1"]))
    h = bn(conv(h, params["w2"], params["b2"]), params["g2"], params["be2"])
    return jax.nn.relu(h + x)


if __name__ == "__main__":
    # Small shapes consistent with the module: batch=2, hidden_size=32, spatial=8.
    N, C, H, W = 2, 32, 8, 8
    key = jax.random.PRNGKey(0)
    k = jax.random.split(key, 9)

    x = jax.random.normal(k[0], (N, C, H, W), dtype=jnp.float32)
    params = {
        "w1": 0.1 * jax.random.normal(k[1], (C, C, 3, 3), dtype=jnp.float32),
        "b1": 0.05 * jax.random.normal(k[2], (C,), dtype=jnp.float32),
        "g1": 1.0 + 0.1 * jax.random.normal(k[3], (C,), dtype=jnp.float32),
        "be1": 0.1 * jax.random.normal(k[4], (C,), dtype=jnp.float32),
        "w2": 0.1 * jax.random.normal(k[5], (C, C, 3, 3), dtype=jnp.float32),
        "b2": 0.05 * jax.random.normal(k[6], (C,), dtype=jnp.float32),
        "g2": 1.0 + 0.1 * jax.random.normal(k[7], (C,), dtype=jnp.float32),
        "be2": 0.1 * jax.random.normal(k[8], (C,), dtype=jnp.float32),
    }

    ref = jax.block_until_ready(resblock_reference(x, params))

    # Exercise both conv strategies (big-K im2col and the no-col accumulating
    # form) so both compile paths are validated on-device.
    for use_im2col in (True, False):
        out = jax.block_until_ready(
            resblock_forward(x, params, use_im2col=use_im2col))
        assert out.shape == (N, C, H, W), out.shape
        # Kernel uses bf16 MXU operands (f32 accumulate) vs the f32
        # HIGHEST-precision reference; tolerance sized for that (outputs ~O(1)).
        max_err = float(jnp.max(jnp.abs(out - ref)))
        if max_err > 5e-2:
            raise AssertionError(
                f"Pallas ResBlock mismatch vs reference "
                f"(use_im2col={use_im2col}): {max_err}")

    print("KERNEL_OK")
</pallas_src>

<mosaic_0001>
module attributes {stable_mosaic.version = 11 : i64} {
  func.func @resblock_kernel(%arg0: memref<2x8x8x32xf32, #tpu.memory_space<vmem>>, %arg1: memref<288x32xbf16, #tpu.memory_space<vmem>>, %arg2: memref<1x32xf32, #tpu.memory_space<vmem>>, %arg3: memref<1x32xf32, #tpu.memory_space<vmem>>, %arg4: memref<288x32xbf16, #tpu.memory_space<vmem>>, %arg5: memref<1x32xf32, #tpu.memory_space<vmem>>, %arg6: memref<1x32xf32, #tpu.memory_space<vmem>>, %arg7: memref<2x8x8x32xf32, #tpu.memory_space<vmem>>, %arg8: memref<2x10x10x32xbf16, #tpu.memory_space<vmem>>, %arg9: memref<128x288xbf16, #tpu.memory_space<vmem>>) attributes {dimension_semantics = [], scalar_prefetch = 0 : i64, scratch_operands = 2 : i64, tpu.core_type = #tpu.core_type<tc>} {
    %cst = arith.constant 0.000000e+00 : bf16
    %0 = vector.broadcast %cst : bf16 to vector<2x1x10x32xbf16>
    %cst_0 = arith.constant 0.000000e+00 : bf16
    %1 = vector.broadcast %cst_0 : bf16 to vector<2x8x1x32xbf16>
    %c0 = arith.constant 0 : index
    %c0_1 = arith.constant 0 : index
    %c0_2 = arith.constant 0 : index
    %c0_3 = arith.constant 0 : index
    %2 = vector.load %arg8[%c0, %c0_1, %c0_2, %c0_3] : memref<2x10x10x32xbf16, #tpu.memory_space<vmem>>, vector<2x1x10x32xbf16>
    tpu.vector_store %arg8[%c0, %c0_1, %c0_2, %c0_3], %0 {strides = array<i32>} : memref<2x10x10x32xbf16, #tpu.memory_space<vmem>>, vector<2x1x10x32xbf16>,
    %c0_4 = arith.constant 0 : index
    %c9 = arith.constant 9 : index
    %c0_5 = arith.constant 0 : index
    %c0_6 = arith.constant 0 : index
    %3 = vector.load %arg8[%c0_4, %c9, %c0_5, %c0_6] : memref<2x10x10x32xbf16, #tpu.memory_space<vmem>>, vector<2x1x10x32xbf16>
    tpu.vector_store %arg8[%c0_4, %c9, %c0_5, %c0_6], %0 {strides = array<i32>} : memref<2x10x10x32xbf16, #tpu.memory_space<vmem>>, vector<2x1x10x32xbf16>,
    %c0_7 = arith.constant 0 : index
    %c1 = arith.constant 1 : index
    %c0_8 = arith.constant 0 : index
    %c0_9 = arith.constant 0 : index
    %4 = vector.load %arg8[%c0_7, %c1, %c0_8, %c0_9] : memref<2x10x10x32xbf16, #tpu.memory_space<vmem>>, vector<2x8x1x32xbf16>
    tpu.vector_store %arg8[%c0_7, %c1, %c0_8, %c0_9], %1 {strides = array<i32>} : memref<2x10x10x32xbf16, #tpu.memory_space<vmem>>, vector<2x8x1x32xbf16>,
    %c0_10 = arith.constant 0 : index
    %c1_11 = arith.constant 1 : index
    %c9_12 = arith.constant 9 : index
    %c0_13 = arith.constant 0 : index
    %5 = vector.load %arg8[%c0_10, %c1_11, %c9_12, %c0_13] : memref<2x10x10x32xbf16, #tpu.memory_space<vmem>>, vector<2x8x1x32xbf16>
    tpu.vector_store %arg8[%c0_10, %c1_11, %c9_12, %c0_13], %1 {strides = array<i32>} : memref<2x10x10x32xbf16, #tpu.memory_space<vmem>>, vector<2x8x1x32xbf16>,
    %c0_14 = arith.constant 0 : index
    %c0_15 = arith.constant 0 : index
    %c0_16 = arith.constant 0 : index
    %c0_17 = arith.constant 0 : index
    %6 = vector.load %arg0[%c0_14, %c0_15, %c0_16, %c0_17] : memref<2x8x8x32xf32, #tpu.memory_space<vmem>>, vector<2x8x8x32xf32>
    %7 = arith.truncf %6 : vector<2x8x8x32xf32> to vector<2x8x8x32xbf16>
    %c0_18 = arith.constant 0 : index
    %c1_19 = arith.constant 1 : index
    %c1_20 = arith.constant 1 : index
    %c0_21 = arith.constant 0 : index
    %8 = vector.load %arg8[%c0_18, %c1_19, %c1_20, %c0_21] : memref<2x10x10x32xbf16, #tpu.memory_space<vmem>>, vector<2x8x8x32xbf16>
    tpu.vector_store %arg8[%c0_18, %c1_19, %c1_20, %c0_21], %7 {strides = array<i32>} : memref<2x10x10x32xbf16, #tpu.memory_space<vmem>>, vector<2x8x8x32xbf16>,
    %c0_22 = arith.constant 0 : index
    %c0_23 = arith.constant 0 : index
    %9 = vector.load %arg2[%c0_22, %c0_23] : memref<1x32xf32, #tpu.memory_space<vmem>>, vector<1x32xf32>
    %c0_24 = arith.constant 0 : index
    %c0_25 = arith.constant 0 : index
    %10 = vector.load %arg3[%c0_24, %c0_25] : memref<1x32xf32, #tpu.memory_space<vmem>>, vector<1x32xf32>
    %c0_26 = arith.constant 0 : index
    %c0_27 = arith.constant 0 : index
    %c0_28 = arith.constant 0 : index
    %c0_29 = arith.constant 0 : index
    %11 = vector.load %arg8[%c0_26, %c0_27, %c0_28, %c0_29] : memref<2x10x10x32xbf16, #tpu.memory_space<vmem>>, vector<2x8x8x32xbf16>
    %12 = vector.shape_cast %11 : vector<2x8x8x32xbf16> to vector<128x32xbf16>
    %c0_30 = arith.constant 0 : index
    %c0_31 = arith.constant 0 : index
    %13 = vector.load %arg9[%c0_30, %c0_31] : memref<128x288xbf16, #tpu.memory_space<vmem>>, vector<128x32xbf16>
    tpu.vector_store %arg9[%c0_30, %c0_31], %12 {strides = array<i32>} : memref<128x288xbf16, #tpu.memory_space<vmem>>, vector<128x32xbf16>,
    %c0_32 = arith.constant 0 : index
    %c0_33 = arith.constant 0 : index
    %c1_34 = arith.constant 1 : index
    %c0_35 = arith.constant 0 : index
    %14 = vector.load %arg8[%c0_32, %c0_33, %c1_34, %c0_35] : memref<2x10x10x32xbf16, #tpu.memory_space<vmem>>, vector<2x8x8x32xbf16>
    %15 = vector.shape_cast %14 : vector<2x8x8x32xbf16> to vector<128x32xbf16>
    %c0_36 = arith.constant 0 : index
    %c32 = arith.constant 32 : index
    %16 = vector.load %arg9[%c0_36, %c32] : memref<128x288xbf16, #tpu.memory_space<vmem>>, vector<128x32xbf16>
    tpu.vector_store %arg9[%c0_36, %c32], %15 {strides = array<i32>} : memref<128x288xbf16, #tpu.memory_space<vmem>>, vector<128x32xbf16>,
    %c0_37 = arith.constant 0 : index
    %c0_38 = arith.constant 0 : index
    %c2 = arith.constant 2 : index
    %c0_39 = arith.constant 0 : index
    %17 = vector.load %arg8[%c0_37, %c0_38, %c2, %c0_39] : memref<2x10x10x32xbf16, #tpu.memory_space<vmem>>, vector<2x8x8x32xbf16>
    %18 = vector.shape_cast %17 : vector<2x8x8x32xbf16> to vector<128x32xbf16>
    %c0_40 = arith.constant 0 : index
    %c64 = arith.constant 64 : index
    %19 = vector.load %arg9[%c0_40, %c64] : memref<128x288xbf16, #tpu.memory_space<vmem>>, vector<128x32xbf16>
    tpu.vector_store %arg9[%c0_40, %c64], %18 {strides = array<i32>} : memref<128x288xbf16, #tpu.memory_space<vmem>>, vector<128x32xbf16>,
    %c0_41 = arith.constant 0 : index
    %c1_42 = arith.constant 1 : index
    %c0_43 = arith.constant 0 : index
    %c0_44 = arith.constant 0 : index
    %20 = vector.load %arg8[%c0_41, %c1_42, %c0_43, %c0_44] : memref<2x10x10x32xbf16, #tpu.memory_space<vmem>>, vector<2x8x8x32xbf16>
    %21 = vector.shape_cast %20 : vector<2x8x8x32xbf16> to vector<128x32xbf16>
    %c0_45 = arith.constant 0 : index
    %c96 = arith.constant 96 : index
    %22 = vector.load %arg9[%c0_45, %c96] : memref<128x288xbf16, #tpu.memory_space<vmem>>, vector<128x32xbf16>
    tpu.vector_store %arg9[%c0_45, %c96], %21 {strides = array<i32>} : memref<128x288xbf16, #tpu.memory_space<vmem>>, vector<128x32xbf16>,
    %c0_46 = arith.constant 0 : index
    %c1_47 = arith.constant 1 : index
    %c1_48 = arith.constant 1 : index
    %c0_49 = arith.constant 0 : index
    %23 = vector.load %arg8[%c0_46, %c1_47, %c1_48, %c0_49] : memref<2x10x10x32xbf16, #tpu.memory_space<vmem>>, vector<2x8x8x32xbf16>
    %24 = vector.shape_cast %23 : vector<2x8x8x32xbf16> to vector<128x32xbf16>
    %c0_50 = arith.constant 0 : index
    %c128 = arith.constant 128 : index
    %25 = vector.load %arg9[%c0_50, %c128] : memref<128x288xbf16, #tpu.memory_space<vmem>>, vector<128x32xbf16>
    tpu.vector_store %arg9[%c0_50, %c128], %24 {strides = array<i32>} : memref<128x288xbf16, #tpu.memory_space<vmem>>, vector<128x32xbf16>,
    %c0_51 = arith.constant 0 : index
    %c1_52 = arith.constant 1 : index
    %c2_53 = arith.constant 2 : index
    %c0_54 = arith.constant 0 : index
    %26 = vector.load %arg8[%c0_51, %c1_52, %c2_53, %c0_54] : memref<2x10x10x32xbf16, #tpu.memory_space<vmem>>, vector<2x8x8x32xbf16>
    %27 = vector.shape_cast %26 : vector<2x8x8x32xbf16> to vector<128x32xbf16>
    %c0_55 = arith.constant 0 : index
    %c160 = arith.constant 160 : index
    %28 = vector.load %arg9[%c0_55, %c160] : memref<128x288xbf16, #tpu.memory_space<vmem>>, vector<128x32xbf16>
    tpu.vector_store %arg9[%c0_55, %c160], %27 {strides = array<i32>} : memref<128x288xbf16, #tpu.memory_space<vmem>>, vector<128x32xbf16>,
    %c0_56 = arith.constant 0 : index
    %c2_57 = arith.constant 2 : index
    %c0_58 = arith.constant 0 : index
    %c0_59 = arith.constant 0 : index
    %29 = vector.load %arg8[%c0_56, %c2_57, %c0_58, %c0_59] : memref<2x10x10x32xbf16, #tpu.memory_space<vmem>>, vector<2x8x8x32xbf16>
    %30 = vector.shape_cast %29 : vector<2x8x8x32xbf16> to vector<128x32xbf16>
    %c0_60 = arith.constant 0 : index
    %c192 = arith.constant 192 : index
    %31 = vector.load %arg9[%c0_60, %c192] : memref<128x288xbf16, #tpu.memory_space<vmem>>, vector<128x32xbf16>
    tpu.vector_store %arg9[%c0_60, %c192], %30 {strides = array<i32>} : memref<128x288xbf16, #tpu.memory_space<vmem>>, vector<128x32xbf16>,
    %c0_61 = arith.constant 0 : index
    %c2_62 = arith.constant 2 : index
    %c1_63 = arith.constant 1 : index
    %c0_64 = arith.constant 0 : index
    %32 = vector.load %arg8[%c0_61, %c2_62, %c1_63, %c0_64] : memref<2x10x10x32xbf16, #tpu.memory_space<vmem>>, vector<2x8x8x32xbf16>
    %33 = vector.shape_cast %32 : vector<2x8x8x32xbf16> to vector<128x32xbf16>
    %c0_65 = arith.constant 0 : index
    %c224 = arith.constant 224 : index
    %34 = vector.load %arg9[%c0_65, %c224] : memref<128x288xbf16, #tpu.memory_space<vmem>>, vector<128x32xbf16>
    tpu.vector_store %arg9[%c0_65, %c224], %33 {strides = array<i32>} : memref<128x288xbf16, #tpu.memory_space<vmem>>, vector<128x32xbf16>,
    %c0_66 = arith.constant 0 : index
    %c2_67 = arith.constant 2 : index
    %c2_68 = arith.constant 2 : index
    %c0_69 = arith.constant 0 : index
    %35 = vector.load %arg8[%c0_66, %c2_67, %c2_68, %c0_69] : memref<2x10x10x32xbf16, #tpu.memory_space<vmem>>, vector<2x8x8x32xbf16>
    %36 = vector.shape_cast %35 : vector<2x8x8x32xbf16> to vector<128x32xbf16>
    %c0_70 = arith.constant 0 : index
    %c256 = arith.constant 256 : index
    %37 = vector.load %arg9[%c0_70, %c256] : memref<128x288xbf16, #tpu.memory_space<vmem>>, vector<128x32xbf16>
    tpu.vector_store %arg9[%c0_70, %c256], %36 {strides = array<i32>} : memref<128x288xbf16, #tpu.memory_space<vmem>>, vector<128x32xbf16>,
    %c0_71 = arith.constant 0 : index
    %c0_72 = arith.constant 0 : index
    %38 = vector.load %arg9[%c0_71, %c0_72] : memref<128x288xbf16, #tpu.memory_space<vmem>>, vector<128x288xbf16>
    %c0_73 = arith.constant 0 : index
    %c0_74 = arith.constant 0 : index
    %39 = vector.load %arg1[%c0_73, %c0_74] : memref<288x32xbf16, #tpu.memory_space<vmem>>, vector<288x32xbf16>
    %cst_75 = arith.constant dense<0.000000e+00> : vector<128x32xf32>
    %40 = tpu.matmul %38, %39, %cst_75 {dimension_numbers = #tpu.dot_dimension_numbers<[1], [0], [0], [1], [0, 0, 1, 1], [], []>} : vector<128x288xbf16>, vector<288x32xbf16>, vector<128x32xf32> -> vector<128x32xf32>
    %cst_76 = arith.constant dense<0.000000e+00> : vector<32xf32>
    %41 = vector.multi_reduction <add>, %40, %cst_76 [0] : vector<128x32xf32> to vector<32xf32>
    %42 = vector.shape_cast %41 : vector<32xf32> to vector<1x32xf32>
    %43 = arith.mulf %40, %40 : vector<128x32xf32>
    %cst_77 = arith.constant dense<0.000000e+00> : vector<32xf32>
    %44 = vector.multi_reduction <add>, %43, %cst_77 [0] : vector<128x32xf32> to vector<32xf32>
    %45 = vector.shape_cast %44 : vector<32xf32> to vector<1x32xf32>
    %cst_78 = arith.constant 7.812500e-03 : f32
    %46 = vector.broadcast %cst_78 : f32 to vector<1x32xf32>
    %47 = arith.mulf %42, %46 : vector<1x32xf32>
    %cst_79 = arith.constant 7.812500e-03 : f32
    %48 = vector.broadcast %cst_79 : f32 to vector<1x32xf32>
    %49 = arith.mulf %45, %48 : vector<1x32xf32>
    %50 = arith.mulf %47, %47 : vector<1x32xf32>
    %51 = arith.subf %49, %50 : vector<1x32xf32>
    %cst_80 = arith.constant 9.99999974E-6 : f32
    %52 = vector.broadcast %cst_80 : f32 to vector<1x32xf32>
    %53 = arith.addf %51, %52 : vector<1x32xf32>
    %54 = math.rsqrt %53 : vector<1x32xf32>
    %55 = arith.mulf %54, %9 : vector<1x32xf32>
    %56 = arith.mulf %47, %55 : vector<1x32xf32>
    %57 = arith.subf %10, %56 : vector<1x32xf32>
    %58 = vector.broadcast %55 : vector<1x32xf32> to vector<128x32xf32>
    %59 = arith.mulf %40, %58 : vector<128x32xf32>
    %60 = vector.broadcast %57 : vector<1x32xf32> to vector<128x32xf32>
    %61 = arith.addf %59, %60 : vector<128x32xf32>
    %cst_81 = arith.constant 0.000000e+00 : f32
    %62 = vector.broadcast %cst_81 : f32 to vector<128x32xf32>
    %63 = arith.maximumf %61, %62 : vector<128x32xf32>
    %64 = vector.shape_cast %63 : vector<128x32xf32> to vector<2x8x8x32xf32>
    %65 = arith.truncf %64 : vector<2x8x8x32xf32> to vector<2x8x8x32xbf16>
    %c0_82 = arith.constant 0 : index
    %c1_83 = arith.constant 1 : index
    %c1_84 = arith.constant 1 : index
    %c0_85 = arith.constant 0 : index
    %66 = vector.load %arg8[%c0_82, %c1_83, %c1_84, %c0_85] : memref<2x10x10x32xbf16, #tpu.memory_space<vmem>>, vector<2x8x8x32xbf16>
    tpu.vector_store %arg8[%c0_82, %c1_83, %c1_84, %c0_85], %65 {strides = array<i32>} : memref<2x10x10x32xbf16, #tpu.memory_space<vmem>>, vector<2x8x8x32xbf16>,
    %c0_86 = arith.constant 0 : index
    %c0_87 = arith.constant 0 : index
    %67 = vector.load %arg5[%c0_86, %c0_87] : memref<1x32xf32, #tpu.memory_space<vmem>>, vector<1x32xf32>
    %c0_88 = arith.constant 0 : index
    %c0_89 = arith.constant 0 : index
    %68 = vector.load %arg6[%c0_88, %c0_89] : memref<1x32xf32, #tpu.memory_space<vmem>>, vector<1x32xf32>
    %c0_90 = arith.constant 0 : index
    %c0_91 = arith.constant 0 : index
    %c0_92 = arith.constant 0 : index
    %c0_93 = arith.constant 0 : index
    %69 = vector.load %arg8[%c0_90, %c0_91, %c0_92, %c0_93] : memref<2x10x10x32xbf16, #tpu.memory_space<vmem>>, vector<2x8x8x32xbf16>
    %70 = vector.shape_cast %69 : vector<2x8x8x32xbf16> to vector<128x32xbf16>
    %c0_94 = arith.constant 0 : index
    %c0_95 = arith.constant 0 : index
    %71 = vector.load %arg9[%c0_94, %c0_95] : memref<128x288xbf16, #tpu.memory_space<vmem>>, vector<128x32xbf16>
    tpu.vector_store %arg9[%c0_94, %c0_95], %70 {strides = array<i32>} : memref<128x288xbf16, #tpu.memory_space<vmem>>, vector<128x32xbf16>,
    %c0_96 = arith.constant 0 : index
    %c0_97 = arith.constant 0 : index
    %c1_98 = arith.constant 1 : index
    %c0_99 = arith.constant 0 : index
    %72 = vector.load %arg8[%c0_96, %c0_97, %c1_98, %c0_99] : memref<2x10x10x32xbf16, #tpu.memory_space<vmem>>, vector<2x8x8x32xbf16>
    %73 = vector.shape_cast %72 : vector<2x8x8x32xbf16> to vector<128x32xbf16>
    %c0_100 = arith.constant 0 : index
    %c32_101 = arith.constant 32 : index
    %74 = vector.load %arg9[%c0_100, %c32_101] : memref<128x288xbf16, #tpu.memory_space<vmem>>, vector<128x32xbf16>
    tpu.vector_store %arg9[%c0_100, %c32_101], %73 {strides = array<i32>} : memref<128x288xbf16, #tpu.memory_space<vmem>>, vector<128x32xbf16>,
    %c0_102 = arith.constant 0 : index
    %c0_103 = arith.constant 0 : index
    %c2_104 = arith.constant 2 : index
    %c0_105 = arith.constant 0 : index
    %75 = vector.load %arg8[%c0_102, %c0_103, %c2_104, %c0_105] : memref<2x10x10x32xbf16, #tpu.memory_space<vmem>>, vector<2x8x8x32xbf16>
    %76 = vector.shape_cast %75 : vector<2x8x8x32xbf16> to vector<128x32xbf16>
    %c0_106 = arith.constant 0 : index
    %c64_107 = arith.constant 64 : index
    %77 = vector.load %arg9[%c0_106, %c64_107] : memref<128x288xbf16, #tpu.memory_space<vmem>>, vector<128x32xbf16>
    tpu.vector_store %arg9[%c0_106, %c64_107], %76 {strides = array<i32>} : memref<128x288xbf16, #tpu.memory_space<vmem>>, vector<128x32xbf16>,
    %c0_108 = arith.constant 0 : index
    %c1_109 = arith.constant 1 : index
    %c0_110 = arith.constant 0 : index
    %c0_111 = arith.constant 0 : index
    %78 = vector.load %arg8[%c0_108, %c1_109, %c0_110, %c0_111] : memref<2x10x10x32xbf16, #tpu.memory_space<vmem>>, vector<2x8x8x32xbf16>
    %79 = vector.shape_cast %78 : vector<2x8x8x32xbf16> to vector<128x32xbf16>
    %c0_112 = arith.constant 0 : index
    %c96_113 = arith.constant 96 : index
    %80 = vector.load %arg9[%c0_112, %c96_113] : memref<128x288xbf16, #tpu.memory_space<vmem>>, vector<128x32xbf16>
    tpu.vector_store %arg9[%c0_112, %c96_113], %79 {strides = array<i32>} : memref<128x288xbf16, #tpu.memory_space<vmem>>, vector<128x32xbf16>,
    %c0_114 = arith.constant 0 : index
    %c1_115 = arith.constant 1 : index
    %c1_116 = arith.constant 1 : index
    %c0_117 = arith.constant 0 : index
    %81 = vector.load %arg8[%c0_114, %c1_115, %c1_116, %c0_117] : memref<2x10x10x32xbf16, #tpu.memory_space<vmem>>, vector<2x8x8x32xbf16>
    %82 = vector.shape_cast %81 : vector<2x8x8x32xbf16> to vector<128x32xbf16>
    %c0_118 = arith.constant 0 : index
    %c128_119 = arith.constant 128 : index
    %83 = vector.load %arg9[%c0_118, %c128_119] : memref<128x288xbf16, #tpu.memory_space<vmem>>, vector<128x32xbf16>
    tpu.vector_store %arg9[%c0_118, %c128_119], %82 {strides = array<i32>} : memref<128x288xbf16, #tpu.memory_space<vmem>>, vector<128x32xbf16>,
    %c0_120 = arith.constant 0 : index
    %c1_121 = arith.constant 1 : index
    %c2_122 = arith.constant 2 : index
    %c0_123 = arith.constant 0 : index
    %84 = vector.load %arg8[%c0_120, %c1_121, %c2_122, %c0_123] : memref<2x10x10x32xbf16, #tpu.memory_space<vmem>>, vector<2x8x8x32xbf16>
    %85 = vector.shape_cast %84 : vector<2x8x8x32xbf16> to vector<128x32xbf16>
    %c0_124 = arith.constant 0 : index
    %c160_125 = arith.constant 160 : index
    %86 = vector.load %arg9[%c0_124, %c160_125] : memref<128x288xbf16, #tpu.memory_space<vmem>>, vector<128x32xbf16>
    tpu.vector_store %arg9[%c0_124, %c160_125], %85 {strides = array<i32>} : memref<128x288xbf16, #tpu.memory_space<vmem>>, vector<128x32xbf16>,
    %c0_126 = arith.constant 0 : index
    %c2_127 = arith.constant 2 : index
    %c0_128 = arith.constant 0 : index
    %c0_129 = arith.constant 0 : index
    %87 = vector.load %arg8[%c0_126, %c2_127, %c0_128, %c0_129] : memref<2x10x10x32xbf16, #tpu.memory_space<vmem>>, vector<2x8x8x32xbf16>
    %88 = vector.shape_cast %87 : vector<2x8x8x32xbf16> to vector<128x32xbf16>
    %c0_130 = arith.constant 0 : index
    %c192_131 = arith.constant 192 : index
    %89 = vector.load %arg9[%c0_130, %c192_131] : memref<128x288xbf16, #tpu.memory_space<vmem>>, vector<128x32xbf16>
    tpu.vector_store %arg9[%c0_130, %c192_131], %88 {strides = array<i32>} : memref<128x288xbf16, #tpu.memory_space<vmem>>, vector<128x32xbf16>,
    %c0_132 = arith.constant 0 : index
    %c2_133 = arith.constant 2 : index
    %c1_134 = arith.constant 1 : index
    %c0_135 = arith.constant 0 : index
    %90 = vector.load %arg8[%c0_132, %c2_133, %c1_134, %c0_135] : memref<2x10x10x32xbf16, #tpu.memory_space<vmem>>, vector<2x8x8x32xbf16>
    %91 = vector.shape_cast %90 : vector<2x8x8x32xbf16> to vector<128x32xbf16>
    %c0_136 = arith.constant 0 : index
    %c224_137 = arith.constant 224 : index
    %92 = vector.load %arg9[%c0_136, %c224_137] : memref<128x288xbf16, #tpu.memory_space<vmem>>, vector<128x32xbf16>
    tpu.vector_store %arg9[%c0_136, %c224_137], %91 {strides = array<i32>} : memref<128x288xbf16, #tpu.memory_space<vmem>>, vector<128x32xbf16>,
    %c0_138 = arith.constant 0 : index
    %c2_139 = arith.constant 2 : index
    %c2_140 = arith.constant 2 : index
    %c0_141 = arith.constant 0 : index
    %93 = vector.load %arg8[%c0_138, %c2_139, %c2_140, %c0_141] : memref<2x10x10x32xbf16, #tpu.memory_space<vmem>>, vector<2x8x8x32xbf16>
    %94 = vector.shape_cast %93 : vector<2x8x8x32xbf16> to vector<128x32xbf16>
    %c0_142 = arith.constant 0 : index
    %c256_143 = arith.constant 256 : index
    %95 = vector.load %arg9[%c0_142, %c256_143] : memref<128x288xbf16, #tpu.memory_space<vmem>>, vector<128x32xbf16>
    tpu.vector_store %arg9[%c0_142, %c256_143], %94 {strides = array<i32>} : memref<128x288xbf16, #tpu.memory_space<vmem>>, vector<128x32xbf16>,
    %c0_144 = arith.constant 0 : index
    %c0_145 = arith.constant 0 : index
    %96 = vector.load %arg9[%c0_144, %c0_145] : memref<128x288xbf16, #tpu.memory_space<vmem>>, vector<128x288xbf16>
    %c0_146 = arith.constant 0 : index
    %c0_147 = arith.constant 0 : index
    %97 = vector.load %arg4[%c0_146, %c0_147] : memref<288x32xbf16, #tpu.memory_space<vmem>>, vector<288x32xbf16>
    %cst_148 = arith.constant dense<0.000000e+00> : vector<128x32xf32>
    %98 = tpu.matmul %96, %97, %cst_148 {dimension_numbers = #tpu.dot_dimension_numbers<[1], [0], [0], [1], [0, 0, 1, 1], [], []>} : vector<128x288xbf16>, vector<288x32xbf16>, vector<128x32xf32> -> vector<128x32xf32>
    %cst_149 = arith.constant dense<0.000000e+00> : vector<32xf32>
    %99 = vector.multi_reduction <add>, %98, %cst_149 [0] : vector<128x32xf32> to vector<32xf32>
    %100 = vector.shape_cast %99 : vector<32xf32> to vector<1x32xf32>
    %101 = arith.mulf %98, %98 : vector<128x32xf32>
    %cst_150 = arith.constant dense<0.000000e+00> : vector<32xf32>
    %102 = vector.multi_reduction <add>, %101, %cst_150 [0] : vector<128x32xf32> to vector<32xf32>
    %103 = vector.shape_cast %102 : vector<32xf32> to vector<1x32xf32>
    %cst_151 = arith.constant 7.812500e-03 : f32
    %104 = vector.broadcast %cst_151 : f32 to vector<1x32xf32>
    %105 = arith.mulf %100, %104 : vector<1x32xf32>
    %cst_152 = arith.constant 7.812500e-03 : f32
    %106 = vector.broadcast %cst_152 : f32 to vector<1x32xf32>
    %107 = arith.mulf %103, %106 : vector<1x32xf32>
    %108 = arith.mulf %105, %105 : vector<1x32xf32>
    %109 = arith.subf %107, %108 : vector<1x32xf32>
    %cst_153 = arith.constant 9.99999974E-6 : f32
    %110 = vector.broadcast %cst_153 : f32 to vector<1x32xf32>
    %111 = arith.addf %109, %110 : vector<1x32xf32>
    %112 = math.rsqrt %111 : vector<1x32xf32>
    %113 = arith.mulf %112, %67 : vector<1x32xf32>
    %114 = arith.mulf %105, %113 : vector<1x32xf32>
    %115 = arith.subf %68, %114 : vector<1x32xf32>
    %116 = vector.broadcast %113 : vector<1x32xf32> to vector<128x32xf32>
    %117 = arith.mulf %98, %116 : vector<128x32xf32>
    %118 = vector.broadcast %115 : vector<1x32xf32> to vector<128x32xf32>
    %119 = arith.addf %117, %118 : vector<128x32xf32>
    %120 = vector.shape_cast %119 : vector<128x32xf32> to vector<2x8x8x32xf32>
    %121 = arith.addf %120, %6 : vector<2x8x8x32xf32>
    %cst_154 = arith.constant 0.000000e+00 : f32
    %122 = vector.broadcast %cst_154 : f32 to vector<2x8x8x32xf32>
    %123 = arith.maximumf %121, %122 : vector<2x8x8x32xf32>
    %c0_155 = arith.constant 0 : index
    %c0_156 = arith.constant 0 : index
    %c0_157 = arith.constant 0 : index
    %c0_158 = arith.constant 0 : index
    %124 = vector.load %arg7[%c0_155, %c0_156, %c0_157, %c0_158] : memref<2x8x8x32xf32, #tpu.memory_space<vmem>>, vector<2x8x8x32xf32>
    tpu.vector_store %arg7[%c0_155, %c0_156, %c0_157, %c0_158], %123 {strides = array<i32>} : memref<2x8x8x32xf32, #tpu.memory_space<vmem>>, vector<2x8x8x32xf32>,
    return
  }
}

</mosaic_0001>

<llo_original>
// kernel: tpu_custom_call.1
$region0: #{tpu_custom_call.1}
  #allocation0 [shape = 'u32[]', space=smem, size = 0x4, offset = 0x4, fixed_abs, tag = 'smem constant byte address 0x4 - core index']
  #allocation1 [shape = 'u32[144,128]{1,0:T(1,128)}', space=vmem, size = 0x12000, scoped, tag = 'internal scratch']
  #allocation2 [shape = 'bf16[2,10,10,32]{3,2,1,0:T(8,128)(2,1)}', space=vmem, size = 0x14000, scoped, tag = 'scratch operand']
  #allocation3 [shape = 'bf16[128,288]{1,0:T(16,128)(2,1)}', space=vmem, size = 0x18000, scoped, tag = 'scratch operand']
  %s0 = inlined_call_operand.vmem [shape: f32[2,8,8,32], index: 0, kind: input, shape index: {}]
  %s1 = inlined_call_operand.vmem [shape: bf16[288,32], index: 1, kind: input, shape index: {}]
  %s2 = inlined_call_operand.vmem [shape: f32[1,32], index: 2, kind: input, shape index: {}]
  %s3 = inlined_call_operand.vmem [shape: f32[1,32], index: 3, kind: input, shape index: {}]
  %s4 = inlined_call_operand.vmem [shape: bf16[288,32], index: 4, kind: input, shape index: {}]
  %s5 = inlined_call_operand.vmem [shape: f32[1,32], index: 5, kind: input, shape index: {}]
  %s6 = inlined_call_operand.vmem [shape: f32[1,32], index: 6, kind: input, shape index: {}]
  %s7 = inlined_call_operand.hbm [shape: f32[2,8,8,32], index: 7, kind: output, shape index: {}]
  %s8 = sld [smem:[#allocation0]]
  $region38: #{tpu_custom_call.1} parent=0
    _
  %s10 = ssub.s32 1, %s8
  %s11 = scalar_select 0, %s10, %s8
  $region1: #{tpu_custom_call.1} parent=0
    #allocation4 [shape = 'u8[65536]{0}', space=vmem, size = 0x10000, scoped, tag = 'output window, operand 0, single buffered']
    #allocation5 [shape = 's32[1]{0}', space=sflag, size = 0x4, scoped, tag = 'scoped memory for tpu_custom_call.1']
    %12 = vsyncpa [#allocation5], 0
    // Predicated region
    $region2: #{tpu_custom_call.1} parent=1 // pred_check
      _
    $region3: #{tpu_custom_call.1} parent=1 // pred_check_branch
      %14 = sbr.rel (0) target = $region5
    $region4: #{tpu_custom_call.1} parent=1 // pred_region
      _
    $region5: #{tpu_custom_call.1} parent=1 // pred_fallthru
      _
    // Predicated region
    $region6: #{tpu_custom_call.1} parent=1 // pred_check
      _
    $region7: #{tpu_custom_call.1} parent=1 // pred_check_branch
      %16 = sbr.rel (0) target = $region9
    $region8: #{tpu_custom_call.1} parent=1 // pred_region
      _
    $region9: #{tpu_custom_call.1} parent=1 // pred_fallthru
      _
    // Predicated region
    $region10: #{tpu_custom_call.1} parent=1 // pred_check
      _
    $region11: #{tpu_custom_call.1} parent=1 // pred_check_branch
      %18 = sbr.rel (0) target = $region13
    $region12: #{tpu_custom_call.1} parent=1 // pred_region
      _
    $region13: #{tpu_custom_call.1} parent=1 // pred_fallthru
      _
    // Predicated region
    $region14: #{tpu_custom_call.1} parent=1 // pred_check
      _
    $region15: #{tpu_custom_call.1} parent=1 // pred_check_branch
      %20 = sbr.rel (0) target = $region17
    $region16: #{tpu_custom_call.1} parent=1 // pred_region
      _
    $region17: #{tpu_custom_call.1} parent=1 // pred_fallthru
      _
    // Predicated region
    $region18: #{tpu_custom_call.1} parent=1 // pred_check
      _
    $region19: #{tpu_custom_call.1} parent=1 // pred_check_branch
      %22 = sbr.rel (0) target = $region21
    $region20: #{tpu_custom_call.1} parent=1 // pred_region
      _
    $region21: #{tpu_custom_call.1} parent=1 // pred_fallthru
      _
    // Predicated region
    $region22: #{tpu_custom_call.1} parent=1 // pred_check
      _
    $region23: #{tpu_custom_call.1} parent=1 // pred_check_branch
      %24 = sbr.rel (0) target = $region25
    $region24: #{tpu_custom_call.1} parent=1 // pred_region
      _
    $region25: #{tpu_custom_call.1} parent=1 // pred_fallthru
      _
    // Predicated region
    $region26: #{tpu_custom_call.1} parent=1 // pred_check
      _
    $region27: #{tpu_custom_call.1} parent=1 // pred_check_branch
      %26 = sbr.rel (0) target = $region29
    $region28: #{tpu_custom_call.1} parent=1 // pred_region
      _
    $region29: #{tpu_custom_call.1} parent=1 // pred_fallthru
      _
    %vm28 = vcmask 257024
    %29 = vst.msk [vmem:[#allocation2] sm:$0xf] %vm28, 0
    %vm30 = vcmask 253952
    %31 = vst.msk [vmem:[#allocation2 + $0x4] sm:$0x1] %vm30, 0
    %32 = vst.msk [vmem:[#allocation2 + $0x50] sm:$0xf] %vm28, 0
    %33 = vst.msk [vmem:[#allocation2 + $0x54] sm:$0x1] %vm30, 0
    %s34 = scalar_lea.vmem [#allocation2], 72
    %35 = vst.msk [vmem:[%s34] sm:$0xf] %vm28, 0
    %36 = vst.msk [vmem:[%s34 + $0x4] sm:$0x1] %vm30, 0
    %37 = vst.msk [vmem:[%s34 + $0x50] sm:$0xf] %vm28, 0
    %38 = vst.msk [vmem:[%s34 + $0x54] sm:$0x1] %vm30, 0
    %s39 = scalar_lea.vmem [#allocation2], 8
    %vm40 = vcmask 253952
    %vm41 = vsmask.f32 256
    %vm42 = vmand %vm40, %vm41
    %v43 = vld [vmem:[%s39] sm:$0x1]
    %v44 = vsel %vm42, 0, %v43
    %45 = vst [vmem:[%s39] sm:$0x1] %v44
    %v46 = vld [vmem:[%s39 + $0x8] sm:$0x1]
    %v47 = vsel %vm42, 0, %v46
    %48 = vst [vmem:[%s39 + $0x8] sm:$0x1] %v47
    %v49 = vld [vmem:[%s39 + $0x10] sm:$0x1]
    %v50 = vsel %vm42, 0, %v49
    %51 = vst [vmem:[%s39 + $0x10] sm:$0x1] %v50
    %v52 = vld [vmem:[%s39 + $0x18] sm:$0x1]
    %v53 = vsel %vm42, 0, %v52
    %54 = vst [vmem:[%s39 + $0x18] sm:$0x1] %v53
    %v55 = vld [vmem:[%s39 + $0x20] sm:$0x1]
    %v56 = vsel %vm42, 0, %v55
    %57 = vst [vmem:[%s39 + $0x20] sm:$0x1] %v56
    %v58 = vld [vmem:[%s39 + $0x28] sm:$0x1]
    %v59 = vsel %vm42, 0, %v58
    %60 = vst [vmem:[%s39 + $0x28] sm:$0x1] %v59
    %v61 = vld [vmem:[%s39 + $0x30] sm:$0x1]
    %v62 = vsel %vm42, 0, %v61
    %63 = vst [vmem:[%s39 + $0x30] sm:$0x1] %v62
    %v64 = vld [vmem:[%s39 + $0x38] sm:$0x1]
    %v65 = vsel %vm42, 0, %v64
    %66 = vst [vmem:[%s39 + $0x38] sm:$0x1] %v65
    %v67 = vld [vmem:[%s39 + $0x50] sm:$0x1]
    %v68 = vsel %vm42, 0, %v67
    %69 = vst [vmem:[%s39 + $0x50] sm:$0x1] %v68
    %v70 = vld [vmem:[%s39 + $0x58] sm:$0x1]
    %v71 = vsel %vm42, 0, %v70
    %72 = vst [vmem:[%s39 + $0x58] sm:$0x1] %v71
    %v73 = vld [vmem:[%s39 + $0x60] sm:$0x1]
    %v74 = vsel %vm42, 0, %v73
    %75 = vst [vmem:[%s39 + $0x60] sm:$0x1] %v74
    %v76 = vld [vmem:[%s39 + $0x68] sm:$0x1]
    %v77 = vsel %vm42, 0, %v76
    %78 = vst [vmem:[%s39 + $0x68] sm:$0x1] %v77
    %v79 = vld [vmem:[%s39 + $0x70] sm:$0x1]
    %v80 = vsel %vm42, 0, %v79
    %81 = vst [vmem:[%s39 + $0x70] sm:$0x1] %v80
    %v82 = vld [vmem:[%s39 + $0x78] sm:$0x1]
    %v83 = vsel %vm42, 0, %v82
    %84 = vst [vmem:[%s39 + $0x78] sm:$0x1] %v83
    %v85 = vld [vmem:[%s39 + $0x80] sm:$0x1]
    %v86 = vsel %vm42, 0, %v85
    %87 = vst [vmem:[%s39 + $0x80] sm:$0x1] %v86
    %v88 = vld [vmem:[%s39 + $0x88] sm:$0x1]
    %v89 = vsel %vm42, 0, %v88
    %90 = vst [vmem:[%s39 + $0x88] sm:$0x1] %v89
    %vm91 = vsmask.f32 7938
    %vm92 = vmand %vm40, %vm91
    %v93 = vld [vmem:[%s39 + $0x4] sm:$0x1]
    %v94 = vsel %vm92, 0, %v93
    %95 = vst [vmem:[%s39 + $0x4] sm:$0x1] %v94
    %v96 = vld [vmem:[%s39 + $0xc] sm:$0x1]
    %v97 = vsel %vm92, 0, %v96
    %98 = vst [vmem:[%s39 + $0xc] sm:$0x1] %v97
    %v99 = vld [vmem:[%s39 + $0x14] sm:$0x1]
    %v100 = vsel %vm92, 0, %v99
    %101 = vst [vmem:[%s39 + $0x14] sm:$0x1] %v100
    %v102 = vld [vmem:[%s39 + $0x1c] sm:$0x1]
    %v103 = vsel %vm92, 0, %v102
    %104 = vst [vmem:[%s39 + $0x1c] sm:$0x1] %v103
    %v105 = vld [vmem:[%s39 + $0x24] sm:$0x1]
    %v106 = vsel %vm92, 0, %v105
    %107 = vst [vmem:[%s39 + $0x24] sm:$0x1] %v106
    %v108 = vld [vmem:[%s39 + $0x2c] sm:$0x1]
    %v109 = vsel %vm92, 0, %v108
    %110 = vst [vmem:[%s39 + $0x2c] sm:$0x1] %v109
    %v111 = vld [vmem:[%s39 + $0x34] sm:$0x1]
    %v112 = vsel %vm92, 0, %v111
    %113 = vst [vmem:[%s39 + $0x34] sm:$0x1] %v112
    %v114 = vld [vmem:[%s39 + $0x3c] sm:$0x1]
    %v115 = vsel %vm92, 0, %v114
    %116 = vst [vmem:[%s39 + $0x3c] sm:$0x1] %v115
    %v117 = vld [vmem:[%s39 + $0x54] sm:$0x1]
    %v118 = vsel %vm92, 0, %v117
    %119 = vst [vmem:[%s39 + $0x54] sm:$0x1] %v118
    %v120 = vld [vmem:[%s39 + $0x5c] sm:$0x1]
    %v121 = vsel %vm92, 0, %v120
    %122 = vst [vmem:[%s39 + $0x5c] sm:$0x1] %v121
    %v123 = vld [vmem:[%s39 + $0x64] sm:$0x1]
    %v124 = vsel %vm92, 0, %v123
    %125 = vst [vmem:[%s39 + $0x64] sm:$0x1] %v124
    %v126 = vld [vmem:[%s39 + $0x6c] sm:$0x1]
    %v127 = vsel %vm92, 0, %v126
    %128 = vst [vmem:[%s39 + $0x6c] sm:$0x1] %v127
    %v129 = vld [vmem:[%s39 + $0x74] sm:$0x1]
    %v130 = vsel %vm92, 0, %v129
    %131 = vst [vmem:[%s39 + $0x74] sm:$0x1] %v130
    %v132 = vld [vmem:[%s39 + $0x7c] sm:$0x1]
    %v133 = vsel %vm92, 0, %v132
    %134 = vst [vmem:[%s39 + $0x7c] sm:$0x1] %v133
    %v135 = vld [vmem:[%s39 + $0x84] sm:$0x1]
    %v136 = vsel %vm92, 0, %v135
    %137 = vst [vmem:[%s39 + $0x84] sm:$0x1] %v136
    %v138 = vld [vmem:[%s39 + $0x8c] sm:$0x1]
    %v139 = vsel %vm92, 0, %v138
    %140 = vst [vmem:[%s39 + $0x8c] sm:$0x1] %v139
    %v141 = vld [vmem:[%s0] sm:$0xff]
    %v142 = vld [vmem:[%s0 + $0x8] sm:$0xff]
    %v143 = vld [vmem:[%s0 + $0x10] sm:$0xff]
    %v144 = vld [vmem:[%s0 + $0x18] sm:$0xff]
    %v145 = vld [vmem:[%s0 + $0x20] sm:$0xff]
    %v146 = vld [vmem:[%s0 + $0x28] sm:$0xff]
    %v147 = vld [vmem:[%s0 + $0x30] sm:$0xff]
    %v148 = vld [vmem:[%s0 + $0x38] sm:$0xff]
    %v149 = vld [vmem:[%s0 + $0x40] sm:$0xff]
    %v150 = vld [vmem:[%s0 + $0x48] sm:$0xff]
    %v151 = vld [vmem:[%s0 + $0x50] sm:$0xff]
    %v152 = vld [vmem:[%s0 + $0x58] sm:$0xff]
    %v153 = vld [vmem:[%s0 + $0x60] sm:$0xff]
    %v154 = vld [vmem:[%s0 + $0x68] sm:$0xff]
    %v155 = vld [vmem:[%s0 + $0x70] sm:$0xff]
    %v156 = vld [vmem:[%s0 + $0x78] sm:$0xff]
    %v157 = vpack.c.bf16 %v141, %v141
    %v158 = vpack.c.bf16 %v142, %v142
    %v159 = vpack.c.bf16 %v143, %v143
    %v160 = vpack.c.bf16 %v144, %v144
    %v161 = vpack.c.bf16 %v145, %v145
    %v162 = vpack.c.bf16 %v146, %v146
    %v163 = vpack.c.bf16 %v147, %v147
    %v164 = vpack.c.bf16 %v148, %v148
    %v165 = vpack.c.bf16 %v149, %v149
    %v166 = vpack.c.bf16 %v150, %v150
    %v167 = vpack.c.bf16 %v151, %v151
    %v168 = vpack.c.bf16 %v152, %v152
    %v169 = vpack.c.bf16 %v153, %v153
    %v170 = vpack.c.bf16 %v154, %v154
    %v171 = vpack.c.bf16 %v155, %v155
    %v172 = vpack.c.bf16 %v156, %v156
    %v189 = vunpack.c.l.b16 %v157
    %v190 = vunpack.c.l.b16 %v158
    %v191 = vunpack.c.l.b16 %v159
    %v192 = vunpack.c.l.b16 %v160
    %v193 = vunpack.c.l.b16 %v161
    %v194 = vunpack.c.l.b16 %v162
    %v195 = vunpack.c.l.b16 %v163
    %v196 = vunpack.c.l.b16 %v164
    %v197 = vunpack.c.l.b16 %v165
    %v198 = vunpack.c.l.b16 %v166
    %v199 = vunpack.c.l.b16 %v167
    %v200 = vunpack.c.l.b16 %v168
    %v201 = vunpack.c.l.b16 %v169
    %v202 = vunpack.c.l.b16 %v170
    %v203 = vunpack.c.l.b16 %v171
    %v204 = vunpack.c.l.b16 %v172
    %v205 = vpack.c.b16 %v189, %v189
    %v206 = vpack.c.b16 %v190, %v190
    %v207 = vpack.c.b16 %v191, %v191
    %v208 = vpack.c.b16 %v192, %v192
    %v209 = vpack.c.b16 %v193, %v193
    %v210 = vpack.c.b16 %v194, %v194
    %v211 = vpack.c.b16 %v195, %v195
    %v212 = vpack.c.b16 %v196, %v196
    %v213 = vpack.c.b16 %v197, %v197
    %v214 = vpack.c.b16 %v198, %v198
    %v215 = vpack.c.b16 %v199, %v199
    %v216 = vpack.c.b16 %v200, %v200
    %v217 = vpack.c.b16 %v201, %v201
    %v218 = vpack.c.b16 %v202, %v202
    %v219 = vpack.c.b16 %v203, %v203
    %v220 = vpack.c.b16 %v204, %v204
    %v222 = vshrl.u32 %v205, 16
    %v224 = vrot.slane %v222, 7
    %v225 = vshll.u32 %v205, 16
    %v227 = vor.u32 %v224, %v225
    %v228 = vrot.slane %v224, 4
    %v230 = vshrl.u32 %v206, 16
    %v232 = vrot.slane %v230, 7
    %v233 = vshll.u32 %v206, 16
    %v235 = vor.u32 %v232, %v233
    %v236 = vrot.slane %v232, 4
    %v238 = vshrl.u32 %v207, 16
    %v240 = vrot.slane %v238, 7
    %v241 = vshll.u32 %v207, 16
    %v243 = vor.u32 %v240, %v241
    %v244 = vrot.slane %v240, 4
    %v246 = vshrl.u32 %v208, 16
    %v248 = vrot.slane %v246, 7
    %v249 = vshll.u32 %v208, 16
    %v251 = vor.u32 %v248, %v249
    %v252 = vrot.slane %v248, 4
    %v254 = vshrl.u32 %v209, 16
    %v256 = vrot.slane %v254, 7
    %v257 = vshll.u32 %v209, 16
    %v259 = vor.u32 %v256, %v257
    %v260 = vrot.slane %v256, 4
    %v262 = vshrl.u32 %v210, 16
    %v264 = vrot.slane %v262, 7
    %v265 = vshll.u32 %v210, 16
    %v267 = vor.u32 %v264, %v265
    %v268 = vrot.slane %v264, 4
    %v270 = vshrl.u32 %v211, 16
    %v272 = vrot.slane %v270, 7
    %v273 = vshll.u32 %v211, 16
    %v275 = vor.u32 %v272, %v273
    %v276 = vrot.slane %v272, 4
    %v278 = vshrl.u32 %v212, 16
    %v280 = vrot.slane %v278, 7
    %v281 = vshll.u32 %v212, 16
    %v283 = vor.u32 %v280, %v281
    %v284 = vrot.slane %v280, 4
    %v286 = vshrl.u32 %v213, 16
    %v288 = vrot.slane %v286, 7
    %v289 = vshll.u32 %v213, 16
    %v291 = vor.u32 %v288, %v289
    %v292 = vrot.slane %v288, 4
    %v294 = vshrl.u32 %v214, 16
    %v296 = vrot.slane %v294, 7
    %v297 = vshll.u32 %v214, 16
    %v299 = vor.u32 %v296, %v297
    %v300 = vrot.slane %v296, 4
    %v302 = vshrl.u32 %v215, 16
    %v304 = vrot.slane %v302, 7
    %v305 = vshll.u32 %v215, 16
    %v307 = vor.u32 %v304, %v305
    %v308 = vrot.slane %v304, 4
    %v310 = vshrl.u32 %v216, 16
    %v312 = vrot.slane %v310, 7
    %v313 = vshll.u32 %v216, 16
    %v315 = vor.u32 %v312, %v313
    %v316 = vrot.slane %v312, 4
    %v318 = vshrl.u32 %v217, 16
    %v320 = vrot.slane %v318, 7
    %v321 = vshll.u32 %v217, 16
    %v323 = vor.u32 %v320, %v321
    %v324 = vrot.slane %v320, 4
    %v326 = vshrl.u32 %v218, 16
    %v328 = vrot.slane %v326, 7
    %v329 = vshll.u32 %v218, 16
    %v331 = vor.u32 %v328, %v329
    %v332 = vrot.slane %v328, 4
    %v334 = vshrl.u32 %v219, 16
    %v336 = vrot.slane %v334, 7
    %v337 = vshll.u32 %v219, 16
    %v339 = vor.u32 %v336, %v337
    %v340 = vrot.slane %v336, 4
    %v342 = vshrl.u32 %v220, 16
    %v344 = vrot.slane %v342, 7
    %v345 = vshll.u32 %v220, 16
    %v347 = vor.u32 %v344, %v345
    %v348 = vrot.slane %v344, 4
    %vm381 = vcmask 257024
    %vm382 = vmand %vm381, %vm91
    %v383 = vld [vmem:[%s39] sm:$0xf]
    %v384 = vsel %vm382, %v227, %v383
    %385 = vst [vmem:[%s39] sm:$0xf] %v384
    %v386 = vld [vmem:[%s39 + $0x4] sm:$0x1]
    %v387 = vsel %vm42, %v228, %v386
    %388 = vst [vmem:[%s39 + $0x4] sm:$0x1] %v387
    %v389 = vld [vmem:[%s39 + $0x8] sm:$0xf]
    %v390 = vsel %vm382, %v235, %v389
    %391 = vst [vmem:[%s39 + $0x8] sm:$0xf] %v390
    %v392 = vld [vmem:[%s39 + $0xc] sm:$0x1]
    %v393 = vsel %vm42, %v236, %v392
    %394 = vst [vmem:[%s39 + $0xc] sm:$0x1] %v393
    %v395 = vld [vmem:[%s39 + $0x10] sm:$0xf]
    %v396 = vsel %vm382, %v243, %v395
    %397 = vst [vmem:[%s39 + $0x10] sm:$0xf] %v396
    %v398 = vld [vmem:[%s39 + $0x14] sm:$0x1]
    %v399 = vsel %vm42, %v244, %v398
    %400 = vst [vmem:[%s39 + $0x14] sm:$0x1] %v399
    %v401 = vld [vmem:[%s39 + $0x18] sm:$0xf]
    %v402 = vsel %vm382, %v251, %v401
    %403 = vst [vmem:[%s39 + $0x18] sm:$0xf] %v402
    %v404 = vld [vmem:[%s39 + $0x1c] sm:$0x1]
    %v405 = vsel %vm42, %v252, %v404
    %406 = vst [vmem:[%s39 + $0x1c] sm:$0x1] %v405
    %v407 = vld [vmem:[%s39 + $0x20] sm:$0xf]
    %v408 = vsel %vm382, %v259, %v407
    %409 = vst [vmem:[%s39 + $0x20] sm:$0xf] %v408
    %v410 = vld [vmem:[%s39 + $0x24] sm:$0x1]
    %v411 = vsel %vm42, %v260, %v410
    %412 = vst [vmem:[%s39 + $0x24] sm:$0x1] %v411
    %v413 = vld [vmem:[%s39 + $0x28] sm:$0xf]
    %v414 = vsel %vm382, %v267, %v413
    %415 = vst [vmem:[%s39 + $0x28] sm:$0xf] %v414
    %v416 = vld [vmem:[%s39 + $0x2c] sm:$0x1]
    %v417 = vsel %vm42, %v268, %v416
    %418 = vst [vmem:[%s39 + $0x2c] sm:$0x1] %v417
    %v419 = vld [vmem:[%s39 + $0x30] sm:$0xf]
    %v420 = vsel %vm382, %v275, %v419
    %421 = vst [vmem:[%s39 + $0x30] sm:$0xf] %v420
    %v422 = vld [vmem:[%s39 + $0x34] sm:$0x1]
    %v423 = vsel %vm42, %v276, %v422
    %424 = vst [vmem:[%s39 + $0x34] sm:$0x1] %v423
    %v425 = vld [vmem:[%s39 + $0x38] sm:$0xf]
    %v426 = vsel %vm382, %v283, %v425
    %427 = vst [vmem:[%s39 + $0x38] sm:$0xf] %v426
    %v428 = vld [vmem:[%s39 + $0x3c] sm:$0x1]
    %v429 = vsel %vm42, %v284, %v428
    %430 = vst [vmem:[%s39 + $0x3c] sm:$0x1] %v429
    %v431 = vld [vmem:[%s39 + $0x50] sm:$0xf]
    %v432 = vsel %vm382, %v291, %v431
    %433 = vst [vmem:[%s39 + $0x50] sm:$0xf] %v432
    %v434 = vld [vmem:[%s39 + $0x54] sm:$0x1]
    %v435 = vsel %vm42, %v292, %v434
    %436 = vst [vmem:[%s39 + $0x54] sm:$0x1] %v435
    %v437 = vld [vmem:[%s39 + $0x58] sm:$0xf]
    %v438 = vsel %vm382, %v299, %v437
    %439 = vst [vmem:[%s39 + $0x58] sm:$0xf] %v438
    %v440 = vld [vmem:[%s39 + $0x5c] sm:$0x1]
    %v441 = vsel %vm42, %v300, %v440
    %442 = vst [vmem:[%s39 + $0x5c] sm:$0x1] %v441
    %v443 = vld [vmem:[%s39 + $0x60] sm:$0xf]
    %v444 = vsel %vm382, %v307, %v443
    %445 = vst [vmem:[%s39 + $0x60] sm:$0xf] %v444
    %v446 = vld [vmem:[%s39 + $0x64] sm:$0x1]
    %v447 = vsel %vm42, %v308, %v446
    %448 = vst [vmem:[%s39 + $0x64] sm:$0x1] %v447
    %v449 = vld [vmem:[%s39 + $0x68] sm:$0xf]
    %v450 = vsel %vm382, %v315, %v449
    %451 = vst [vmem:[%s39 + $0x68] sm:$0xf] %v450
    %v452 = vld [vmem:[%s39 + $0x6c] sm:$0x1]
    %v453 = vsel %vm42, %v316, %v452
    %454 = vst [vmem:[%s39 + $0x6c] sm:$0x1] %v453
    %v455 = vld [vmem:[%s39 + $0x70] sm:$0xf]
    %v456 = vsel %vm382, %v323, %v455
    %457 = vst [vmem:[%s39 + $0x70] sm:$0xf] %v456
    %v458 = vld [vmem:[%s39 + $0x74] sm:$0x1]
    %v459 = vsel %vm42, %v324, %v458
    %460 = vst [vmem:[%s39 + $0x74] sm:$0x1] %v459
    %v461 = vld [vmem:[%s39 + $0x78] sm:$0xf]
    %v462 = vsel %vm382, %v331, %v461
    %463 = vst [vmem:[%s39 + $0x78] sm:$0xf] %v462
    %v464 = vld [vmem:[%s39 + $0x7c] sm:$0x1]
    %v465 = vsel %vm42, %v332, %v464
    %466 = vst [vmem:[%s39 + $0x7c] sm:$0x1] %v465
    %v467 = vld [vmem:[%s39 + $0x80] sm:$0xf]
    %v468 = vsel %vm382, %v339, %v467
    %469 = vst [vmem:[%s39 + $0x80] sm:$0xf] %v468
    %v470 = vld [vmem:[%s39 + $0x84] sm:$0x1]
    %v471 = vsel %vm42, %v340, %v470
    %472 = vst [vmem:[%s39 + $0x84] sm:$0x1] %v471
    %v473 = vld [vmem:[%s39 + $0x88] sm:$0xf]
    %v474 = vsel %vm382, %v347, %v473
    %475 = vst [vmem:[%s39 + $0x88] sm:$0xf] %v474
    %v476 = vld [vmem:[%s39 + $0x8c] sm:$0x1]
    %v477 = vsel %vm42, %v348, %v476
    %478 = vst [vmem:[%s39 + $0x8c] sm:$0x1] %v477
    %v479 = vld [vmem:[%s2] sm:$0x1]
    %v480 = vld [vmem:[%s3] sm:$0x1]
    %v481 = vld [vmem:[#allocation2] sm:$0xf]
    %v482 = vld [vmem:[#allocation2 + $0x8] sm:$0xf]
    %v483 = vld [vmem:[#allocation2 + $0x10] sm:$0xf]
    %v484 = vld [vmem:[#allocation2 + $0x18] sm:$0xf]
    %v485 = vld [vmem:[#allocation2 + $0x20] sm:$0xf]
    %v486 = vld [vmem:[#allocation2 + $0x28] sm:$0xf]
    %v487 = vld [vmem:[#allocation2 + $0x30] sm:$0xf]
    %v488 = vld [vmem:[#allocation2 + $0x38] sm:$0xf]
    %v489 = vld [vmem:[#allocation2 + $0x50] sm:$0xf]
    %v490 = vld [vmem:[#allocation2 + $0x58] sm:$0xf]
    %v491 = vld [vmem:[#allocation2 + $0x60] sm:$0xf]
    %v492 = vld [vmem:[#allocation2 + $0x68] sm:$0xf]
    %v493 = vld [vmem:[#allocation2 + $0x70] sm:$0xf]
    %v494 = vld [vmem:[#allocation2 + $0x78] sm:$0xf]
    %v495 = vld [vmem:[#allocation2 + $0x80] sm:$0xf]
    %v496 = vld [vmem:[#allocation2 + $0x88] sm:$0xf]
    %v513 = vunpack.c.l.b16 %v481
    %v514 = vunpack.c.l.b16 %v482
    %v515 = vunpack.c.l.b16 %v483
    %v516 = vunpack.c.l.b16 %v484
    %v517 = vunpack.c.l.b16 %v485
    %v518 = vunpack.c.l.b16 %v486
    %v519 = vunpack.c.l.b16 %v487
    %v520 = vunpack.c.l.b16 %v488
    %v521 = vunpack.c.l.b16 %v489
    %v522 = vunpack.c.l.b16 %v490
    %v523 = vunpack.c.l.b16 %v491
    %v524 = vunpack.c.l.b16 %v492
    %v525 = vunpack.c.l.b16 %v493
    %v526 = vunpack.c.l.b16 %v494
    %v527 = vunpack.c.l.b16 %v495
    %v528 = vunpack.c.l.b16 %v496
    %v529 = vpack.c.b16 %v514, %v513
    %v530 = vpack.c.b16 %v516, %v515
    %v531 = vpack.c.b16 %v518, %v517
    %v532 = vpack.c.b16 %v520, %v519
    %v533 = vpack.c.b16 %v522, %v521
    %v534 = vpack.c.b16 %v524, %v523
    %v535 = vpack.c.b16 %v526, %v525
    %v536 = vpack.c.b16 %v528, %v527
    %vm545 = vcmask 261120
    %546 = vst.msk [vmem:[#allocation3] sm:$0xff] %vm545, %v529
    %547 = vst.msk [vmem:[#allocation3 + $0x18] sm:$0xff] %vm545, %v530
    %548 = vst.msk [vmem:[#allocation3 + $0x30] sm:$0xff] %vm545, %v531
    %549 = vst.msk [vmem:[#allocation3 + $0x48] sm:$0xff] %vm545, %v532
    %550 = vst.msk [vmem:[#allocation3 + $0x60] sm:$0xff] %vm545, %v533
    %551 = vst.msk [vmem:[#allocation3 + $0x78] sm:$0xff] %vm545, %v534
    %552 = vst.msk [vmem:[#allocation3 + $0x90] sm:$0xff] %vm545, %v535
    %553 = vst.msk [vmem:[#allocation3 + $0xa8] sm:$0xff] %vm545, %v536
    %v554 = vld [vmem:[#allocation2] sm:$0xf]
    %v555 = vld [vmem:[#allocation2 + $0x4] sm:$0x1]
    %v556 = vld [vmem:[#allocation2 + $0x8] sm:$0xf]
    %v557 = vld [vmem:[#allocation2 + $0xc] sm:$0x1]
    %v558 = vld [vmem:[#allocation2 + $0x10] sm:$0xf]
    %v559 = vld [vmem:[#allocation2 + $0x14] sm:$0x1]
    %v560 = vld [vmem:[#allocation2 + $0x18] sm:$0xf]
    %v561 = vld [vmem:[#allocation2 + $0x1c] sm:$0x1]
    %v562 = vld [vmem:[#allocation2 + $0x20] sm:$0xf]
    %v563 = vld [vmem:[#allocation2 + $0x24] sm:$0x1]
    %v564 = vld [vmem:[#allocation2 + $0x28] sm:$0xf]
    %v565 = vld [vmem:[#allocation2 + $0x2c] sm:$0x1]
    %v566 = vld [vmem:[#allocation2 + $0x30] sm:$0xf]
    %v567 = vld [vmem:[#allocation2 + $0x34] sm:$0x1]
    %v568 = vld [vmem:[#allocation2 + $0x38] sm:$0xf]
    %v569 = vld [vmem:[#allocation2 + $0x3c] sm:$0x1]
    %v570 = vld [vmem:[#allocation2 + $0x50] sm:$0xf]
    %v571 = vld [vmem:[#allocation2 + $0x54] sm:$0x1]
    %v572 = vld [vmem:[#allocation2 + $0x58] sm:$0xf]
    %v573 = vld [vmem:[#allocation2 + $0x5c] sm:$0x1]
    %v574 = vld [vmem:[#allocation2 + $0x60] sm:$0xf]
    %v575 = vld [vmem:[#allocation2 + $0x64] sm:$0x1]
    %v576 = vld [vmem:[#allocation2 + $0x68] sm:$0xf]
    %v577 = vld [vmem:[#allocation2 + $0x6c] sm:$0x1]
    %v578 = vld [vmem:[#allocation2 + $0x70] sm:$0xf]
    %v579 = vld [vmem:[#allocation2 + $0x74] sm:$0x1]
    %v580 = vld [vmem:[#allocation2 + $0x78] sm:$0xf]
    %v581 = vld [vmem:[#allocation2 + $0x7c] sm:$0x1]
    %v582 = vld [vmem:[#allocation2 + $0x80] sm:$0xf]
    %v583 = vld [vmem:[#allocation2 + $0x84] sm:$0x1]
    %v584 = vld [vmem:[#allocation2 + $0x88] sm:$0xf]
    %v585 = vld [vmem:[#allocation2 + $0x8c] sm:$0x1]
    %vm586 = vsmask.f32 3328
    %vm587 = vsmask.f32 7440
    %vm588 = vmor %vm586, %vm587
    %v590 = vshrl.u32 %v554, 16
    %v592 = vrot.slane %v590, 4
    %v593 = vshll.u32 %v554, 16
    %v595 = vrot.slane %v593, 5
    %v596 = vor.u32 %v592, %v595
    %v597 = vrot.slane %v596, 4
    %v599 = vshll.u32 %v555, 16
    %v601 = vrot.slane %v599, 5
    %v602 = vsel %vm588, %v597, %v601
    %v604 = vshrl.u32 %v556, 16
    %v606 = vrot.slane %v604, 4
    %v607 = vshll.u32 %v556, 16
    %v609 = vrot.slane %v607, 5
    %v610 = vor.u32 %v606, %v609
    %v611 = vrot.slane %v610, 4
    %v613 = vshll.u32 %v557, 16
    %v615 = vrot.slane %v613, 5
    %v616 = vsel %vm588, %v611, %v615
    %v618 = vshrl.u32 %v558, 16
    %v620 = vrot.slane %v618, 4
    %v621 = vshll.u32 %v558, 16
    %v623 = vrot.slane %v621, 5
    %v624 = vor.u32 %v620, %v623
    %v625 = vrot.slane %v624, 4
    %v627 = vshll.u32 %v559, 16
    %v629 = vrot.slane %v627, 5
    %v630 = vsel %vm588, %v625, %v629
    %v632 = vshrl.u32 %v560, 16
    %v634 = vrot.slane %v632, 4
    %v635 = vshll.u32 %v560, 16
    %v637 = vrot.slane %v635, 5
    %v638 = vor.u32 %v634, %v637
    %v639 = vrot.slane %v638, 4
    %v641 = vshll.u32 %v561, 16
    %v643 = vrot.slane %v641, 5
    %v644 = vsel %vm588, %v639, %v643
    %v646 = vshrl.u32 %v562, 16
    %v648 = vrot.slane %v646, 4
    %v649 = vshll.u32 %v562, 16
    %v651 = vrot.slane %v649, 5
    %v652 = vor.u32 %v648, %v651
    %v653 = vrot.slane %v652, 4
    %v655 = vshll.u32 %v563, 16
    %v657 = vrot.slane %v655, 5
    %v658 = vsel %vm588, %v653, %v657
    %v660 = vshrl.u32 %v564, 16
    %v662 = vrot.slane %v660, 4
    %v663 = vshll.u32 %v564, 16
    %v665 = vrot.slane %v663, 5
    %v666 = vor.u32 %v662, %v665
    %v667 = vrot.slane %v666, 4
    %v669 = vshll.u32 %v565, 16
    %v671 = vrot.slane %v669, 5
    %v672 = vsel %vm588, %v667, %v671
    %v674 = vshrl.u32 %v566, 16
    %v676 = vrot.slane %v674, 4
    %v677 = vshll.u32 %v566, 16
    %v679 = vrot.slane %v677, 5
    %v680 = vor.u32 %v676, %v679
    %v681 = vrot.slane %v680, 4
    %v683 = vshll.u32 %v567, 16
    %v685 = vrot.slane %v683, 5
    %v686 = vsel %vm588, %v681, %v685
    %v688 = vshrl.u32 %v568, 16
    %v690 = vrot.slane %v688, 4
    %v691 = vshll.u32 %v568, 16
    %v693 = vrot.slane %v691, 5
    %v694 = vor.u32 %v690, %v693
    %v695 = vrot.slane %v694, 4
    %v697 = vshll.u32 %v569, 16
    %v699 = vrot.slane %v697, 5
    %v700 = vsel %vm588, %v695, %v699
    %v702 = vshrl.u32 %v570, 16
    %v704 = vrot.slane %v702, 4
    %v705 = vshll.u32 %v570, 16
    %v707 = vrot.slane %v705, 5
    %v708 = vor.u32 %v704, %v707
    %v709 = vrot.slane %v708, 4
    %v711 = vshll.u32 %v571, 16
    %v713 = vrot.slane %v711, 5
    %v714 = vsel %vm588, %v709, %v713
    %v716 = vshrl.u32 %v572, 16
    %v718 = vrot.slane %v716, 4
    %v719 = vshll.u32 %v572, 16
    %v721 = vrot.slane %v719, 5
    %v722 = vor.u32 %v718, %v721
    %v723 = vrot.slane %v722, 4
    %v725 = vshll.u32 %v573, 16
    %v727 = vrot.slane %v725, 5
    %v728 = vsel %vm588, %v723, %v727
    %v730 = vshrl.u32 %v574, 16
    %v732 = vrot.slane %v730, 4
    %v733 = vshll.u32 %v574, 16
    %v735 = vrot.slane %v733, 5
    %v736 = vor.u32 %v732, %v735
    %v737 = vrot.slane %v736, 4
    %v739 = vshll.u32 %v575, 16
    %v741 = vrot.slane %v739, 5
    %v742 = vsel %vm588, %v737, %v741
    %v744 = vshrl.u32 %v576, 16
    %v746 = vrot.slane %v744, 4
    %v747 = vshll.u32 %v576, 16
    %v749 = vrot.slane %v747, 5
    %v750 = vor.u32 %v746, %v749
    %v751 = vrot.slane %v750, 4
    %v753 = vshll.u32 %v577, 16
    %v755 = vrot.slane %v753, 5
    %v756 = vsel %vm588, %v751, %v755
    %v758 = vshrl.u32 %v578, 16
    %v760 = vrot.slane %v758, 4
    %v761 = vshll.u32 %v578, 16
    %v763 = vrot.slane %v761, 5
    %v764 = vor.u32 %v760, %v763
    %v765 = vrot.slane %v764, 4
    %v767 = vshll.u32 %v579, 16
    %v769 = vrot.slane %v767, 5
    %v770 = vsel %vm588, %v765, %v769
    %v772 = vshrl.u32 %v580, 16
    %v774 = vrot.slane %v772, 4
    %v775 = vshll.u32 %v580, 16
    %v777 = vrot.slane %v775, 5
    %v778 = vor.u32 %v774, %v777
    %v779 = vrot.slane %v778, 4
    %v781 = vshll.u32 %v581, 16
    %v783 = vrot.slane %v781, 5
    %v784 = vsel %vm588, %v779, %v783
    %v786 = vshrl.u32 %v582, 16
    %v788 = vrot.slane %v786, 4
    %v789 = vshll.u32 %v582, 16
    %v791 = vrot.slane %v789, 5
    %v792 = vor.u32 %v788, %v791
    %v793 = vrot.slane %v792, 4
    %v795 = vshll.u32 %v583, 16
    %v797 = vrot.slane %v795, 5
    %v798 = vsel %vm588, %v793, %v797
    %v800 = vshrl.u32 %v584, 16
    %v802 = vrot.slane %v800, 4
    %v803 = vshll.u32 %v584, 16
    %v805 = vrot.slane %v803, 5
    %v806 = vor.u32 %v802, %v805
    %v807 = vrot.slane %v806, 4
    %v809 = vshll.u32 %v585, 16
    %v811 = vrot.slane %v809, 5
    %v812 = vsel %vm588, %v807, %v811
    %v813 = vunpack.c.l.b16 %v602
    %v814 = vunpack.c.l.b16 %v616
    %v815 = vunpack.c.l.b16 %v630
    %v816 = vunpack.c.l.b16 %v644
    %v817 = vunpack.c.l.b16 %v658
    %v818 = vunpack.c.l.b16 %v672
    %v819 = vunpack.c.l.b16 %v686
    %v820 = vunpack.c.l.b16 %v700
    %v821 = vunpack.c.l.b16 %v714
    %v822 = vunpack.c.l.b16 %v728
    %v823 = vunpack.c.l.b16 %v742
    %v824 = vunpack.c.l.b16 %v756
    %v825 = vunpack.c.l.b16 %v770
    %v826 = vunpack.c.l.b16 %v784
    %v827 = vunpack.c.l.b16 %v798
    %v828 = vunpack.c.l.b16 %v812
    %v829 = vpack.c.b16 %v814, %v813
    %v830 = vpack.c.b16 %v816, %v815
    %v831 = vpack.c.b16 %v818, %v817
    %v832 = vpack.c.b16 %v820, %v819
    %v833 = vpack.c.b16 %v822, %v821
    %v834 = vpack.c.b16 %v824, %v823
    %v835 = vpack.c.b16 %v826, %v825
    %v836 = vpack.c.b16 %v828, %v827
    %837 = vrot.lane.b32.xlu0 %v829, 32
    %v838 = vpop.permute.xlu0 %837
    %839 = vrot.lane.b32.xlu0 %v830, 32
    %v840 = vpop.permute.xlu0 %839
    %841 = vrot.lane.b32.xlu0 %v831, 32
    %v842 = vpop.permute.xlu0 %841
    %843 = vrot.lane.b32.xlu0 %v832, 32
    %v844 = vpop.permute.xlu0 %843
    %845 = vrot.lane.b32.xlu0 %v833, 32
    %v846 = vpop.permute.xlu0 %845
    %847 = vrot.lane.b32.xlu0 %v834, 32
    %v848 = vpop.permute.xlu0 %847
    %849 = vrot.lane.b32.xlu0 %v835, 32
    %v850 = vpop.permute.xlu0 %849
    %851 = vrot.lane.b32.xlu0 %v836, 32
    %v852 = vpop.permute.xlu0 %851
    %vm861 = vcmask 523520
    %862 = vst.msk [vmem:[#allocation3] sm:$0xff] %vm861, %v838
    %863 = vst.msk [vmem:[#allocation3 + $0x18] sm:$0xff] %vm861, %v840
    %864 = vst.msk [vmem:[#allocation3 + $0x30] sm:$0xff] %vm861, %v842
    %865 = vst.msk [vmem:[#allocation3 + $0x48] sm:$0xff] %vm861, %v844
    %866 = vst.msk [vmem:[#allocation3 + $0x60] sm:$0xff] %vm861, %v846
    %867 = vst.msk [vmem:[#allocation3 + $0x78] sm:$0xff] %vm861, %v848
    %868 = vst.msk [vmem:[#allocation3 + $0x90] sm:$0xff] %vm861, %v850
    %869 = vst.msk [vmem:[#allocation3 + $0xa8] sm:$0xff] %vm861, %v852
    %v870 = vld [vmem:[#allocation2] sm:$0xe]
    %v871 = vld [vmem:[#allocation2 + $0x4] sm:$0x1]
    %v872 = vld [vmem:[#allocation2 + $0x8] sm:$0xe]
    %v873 = vld [vmem:[#allocation2 + $0xc] sm:$0x1]
    %v874 = vld [vmem:[#allocation2 + $0x10] sm:$0xe]
    %v875 = vld [vmem:[#allocation2 + $0x14] sm:$0x1]
    %v876 = vld [vmem:[#allocation2 + $0x18] sm:$0xe]
    %v877 = vld [vmem:[#allocation2 + $0x1c] sm:$0x1]
    %v878 = vld [vmem:[#allocation2 + $0x20] sm:$0xe]
    %v879 = vld [vmem:[#allocation2 + $0x24] sm:$0x1]
    %v880 = vld [vmem:[#allocation2 + $0x28] sm:$0xe]
    %v881 = vld [vmem:[#allocation2 + $0x2c] sm:$0x1]
    %v882 = vld [vmem:[#allocation2 + $0x30] sm:$0xe]
    %v883 = vld [vmem:[#allocation2 + $0x34] sm:$0x1]
    %v884 = vld [vmem:[#allocation2 + $0x38] sm:$0xe]
    %v885 = vld [vmem:[#allocation2 + $0x3c] sm:$0x1]
    %v886 = vld [vmem:[#allocation2 + $0x50] sm:$0xe]
    %v887 = vld [vmem:[#allocation2 + $0x54] sm:$0x1]
    %v888 = vld [vmem:[#allocation2 + $0x58] sm:$0xe]
    %v889 = vld [vmem:[#allocation2 + $0x5c] sm:$0x1]
    %v890 = vld [vmem:[#allocation2 + $0x60] sm:$0xe]
    %v891 = vld [vmem:[#allocation2 + $0x64] sm:$0x1]
    %v892 = vld [vmem:[#allocation2 + $0x68] sm:$0xe]
    %v893 = vld [vmem:[#allocation2 + $0x6c] sm:$0x1]
    %v894 = vld [vmem:[#allocation2 + $0x70] sm:$0xe]
    %v895 = vld [vmem:[#allocation2 + $0x74] sm:$0x1]
    %v896 = vld [vmem:[#allocation2 + $0x78] sm:$0xe]
    %v897 = vld [vmem:[#allocation2 + $0x7c] sm:$0x1]
    %v898 = vld [vmem:[#allocation2 + $0x80] sm:$0xe]
    %v899 = vld [vmem:[#allocation2 + $0x84] sm:$0x1]
    %v900 = vld [vmem:[#allocation2 + $0x88] sm:$0xe]
    %v901 = vld [vmem:[#allocation2 + $0x8c] sm:$0x1]
    %vm934 = vcmask 1042432
    %vm935 = vcmask 1046532
    %vm936 = vmor %vm934, %vm935
    %v937 = vrot.slane %v870, 5
    %v938 = vrot.slane %v937, 4
    %v939 = vrot.slane %v871, 5
    %v940 = vsel %vm936, %v938, %v939
    %v941 = vrot.slane %v872, 5
    %v942 = vrot.slane %v941, 4
    %v943 = vrot.slane %v873, 5
    %v944 = vsel %vm936, %v942, %v943
    %v945 = vrot.slane %v874, 5
    %v946 = vrot.slane %v945, 4
    %v947 = vrot.slane %v875, 5
    %v948 = vsel %vm936, %v946, %v947
    %v949 = vrot.slane %v876, 5
    %v950 = vrot.slane %v949, 4
    %v951 = vrot.slane %v877, 5
    %v952 = vsel %vm936, %v950, %v951
    %v953 = vrot.slane %v878, 5
    %v954 = vrot.slane %v953, 4
    %v955 = vrot.slane %v879, 5
    %v956 = vsel %vm936, %v954, %v955
    %v957 = vrot.slane %v880, 5
    %v958 = vrot.slane %v957, 4
    %v959 = vrot.slane %v881, 5
    %v960 = vsel %vm936, %v958, %v959
    %v961 = vrot.slane %v882, 5
    %v962 = vrot.slane %v961, 4
    %v963 = vrot.slane %v883, 5
    %v964 = vsel %vm936, %v962, %v963
    %v965 = vrot.slane %v884, 5
    %v966 = vrot.slane %v965, 4
    %v967 = vrot.slane %v885, 5
    %v968 = vsel %vm936, %v966, %v967
    %v969 = vrot.slane %v886, 5
    %v970 = vrot.slane %v969, 4
    %v971 = vrot.slane %v887, 5
    %v972 = vsel %vm936, %v970, %v971
    %v973 = vrot.slane %v888, 5
    %v974 = vrot.slane %v973, 4
    %v975 = vrot.slane %v889, 5
    %v976 = vsel %vm936, %v974, %v975
    %v977 = vrot.slane %v890, 5
    %v978 = vrot.slane %v977, 4
    %v979 = vrot.slane %v891, 5
    %v980 = vsel %vm936, %v978, %v979
    %v981 = vrot.slane %v892, 5
    %v982 = vrot.slane %v981, 4
    %v983 = vrot.slane %v893, 5
    %v984 = vsel %vm936, %v982, %v983
    %v985 = vrot.slane %v894, 5
    %v986 = vrot.slane %v985, 4
    %v987 = vrot.slane %v895, 5
    %v988 = vsel %vm936, %v986, %v987
    %v989 = vrot.slane %v896, 5
    %v990 = vrot.slane %v989, 4
    %v991 = vrot.slane %v897, 5
    %v992 = vsel %vm936, %v990, %v991
    %v993 = vrot.slane %v898, 5
    %v994 = vrot.slane %v993, 4
    %v995 = vrot.slane %v899, 5
    %v996 = vsel %vm936, %v994, %v995
    %v997 = vrot.slane %v900, 5
    %v998 = vrot.slane %v997, 4
    %v999 = vrot.slane %v901, 5
    %v1000 = vsel %vm936, %v998, %v999
    %v1001 = vunpack.c.l.b16 %v940
    %v1002 = vunpack.c.l.b16 %v944
    %v1003 = vunpack.c.l.b16 %v948
    %v1004 = vunpack.c.l.b16 %v952
    %v1005 = vunpack.c.l.b16 %v956
    %v1006 = vunpack.c.l.b16 %v960
    %v1007 = vunpack.c.l.b16 %v964
    %v1008 = vunpack.c.l.b16 %v968
    %v1009 = vunpack.c.l.b16 %v972
    %v1010 = vunpack.c.l.b16 %v976
    %v1011 = vunpack.c.l.b16 %v980
    %v1012 = vunpack.c.l.b16 %v984
    %v1013 = vunpack.c.l.b16 %v988
    %v1014 = vunpack.c.l.b16 %v992
    %v1015 = vunpack.c.l.b16 %v996
    %v1016 = vunpack.c.l.b16 %v1000
    %v1017 = vpack.c.b16 %v1002, %v1001
    %v1018 = vpack.c.b16 %v1004, %v1003
    %v1019 = vpack.c.b16 %v1006, %v1005
    %v1020 = vpack.c.b16 %v1008, %v1007
    %v1021 = vpack.c.b16 %v1010, %v1009
    %v1022 = vpack.c.b16 %v1012, %v1011
    %v1023 = vpack.c.b16 %v1014, %v1013
    %v1024 = vpack.c.b16 %v1016, %v1015
    %1025 = vrot.lane.b32.xlu0 %v1017, 64
    %v1026 = vpop.permute.xlu0 %1025
    %1027 = vrot.lane.b32.xlu0 %v1018, 64
    %v1028 = vpop.permute.xlu0 %1027
    %1029 = vrot.lane.b32.xlu0 %v1019, 64
    %v1030 = vpop.permute.xlu0 %1029
    %1031 = vrot.lane.b32.xlu0 %v1020, 64
    %v1032 = vpop.permute.xlu0 %1031
    %1033 = vrot.lane.b32.xlu0 %v1021, 64
    %v1034 = vpop.permute.xlu0 %1033
    %1035 = vrot.lane.b32.xlu0 %v1022, 64
    %v1036 = vpop.permute.xlu0 %1035
    %1037 = vrot.lane.b32.xlu0 %v1023, 64
    %v1038 = vpop.permute.xlu0 %1037
    %1039 = vrot.lane.b32.xlu0 %v1024, 64
    %v1040 = vpop.permute.xlu0 %1039
    %vm1049 = vcmask 785920
    %1050 = vst.msk [vmem:[#allocation3] sm:$0xff] %vm1049, %v1026
    %1051 = vst.msk [vmem:[#allocation3 + $0x18] sm:$0xff] %vm1049, %v1028
    %1052 = vst.msk [vmem:[#allocation3 + $0x30] sm:$0xff] %vm1049, %v1030
    %1053 = vst.msk [vmem:[#allocation3 + $0x48] sm:$0xff] %vm1049, %v1032
    %1054 = vst.msk [vmem:[#allocation3 + $0x60] sm:$0xff] %vm1049, %v1034
    %1055 = vst.msk [vmem:[#allocation3 + $0x78] sm:$0xff] %vm1049, %v1036
    %1056 = vst.msk [vmem:[#allocation3 + $0x90] sm:$0xff] %vm1049, %v1038
    %1057 = vst.msk [vmem:[#allocation3 + $0xa8] sm:$0xff] %vm1049, %v1040
    %v1058 = vld [vmem:[%s39] sm:$0xf]
    %v1059 = vld [vmem:[%s39 + $0x8] sm:$0xf]
    %v1060 = vld [vmem:[%s39 + $0x10] sm:$0xf]
    %v1061 = vld [vmem:[%s39 + $0x18] sm:$0xf]
    %v1062 = vld [vmem:[%s39 + $0x20] sm:$0xf]
    %v1063 = vld [vmem:[%s39 + $0x28] sm:$0xf]
    %v1064 = vld [vmem:[%s39 + $0x30] sm:$0xf]
    %v1065 = vld [vmem:[%s39 + $0x38] sm:$0xf]
    %v1066 = vld [vmem:[%s39 + $0x50] sm:$0xf]
    %v1067 = vld [vmem:[%s39 + $0x58] sm:$0xf]
    %v1068 = vld [vmem:[%s39 + $0x60] sm:$0xf]
    %v1069 = vld [vmem:[%s39 + $0x68] sm:$0xf]
    %v1070 = vld [vmem:[%s39 + $0x70] sm:$0xf]
    %v1071 = vld [vmem:[%s39 + $0x78] sm:$0xf]
    %v1072 = vld [vmem:[%s39 + $0x80] sm:$0xf]
    %v1073 = vld [vmem:[%s39 + $0x88] sm:$0xf]
    %v1090 = vunpack.c.l.b16 %v1058
    %v1091 = vunpack.c.l.b16 %v1059
    %v1092 = vunpack.c.l.b16 %v1060
    %v1093 = vunpack.c.l.b16 %v1061
    %v1094 = vunpack.c.l.b16 %v1062
    %v1095 = vunpack.c.l.b16 %v1063
    %v1096 = vunpack.c.l.b16 %v1064
    %v1097 = vunpack.c.l.b16 %v1065
    %v1098 = vunpack.c.l.b16 %v1066
    %v1099 = vunpack.c.l.b16 %v1067
    %v1100 = vunpack.c.l.b16 %v1068
    %v1101 = vunpack.c.l.b16 %v1069
    %v1102 = vunpack.c.l.b16 %v1070
    %v1103 = vunpack.c.l.b16 %v1071
    %v1104 = vunpack.c.l.b16 %v1072
    %v1105 = vunpack.c.l.b16 %v1073
    %v1106 = vpack.c.b16 %v1091, %v1090
    %v1107 = vpack.c.b16 %v1093, %v1092
    %v1108 = vpack.c.b16 %v1095, %v1094
    %v1109 = vpack.c.b16 %v1097, %v1096
    %v1110 = vpack.c.b16 %v1099, %v1098
    %v1111 = vpack.c.b16 %v1101, %v1100
    %v1112 = vpack.c.b16 %v1103, %v1102
    %v1113 = vpack.c.b16 %v1105, %v1104
    %1114 = vrot.lane.b32.xlu0 %v1106, 96
    %v1115 = vpop.permute.xlu0 %1114
    %1116 = vrot.lane.b32.xlu0 %v1107, 96
    %v1117 = vpop.permute.xlu0 %1116
    %1118 = vrot.lane.b32.xlu0 %v1108, 96
    %v1119 = vpop.permute.xlu0 %1118
    %1120 = vrot.lane.b32.xlu0 %v1109, 96
    %v1121 = vpop.permute.xlu0 %1120
    %1122 = vrot.lane.b32.xlu0 %v1110, 96
    %v1123 = vpop.permute.xlu0 %1122
    %1124 = vrot.lane.b32.xlu0 %v1111, 96
    %v1125 = vpop.permute.xlu0 %1124
    %1126 = vrot.lane.b32.xlu0 %v1112, 96
    %v1127 = vpop.permute.xlu0 %1126
    %1128 = vrot.lane.b32.xlu0 %v1113, 96
    %v1129 = vpop.permute.xlu0 %1128
    %vm1138 = vcmask 1048320
    %1139 = vst.msk [vmem:[#allocation3] sm:$0xff] %vm1138, %v1115
    %1140 = vst.msk [vmem:[#allocation3 + $0x18] sm:$0xff] %vm1138, %v1117
    %1141 = vst.msk [vmem:[#allocation3 + $0x30] sm:$0xff] %vm1138, %v1119
    %1142 = vst.msk [vmem:[#allocation3 + $0x48] sm:$0xff] %vm1138, %v1121
    %1143 = vst.msk [vmem:[#allocation3 + $0x60] sm:$0xff] %vm1138, %v1123
    %1144 = vst.msk [vmem:[#allocation3 + $0x78] sm:$0xff] %vm1138, %v1125
    %1145 = vst.msk [vmem:[#allocation3 + $0x90] sm:$0xff] %vm1138, %v1127
    %1146 = vst.msk [vmem:[#allocation3 + $0xa8] sm:$0xff] %vm1138, %v1129
    %v1147 = vld [vmem:[%s39] sm:$0xf]
    %v1148 = vld [vmem:[%s39 + $0x4] sm:$0x1]
    %v1149 = vld [vmem:[%s39 + $0x8] sm:$0xf]
    %v1150 = vld [vmem:[%s39 + $0xc] sm:$0x1]
    %v1151 = vld [vmem:[%s39 + $0x10] sm:$0xf]
    %v1152 = vld [vmem:[%s39 + $0x14] sm:$0x1]
    %v1153 = vld [vmem:[%s39 + $0x18] sm:$0xf]
    %v1154 = vld [vmem:[%s39 + $0x1c] sm:$0x1]
    %v1155 = vld [vmem:[%s39 + $0x20] sm:$0xf]
    %v1156 = vld [vmem:[%s39 + $0x24] sm:$0x1]
    %v1157 = vld [vmem:[%s39 + $0x28] sm:$0xf]
    %v1158 = vld [vmem:[%s39 + $0x2c] sm:$0x1]
    %v1159 = vld [vmem:[%s39 + $0x30] sm:$0xf]
    %v1160 = vld [vmem:[%s39 + $0x34] sm:$0x1]
    %v1161 = vld [vmem:[%s39 + $0x38] sm:$0xf]
    %v1162 = vld [vmem:[%s39 + $0x3c] sm:$0x1]
    %v1163 = vld [vmem:[%s39 + $0x50] sm:$0xf]
    %v1164 = vld [vmem:[%s39 + $0x54] sm:$0x1]
    %v1165 = vld [vmem:[%s39 + $0x58] sm:$0xf]
    %v1166 = vld [vmem:[%s39 + $0x5c] sm:$0x1]
    %v1167 = vld [vmem:[%s39 + $0x60] sm:$0xf]
    %v1168 = vld [vmem:[%s39 + $0x64] sm:$0x1]
    %v1169 = vld [vmem:[%s39 + $0x68] sm:$0xf]
    %v1170 = vld [vmem:[%s39 + $0x6c] sm:$0x1]
    %v1171 = vld [vmem:[%s39 + $0x70] sm:$0xf]
    %v1172 = vld [vmem:[%s39 + $0x74] sm:$0x1]
    %v1173 = vld [vmem:[%s39 + $0x78] sm:$0xf]
    %v1174 = vld [vmem:[%s39 + $0x7c] sm:$0x1]
    %v1175 = vld [vmem:[%s39 + $0x80] sm:$0xf]
    %v1176 = vld [vmem:[%s39 + $0x84] sm:$0x1]
    %v1177 = vld [vmem:[%s39 + $0x88] sm:$0xf]
    %v1178 = vld [vmem:[%s39 + $0x8c] sm:$0x1]
    %v1180 = vshrl.u32 %v1147, 16
    %v1182 = vrot.slane %v1180, 4
    %v1183 = vshll.u32 %v1147, 16
    %v1185 = vrot.slane %v1183, 5
    %v1186 = vor.u32 %v1182, %v1185
    %v1187 = vrot.slane %v1186, 4
    %v1189 = vshll.u32 %v1148, 16
    %v1191 = vrot.slane %v1189, 5
    %v1192 = vsel %vm588, %v1187, %v1191
    %v1194 = vshrl.u32 %v1149, 16
    %v1196 = vrot.slane %v1194, 4
    %v1197 = vshll.u32 %v1149, 16
    %v1199 = vrot.slane %v1197, 5
    %v1200 = vor.u32 %v1196, %v1199
    %v1201 = vrot.slane %v1200, 4
    %v1203 = vshll.u32 %v1150, 16
    %v1205 = vrot.slane %v1203, 5
    %v1206 = vsel %vm588, %v1201, %v1205
    %v1208 = vshrl.u32 %v1151, 16
    %v1210 = vrot.slane %v1208, 4
    %v1211 = vshll.u32 %v1151, 16
    %v1213 = vrot.slane %v1211, 5
    %v1214 = vor.u32 %v1210, %v1213
    %v1215 = vrot.slane %v1214, 4
    %v1217 = vshll.u32 %v1152, 16
    %v1219 = vrot.slane %v1217, 5
    %v1220 = vsel %vm588, %v1215, %v1219
    %v1222 = vshrl.u32 %v1153, 16
    %v1224 = vrot.slane %v1222, 4
    %v1225 = vshll.u32 %v1153, 16
    %v1227 = vrot.slane %v1225, 5
    %v1228 = vor.u32 %v1224, %v1227
    %v1229 = vrot.slane %v1228, 4
    %v1231 = vshll.u32 %v1154, 16
    %v1233 = vrot.slane %v1231, 5
    %v1234 = vsel %vm588, %v1229, %v1233
    %v1236 = vshrl.u32 %v1155, 16
    %v1238 = vrot.slane %v1236, 4
    %v1239 = vshll.u32 %v1155, 16
    %v1241 = vrot.slane %v1239, 5
    %v1242 = vor.u32 %v1238, %v1241
    %v1243 = vrot.slane %v1242, 4
    %v1245 = vshll.u32 %v1156, 16
    %v1247 = vrot.slane %v1245, 5
    %v1248 = vsel %vm588, %v1243, %v1247
    %v1250 = vshrl.u32 %v1157, 16
    %v1252 = vrot.slane %v1250, 4
    %v1253 = vshll.u32 %v1157, 16
    %v1255 = vrot.slane %v1253, 5
    %v1256 = vor.u32 %v1252, %v1255
    %v1257 = vrot.slane %v1256, 4
    %v1259 = vshll.u32 %v1158, 16
    %v1261 = vrot.slane %v1259, 5
    %v1262 = vsel %vm588, %v1257, %v1261
    %v1264 = vshrl.u32 %v1159, 16
    %v1266 = vrot.slane %v1264, 4
    %v1267 = vshll.u32 %v1159, 16
    %v1269 = vrot.slane %v1267, 5
    %v1270 = vor.u32 %v1266, %v1269
    %v1271 = vrot.slane %v1270, 4
    %v1273 = vshll.u32 %v1160, 16
    %v1275 = vrot.slane %v1273, 5
    %v1276 = vsel %vm588, %v1271, %v1275
    %v1278 = vshrl.u32 %v1161, 16
    %v1280 = vrot.slane %v1278, 4
    %v1281 = vshll.u32 %v1161, 16
    %v1283 = vrot.slane %v1281, 5
    %v1284 = vor.u32 %v1280, %v1283
    %v1285 = vrot.slane %v1284, 4
    %v1287 = vshll.u32 %v1162, 16
    %v1289 = vrot.slane %v1287, 5
    %v1290 = vsel %vm588, %v1285, %v1289
    %v1292 = vshrl.u32 %v1163, 16
    %v1294 = vrot.slane %v1292, 4
    %v1295 = vshll.u32 %v1163, 16
    %v1297 = vrot.slane %v1295, 5
    %v1298 = vor.u32 %v1294, %v1297
    %v1299 = vrot.slane %v1298, 4
    %v1301 = vshll.u32 %v1164, 16
    %v1303 = vrot.slane %v1301, 5
    %v1304 = vsel %vm588, %v1299, %v1303
    %v1306 = vshrl.u32 %v1165, 16
    %v1308 = vrot.slane %v1306, 4
    %v1309 = vshll.u32 %v1165, 16
    %v1311 = vrot.slane %v1309, 5
    %v1312 = vor.u32 %v1308, %v1311
    %v1313 = vrot.slane %v1312, 4
    %v1315 = vshll.u32 %v1166, 16
    %v1317 = vrot.slane %v1315, 5
    %v1318 = vsel %vm588, %v1313, %v1317
    %v1320 = vshrl.u32 %v1167, 16
    %v1322 = vrot.slane %v1320, 4
    %v1323 = vshll.u32 %v1167, 16
    %v1325 = vrot.slane %v1323, 5
    %v1326 = vor.u32 %v1322, %v1325
    %v1327 = vrot.slane %v1326, 4
    %v1329 = vshll.u32 %v1168, 16
    %v1331 = vrot.slane %v1329, 5
    %v1332 = vsel %vm588, %v1327, %v1331
    %v1334 = vshrl.u32 %v1169, 16
    %v1336 = vrot.slane %v1334, 4
    %v1337 = vshll.u32 %v1169, 16
    %v1339 = vrot.slane %v1337, 5
    %v1340 = vor.u32 %v1336, %v1339
    %v1341 = vrot.slane %v1340, 4
    %v1343 = vshll.u32 %v1170, 16
    %v1345 = vrot.slane %v1343, 5
    %v1346 = vsel %vm588, %v1341, %v1345
    %v1348 = vshrl.u32 %v1171, 16
    %v1350 = vrot.slane %v1348, 4
    %v1351 = vshll.u32 %v1171, 16
    %v1353 = vrot.slane %v1351, 5
    %v1354 = vor.u32 %v1350, %v1353
    %v1355 = vrot.slane %v1354, 4
    %v1357 = vshll.u32 %v1172, 16
    %v1359 = vrot.slane %v1357, 5
    %v1360 = vsel %vm588, %v1355, %v1359
    %v1362 = vshrl.u32 %v1173, 16
    %v1364 = vrot.slane %v1362, 4
    %v1365 = vshll.u32 %v1173, 16
    %v1367 = vrot.slane %v1365, 5
    %v1368 = vor.u32 %v1364, %v1367
    %v1369 = vrot.slane %v1368, 4
    %v1371 = vshll.u32 %v1174, 16
    %v1373 = vrot.slane %v1371, 5
    %v1374 = vsel %vm588, %v1369, %v1373
    %v1376 = vshrl.u32 %v1175, 16
    %v1378 = vrot.slane %v1376, 4
    %v1379 = vshll.u32 %v1175, 16
    %v1381 = vrot.slane %v1379, 5
    %v1382 = vor.u32 %v1378, %v1381
    %v1383 = vrot.slane %v1382, 4
    %v1385 = vshll.u32 %v1176, 16
    %v1387 = vrot.slane %v1385, 5
    %v1388 = vsel %vm588, %v1383, %v1387
    %v1390 = vshrl.u32 %v1177, 16
    %v1392 = vrot.slane %v1390, 4
    %v1393 = vshll.u32 %v1177, 16
    %v1395 = vrot.slane %v1393, 5
    %v1396 = vor.u32 %v1392, %v1395
    %v1397 = vrot.slane %v1396, 4
    %v1399 = vshll.u32 %v1178, 16
    %v1401 = vrot.slane %v1399, 5
    %v1402 = vsel %vm588, %v1397, %v1401
    %v1403 = vunpack.c.l.b16 %v1192
    %v1404 = vunpack.c.l.b16 %v1206
    %v1405 = vunpack.c.l.b16 %v1220
    %v1406 = vunpack.c.l.b16 %v1234
    %v1407 = vunpack.c.l.b16 %v1248
    %v1408 = vunpack.c.l.b16 %v1262
    %v1409 = vunpack.c.l.b16 %v1276
    %v1410 = vunpack.c.l.b16 %v1290
    %v1411 = vunpack.c.l.b16 %v1304
    %v1412 = vunpack.c.l.b16 %v1318
    %v1413 = vunpack.c.l.b16 %v1332
    %v1414 = vunpack.c.l.b16 %v1346
    %v1415 = vunpack.c.l.b16 %v1360
    %v1416 = vunpack.c.l.b16 %v1374
    %v1417 = vunpack.c.l.b16 %v1388
    %v1418 = vunpack.c.l.b16 %v1402
    %v1419 = vpack.c.b16 %v1404, %v1403
    %v1420 = vpack.c.b16 %v1406, %v1405
    %v1421 = vpack.c.b16 %v1408, %v1407
    %v1422 = vpack.c.b16 %v1410, %v1409
    %v1423 = vpack.c.b16 %v1412, %v1411
    %v1424 = vpack.c.b16 %v1414, %v1413
    %v1425 = vpack.c.b16 %v1416, %v1415
    %v1426 = vpack.c.b16 %v1418, %v1417
    %1435 = vst.msk [vmem:[#allocation3 + $0x8] sm:$0xff] %vm545, %v1419
    %1436 = vst.msk [vmem:[#allocation3 + $0x20] sm:$0xff] %vm545, %v1420
    %1437 = vst.msk [vmem:[#allocation3 + $0x38] sm:$0xff] %vm545, %v1421
    %1438 = vst.msk [vmem:[#allocation3 + $0x50] sm:$0xff] %vm545, %v1422
    %1439 = vst.msk [vmem:[#allocation3 + $0x68] sm:$0xff] %vm545, %v1423
    %1440 = vst.msk [vmem:[#allocation3 + $0x80] sm:$0xff] %vm545, %v1424
    %1441 = vst.msk [vmem:[#allocation3 + $0x98] sm:$0xff] %vm545, %v1425
    %1442 = vst.msk [vmem:[#allocation3 + $0xb0] sm:$0xff] %vm545, %v1426
    %v1443 = vld [vmem:[%s39] sm:$0xe]
    %v1444 = vld [vmem:[%s39 + $0x4] sm:$0x1]
    %v1445 = vld [vmem:[%s39 + $0x8] sm:$0xe]
    %v1446 = vld [vmem:[%s39 + $0xc] sm:$0x1]
    %v1447 = vld [vmem:[%s39 + $0x10] sm:$0xe]
    %v1448 = vld [vmem:[%s39 + $0x14] sm:$0x1]
    %v1449 = vld [vmem:[%s39 + $0x18] sm:$0xe]
    %v1450 = vld [vmem:[%s39 + $0x1c] sm:$0x1]
    %v1451 = vld [vmem:[%s39 + $0x20] sm:$0xe]
    %v1452 = vld [vmem:[%s39 + $0x24] sm:$0x1]
    %v1453 = vld [vmem:[%s39 + $0x28] sm:$0xe]
    %v1454 = vld [vmem:[%s39 + $0x2c] sm:$0x1]
    %v1455 = vld [vmem:[%s39 + $0x30] sm:$0xe]
    %v1456 = vld [vmem:[%s39 + $0x34] sm:$0x1]
    %v1457 = vld [vmem:[%s39 + $0x38] sm:$0xe]
    %v1458 = vld [vmem:[%s39 + $0x3c] sm:$0x1]
    %v1459 = vld [vmem:[%s39 + $0x50] sm:$0xe]
    %v1460 = vld [vmem:[%s39 + $0x54] sm:$0x1]
    %v1461 = vld [vmem:[%s39 + $0x58] sm:$0xe]
    %v1462 = vld [vmem:[%s39 + $0x5c] sm:$0x1]
    %v1463 = vld [vmem:[%s39 + $0x60] sm:$0xe]
    %v1464 = vld [vmem:[%s39 + $0x64] sm:$0x1]
    %v1465 = vld [vmem:[%s39 + $0x68] sm:$0xe]
    %v1466 = vld [vmem:[%s39 + $0x6c] sm:$0x1]
    %v1467 = vld [vmem:[%s39 + $0x70] sm:$0xe]
    %v1468 = vld [vmem:[%s39 + $0x74] sm:$0x1]
    %v1469 = vld [vmem:[%s39 + $0x78] sm:$0xe]
    %v1470 = vld [vmem:[%s39 + $0x7c] sm:$0x1]
    %v1471 = vld [vmem:[%s39 + $0x80] sm:$0xe]
    %v1472 = vld [vmem:[%s39 + $0x84] sm:$0x1]
    %v1473 = vld [vmem:[%s39 + $0x88] sm:$0xe]
    %v1474 = vld [vmem:[%s39 + $0x8c] sm:$0x1]
    %v1507 = vrot.slane %v1443, 5
    %v1508 = vrot.slane %v1507, 4
    %v1509 = vrot.slane %v1444, 5
    %v1510 = vsel %vm936, %v1508, %v1509
    %v1511 = vrot.slane %v1445, 5
    %v1512 = vrot.slane %v1511, 4
    %v1513 = vrot.slane %v1446, 5
    %v1514 = vsel %vm936, %v1512, %v1513
    %v1515 = vrot.slane %v1447, 5
    %v1516 = vrot.slane %v1515, 4
    %v1517 = vrot.slane %v1448, 5
    %v1518 = vsel %vm936, %v1516, %v1517
    %v1519 = vrot.slane %v1449, 5
    %v1520 = vrot.slane %v1519, 4
    %v1521 = vrot.slane %v1450, 5
    %v1522 = vsel %vm936, %v1520, %v1521
    %v1523 = vrot.slane %v1451, 5
    %v1524 = vrot.slane %v1523, 4
    %v1525 = vrot.slane %v1452, 5
    %v1526 = vsel %vm936, %v1524, %v1525
    %v1527 = vrot.slane %v1453, 5
    %v1528 = vrot.slane %v1527, 4
    %v1529 = vrot.slane %v1454, 5
    %v1530 = vsel %vm936, %v1528, %v1529
    %v1531 = vrot.slane %v1455, 5
    %v1532 = vrot.slane %v1531, 4
    %v1533 = vrot.slane %v1456, 5
    %v1534 = vsel %vm936, %v1532, %v1533
    %v1535 = vrot.slane %v1457, 5
    %v1536 = vrot.slane %v1535, 4
    %v1537 = vrot.slane %v1458, 5
    %v1538 = vsel %vm936, %v1536, %v1537
    %v1539 = vrot.slane %v1459, 5
    %v1540 = vrot.slane %v1539, 4
    %v1541 = vrot.slane %v1460, 5
    %v1542 = vsel %vm936, %v1540, %v1541
    %v1543 = vrot.slane %v1461, 5
    %v1544 = vrot.slane %v1543, 4
    %v1545 = vrot.slane %v1462, 5
    %v1546 = vsel %vm936, %v1544, %v1545
    %v1547 = vrot.slane %v1463, 5
    %v1548 = vrot.slane %v1547, 4
    %v1549 = vrot.slane %v1464, 5
    %v1550 = vsel %vm936, %v1548, %v1549
    %v1551 = vrot.slane %v1465, 5
    %v1552 = vrot.slane %v1551, 4
    %v1553 = vrot.slane %v1466, 5
    %v1554 = vsel %vm936, %v1552, %v1553
    %v1555 = vrot.slane %v1467, 5
    %v1556 = vrot.slane %v1555, 4
    %v1557 = vrot.slane %v1468, 5
    %v1558 = vsel %vm936, %v1556, %v1557
    %v1559 = vrot.slane %v1469, 5
    %v1560 = vrot.slane %v1559, 4
    %v1561 = vrot.slane %v1470, 5
    %v1562 = vsel %vm936, %v1560, %v1561
    %v1563 = vrot.slane %v1471, 5
    %v1564 = vrot.slane %v1563, 4
    %v1565 = vrot.slane %v1472, 5
    %v1566 = vsel %vm936, %v1564, %v1565
    %v1567 = vrot.slane %v1473, 5
    %v1568 = vrot.slane %v1567, 4
    %v1569 = vrot.slane %v1474, 5
    %v1570 = vsel %vm936, %v1568, %v1569
    %v1571 = vunpack.c.l.b16 %v1510
    %v1572 = vunpack.c.l.b16 %v1514
    %v1573 = vunpack.c.l.b16 %v1518
    %v1574 = vunpack.c.l.b16 %v1522
    %v1575 = vunpack.c.l.b16 %v1526
    %v1576 = vunpack.c.l.b16 %v1530
    %v1577 = vunpack.c.l.b16 %v1534
    %v1578 = vunpack.c.l.b16 %v1538
    %v1579 = vunpack.c.l.b16 %v1542
    %v1580 = vunpack.c.l.b16 %v1546
    %v1581 = vunpack.c.l.b16 %v1550
    %v1582 = vunpack.c.l.b16 %v1554
    %v1583 = vunpack.c.l.b16 %v1558
    %v1584 = vunpack.c.l.b16 %v1562
    %v1585 = vunpack.c.l.b16 %v1566
    %v1586 = vunpack.c.l.b16 %v1570
    %v1587 = vpack.c.b16 %v1572, %v1571
    %v1588 = vpack.c.b16 %v1574, %v1573
    %v1589 = vpack.c.b16 %v1576, %v1575
    %v1590 = vpack.c.b16 %v1578, %v1577
    %v1591 = vpack.c.b16 %v1580, %v1579
    %v1592 = vpack.c.b16 %v1582, %v1581
    %v1593 = vpack.c.b16 %v1584, %v1583
    %v1594 = vpack.c.b16 %v1586, %v1585
    %1595 = vrot.lane.b32.xlu0 %v1587, 32
    %v1596 = vpop.permute.xlu0 %1595
    %1597 = vrot.lane.b32.xlu0 %v1588, 32
    %v1598 = vpop.permute.xlu0 %1597
    %1599 = vrot.lane.b32.xlu0 %v1589, 32
    %v1600 = vpop.permute.xlu0 %1599
    %1601 = vrot.lane.b32.xlu0 %v1590, 32
    %v1602 = vpop.permute.xlu0 %1601
    %1603 = vrot.lane.b32.xlu0 %v1591, 32
    %v1604 = vpop.permute.xlu0 %1603
    %1605 = vrot.lane.b32.xlu0 %v1592, 32
    %v1606 = vpop.permute.xlu0 %1605
    %1607 = vrot.lane.b32.xlu0 %v1593, 32
    %v1608 = vpop.permute.xlu0 %1607
    %1609 = vrot.lane.b32.xlu0 %v1594, 32
    %v1610 = vpop.permute.xlu0 %1609
    %1619 = vst.msk [vmem:[#allocation3 + $0x8] sm:$0xff] %vm861, %v1596
    %1620 = vst.msk [vmem:[#allocation3 + $0x20] sm:$0xff] %vm861, %v1598
    %1621 = vst.msk [vmem:[#allocation3 + $0x38] sm:$0xff] %vm861, %v1600
    %1622 = vst.msk [vmem:[#allocation3 + $0x50] sm:$0xff] %vm861, %v1602
    %1623 = vst.msk [vmem:[#allocation3 + $0x68] sm:$0xff] %vm861, %v1604
    %1624 = vst.msk [vmem:[#allocation3 + $0x80] sm:$0xff] %vm861, %v1606
    %1625 = vst.msk [vmem:[#allocation3 + $0x98] sm:$0xff] %vm861, %v1608
    %1626 = vst.msk [vmem:[#allocation3 + $0xb0] sm:$0xff] %vm861, %v1610
    %s1627 = scalar_lea.vmem [#allocation2], 16
    %v1628 = vld [vmem:[%s1627] sm:$0xf]
    %v1629 = vld [vmem:[%s1627 + $0x8] sm:$0xf]
    %v1630 = vld [vmem:[%s1627 + $0x10] sm:$0xf]
    %v1631 = vld [vmem:[%s1627 + $0x18] sm:$0xf]
    %v1632 = vld [vmem:[%s1627 + $0x20] sm:$0xf]
    %v1633 = vld [vmem:[%s1627 + $0x28] sm:$0xf]
    %v1634 = vld [vmem:[%s1627 + $0x30] sm:$0xf]
    %v1635 = vld [vmem:[%s1627 + $0x38] sm:$0xf]
    %v1636 = vld [vmem:[%s1627 + $0x50] sm:$0xf]
    %v1637 = vld [vmem:[%s1627 + $0x58] sm:$0xf]
    %v1638 = vld [vmem:[%s1627 + $0x60] sm:$0xf]
    %v1639 = vld [vmem:[%s1627 + $0x68] sm:$0xf]
    %v1640 = vld [vmem:[%s1627 + $0x70] sm:$0xf]
    %v1641 = vld [vmem:[%s1627 + $0x78] sm:$0xf]
    %v1642 = vld [vmem:[%s1627 + $0x80] sm:$0xf]
    %v1643 = vld [vmem:[%s1627 + $0x88] sm:$0xf]
    %v1660 = vunpack.c.l.b16 %v1628
    %v1661 = vunpack.c.l.b16 %v1629
    %v1662 = vunpack.c.l.b16 %v1630
    %v1663 = vunpack.c.l.b16 %v1631
    %v1664 = vunpack.c.l.b16 %v1632
    %v1665 = vunpack.c.l.b16 %v1633
    %v1666 = vunpack.c.l.b16 %v1634
    %v1667 = vunpack.c.l.b16 %v1635
    %v1668 = vunpack.c.l.b16 %v1636
    %v1669 = vunpack.c.l.b16 %v1637
    %v1670 = vunpack.c.l.b16 %v1638
    %v1671 = vunpack.c.l.b16 %v1639
    %v1672 = vunpack.c.l.b16 %v1640
    %v1673 = vunpack.c.l.b16 %v1641
    %v1674 = vunpack.c.l.b16 %v1642
    %v1675 = vunpack.c.l.b16 %v1643
    %v1676 = vpack.c.b16 %v1661, %v1660
    %v1677 = vpack.c.b16 %v1663, %v1662
    %v1678 = vpack.c.b16 %v1665, %v1664
    %v1679 = vpack.c.b16 %v1667, %v1666
    %v1680 = vpack.c.b16 %v1669, %v1668
    %v1681 = vpack.c.b16 %v1671, %v1670
    %v1682 = vpack.c.b16 %v1673, %v1672
    %v1683 = vpack.c.b16 %v1675, %v1674
    %1684 = vrot.lane.b32.xlu0 %v1676, 64
    %v1685 = vpop.permute.xlu0 %1684
    %1686 = vrot.lane.b32.xlu0 %v1677, 64
    %v1687 = vpop.permute.xlu0 %1686
    %1688 = vrot.lane.b32.xlu0 %v1678, 64
    %v1689 = vpop.permute.xlu0 %1688
    %1690 = vrot.lane.b32.xlu0 %v1679, 64
    %v1691 = vpop.permute.xlu0 %1690
    %1692 = vrot.lane.b32.xlu0 %v1680, 64
    %v1693 = vpop.permute.xlu0 %1692
    %1694 = vrot.lane.b32.xlu0 %v1681, 64
    %v1695 = vpop.permute.xlu0 %1694
    %1696 = vrot.lane.b32.xlu0 %v1682, 64
    %v1697 = vpop.permute.xlu0 %1696
    %1698 = vrot.lane.b32.xlu0 %v1683, 64
    %v1699 = vpop.permute.xlu0 %1698
    %1708 = vst.msk [vmem:[#allocation3 + $0x8] sm:$0xff] %vm1049, %v1685
    %1709 = vst.msk [vmem:[#allocation3 + $0x20] sm:$0xff] %vm1049, %v1687
    %1710 = vst.msk [vmem:[#allocation3 + $0x38] sm:$0xff] %vm1049, %v1689
    %1711 = vst.msk [vmem:[#allocation3 + $0x50] sm:$0xff] %vm1049, %v1691
    %1712 = vst.msk [vmem:[#allocation3 + $0x68] sm:$0xff] %vm1049, %v1693
    %1713 = vst.msk [vmem:[#allocation3 + $0x80] sm:$0xff] %vm1049, %v1695
    %1714 = vst.msk [vmem:[#allocation3 + $0x98] sm:$0xff] %vm1049, %v1697
    %1715 = vst.msk [vmem:[#allocation3 + $0xb0] sm:$0xff] %vm1049, %v1699
    %v1716 = vld [vmem:[%s1627] sm:$0xf]
    %v1717 = vld [vmem:[%s1627 + $0x4] sm:$0x1]
    %v1718 = vld [vmem:[%s1627 + $0x8] sm:$0xf]
    %v1719 = vld [vmem:[%s1627 + $0xc] sm:$0x1]
    %v1720 = vld [vmem:[%s1627 + $0x10] sm:$0xf]
    %v1721 = vld [vmem:[%s1627 + $0x14] sm:$0x1]
    %v1722 = vld [vmem:[%s1627 + $0x18] sm:$0xf]
    %v1723 = vld [vmem:[%s1627 + $0x1c] sm:$0x1]
    %v1724 = vld [vmem:[%s1627 + $0x20] sm:$0xf]
    %v1725 = vld [vmem:[%s1627 + $0x24] sm:$0x1]
    %v1726 = vld [vmem:[%s1627 + $0x28] sm:$0xf]
    %v1727 = vld [vmem:[%s1627 + $0x2c] sm:$0x1]
    %v1728 = vld [vmem:[%s1627 + $0x30] sm:$0xf]
    %v1729 = vld [vmem:[%s1627 + $0x34] sm:$0x1]
    %v1730 = vld [vmem:[%s1627 + $0x38] sm:$0xf]
    %v1731 = vld [vmem:[%s1627 + $0x3c] sm:$0x1]
    %v1732 = vld [vmem:[%s1627 + $0x50] sm:$0xf]
    %v1733 = vld [vmem:[%s1627 + $0x54] sm:$0x1]
    %v1734 = vld [vmem:[%s1627 + $0x58] sm:$0xf]
    %v1735 = vld [vmem:[%s1627 + $0x5c] sm:$0x1]
    %v1736 = vld [vmem:[%s1627 + $0x60] sm:$0xf]
    %v1737 = vld [vmem:[%s1627 + $0x64] sm:$0x1]
    %v1738 = vld [vmem:[%s1627 + $0x68] sm:$0xf]
    %v1739 = vld [vmem:[%s1627 + $0x6c] sm:$0x1]
    %v1740 = vld [vmem:[%s1627 + $0x70] sm:$0xf]
    %v1741 = vld [vmem:[%s1627 + $0x74] sm:$0x1]
    %v1742 = vld [vmem:[%s1627 + $0x78] sm:$0xf]
    %v1743 = vld [vmem:[%s1627 + $0x7c] sm:$0x1]
    %v1744 = vld [vmem:[%s1627 + $0x80] sm:$0xf]
    %v1745 = vld [vmem:[%s1627 + $0x84] sm:$0x1]
    %v1746 = vld [vmem:[%s1627 + $0x88] sm:$0xf]
    %v1747 = vld [vmem:[%s1627 + $0x8c] sm:$0x1]
    %v1749 = vshrl.u32 %v1716, 16
    %v1751 = vrot.slane %v1749, 4
    %v1752 = vshll.u32 %v1716, 16
    %v1754 = vrot.slane %v1752, 5
    %v1755 = vor.u32 %v1751, %v1754
    %v1756 = vrot.slane %v1755, 4
    %v1758 = vshll.u32 %v1717, 16
    %v1760 = vrot.slane %v1758, 5
    %v1761 = vsel %vm588, %v1756, %v1760
    %v1763 = vshrl.u32 %v1718, 16
    %v1765 = vrot.slane %v1763, 4
    %v1766 = vshll.u32 %v1718, 16
    %v1768 = vrot.slane %v1766, 5
    %v1769 = vor.u32 %v1765, %v1768
    %v1770 = vrot.slane %v1769, 4
    %v1772 = vshll.u32 %v1719, 16
    %v1774 = vrot.slane %v1772, 5
    %v1775 = vsel %vm588, %v1770, %v1774
    %v1777 = vshrl.u32 %v1720, 16
    %v1779 = vrot.slane %v1777, 4
    %v1780 = vshll.u32 %v1720, 16
    %v1782 = vrot.slane %v1780, 5
    %v1783 = vor.u32 %v1779, %v1782
    %v1784 = vrot.slane %v1783, 4
    %v1786 = vshll.u32 %v1721, 16
    %v1788 = vrot.slane %v1786, 5
    %v1789 = vsel %vm588, %v1784, %v1788
    %v1791 = vshrl.u32 %v1722, 16
    %v1793 = vrot.slane %v1791, 4
    %v1794 = vshll.u32 %v1722, 16
    %v1796 = vrot.slane %v1794, 5
    %v1797 = vor.u32 %v1793, %v1796
    %v1798 = vrot.slane %v1797, 4
    %v1800 = vshll.u32 %v1723, 16
    %v1802 = vrot.slane %v1800, 5
    %v1803 = vsel %vm588, %v1798, %v1802
    %v1805 = vshrl.u32 %v1724, 16
    %v1807 = vrot.slane %v1805, 4
    %v1808 = vshll.u32 %v1724, 16
    %v1810 = vrot.slane %v1808, 5
    %v1811 = vor.u32 %v1807, %v1810
    %v1812 = vrot.slane %v1811, 4
    %v1814 = vshll.u32 %v1725, 16
    %v1816 = vrot.slane %v1814, 5
    %v1817 = vsel %vm588, %v1812, %v1816
    %v1819 = vshrl.u32 %v1726, 16
    %v1821 = vrot.slane %v1819, 4
    %v1822 = vshll.u32 %v1726, 16
    %v1824 = vrot.slane %v1822, 5
    %v1825 = vor.u32 %v1821, %v1824
    %v1826 = vrot.slane %v1825, 4
    %v1828 = vshll.u32 %v1727, 16
    %v1830 = vrot.slane %v1828, 5
    %v1831 = vsel %vm588, %v1826, %v1830
    %v1833 = vshrl.u32 %v1728, 16
    %v1835 = vrot.slane %v1833, 4
    %v1836 = vshll.u32 %v1728, 16
    %v1838 = vrot.slane %v1836, 5
    %v1839 = vor.u32 %v1835, %v1838
    %v1840 = vrot.slane %v1839, 4
    %v1842 = vshll.u32 %v1729, 16
    %v1844 = vrot.slane %v1842, 5
    %v1845 = vsel %vm588, %v1840, %v1844
    %v1847 = vshrl.u32 %v1730, 16
    %v1849 = vrot.slane %v1847, 4
    %v1850 = vshll.u32 %v1730, 16
    %v1852 = vrot.slane %v1850, 5
    %v1853 = vor.u32 %v1849, %v1852
    %v1854 = vrot.slane %v1853, 4
    %v1856 = vshll.u32 %v1731, 16
    %v1858 = vrot.slane %v1856, 5
    %v1859 = vsel %vm588, %v1854, %v1858
    %v1861 = vshrl.u32 %v1732, 16
    %v1863 = vrot.slane %v1861, 4
    %v1864 = vshll.u32 %v1732, 16
    %v1866 = vrot.slane %v1864, 5
    %v1867 = vor.u32 %v1863, %v1866
    %v1868 = vrot.slane %v1867, 4
    %v1870 = vshll.u32 %v1733, 16
    %v1872 = vrot.slane %v1870, 5
    %v1873 = vsel %vm588, %v1868, %v1872
    %v1875 = vshrl.u32 %v1734, 16
    %v1877 = vrot.slane %v1875, 4
    %v1878 = vshll.u32 %v1734, 16
    %v1880 = vrot.slane %v1878, 5
    %v1881 = vor.u32 %v1877, %v1880
    %v1882 = vrot.slane %v1881, 4
    %v1884 = vshll.u32 %v1735, 16
    %v1886 = vrot.slane %v1884, 5
    %v1887 = vsel %vm588, %v1882, %v1886
    %v1889 = vshrl.u32 %v1736, 16
    %v1891 = vrot.slane %v1889, 4
    %v1892 = vshll.u32 %v1736, 16
    %v1894 = vrot.slane %v1892, 5
    %v1895 = vor.u32 %v1891, %v1894
    %v1896 = vrot.slane %v1895, 4
    %v1898 = vshll.u32 %v1737, 16
    %v1900 = vrot.slane %v1898, 5
    %v1901 = vsel %vm588, %v1896, %v1900
    %v1903 = vshrl.u32 %v1738, 16
    %v1905 = vrot.slane %v1903, 4
    %v1906 = vshll.u32 %v1738, 16
    %v1908 = vrot.slane %v1906, 5
    %v1909 = vor.u32 %v1905, %v1908
    %v1910 = vrot.slane %v1909, 4
    %v1912 = vshll.u32 %v1739, 16
    %v1914 = vrot.slane %v1912, 5
    %v1915 = vsel %vm588, %v1910, %v1914
    %v1917 = vshrl.u32 %v1740, 16
    %v1919 = vrot.slane %v1917, 4
    %v1920 = vshll.u32 %v1740, 16
    %v1922 = vrot.slane %v1920, 5
    %v1923 = vor.u32 %v1919, %v1922
    %v1924 = vrot.slane %v1923, 4
    %v1926 = vshll.u32 %v1741, 16
    %v1928 = vrot.slane %v1926, 5
    %v1929 = vsel %vm588, %v1924, %v1928
    %v1931 = vshrl.u32 %v1742, 16
    %v1933 = vrot.slane %v1931, 4
    %v1934 = vshll.u32 %v1742, 16
    %v1936 = vrot.slane %v1934, 5
    %v1937 = vor.u32 %v1933, %v1936
    %v1938 = vrot.slane %v1937, 4
    %v1940 = vshll.u32 %v1743, 16
    %v1942 = vrot.slane %v1940, 5
    %v1943 = vsel %vm588, %v1938, %v1942
    %v1945 = vshrl.u32 %v1744, 16
    %v1947 = vrot.slane %v1945, 4
    %v1948 = vshll.u32 %v1744, 16
    %v1950 = vrot.slane %v1948, 5
    %v1951 = vor.u32 %v1947, %v1950
    %v1952 = vrot.slane %v1951, 4
    %v1954 = vshll.u32 %v1745, 16
    %v1956 = vrot.slane %v1954, 5
    %v1957 = vsel %vm588, %v1952, %v1956
    %v1959 = vshrl.u32 %v1746, 16
    %v1961 = vrot.slane %v1959, 4
    %v1962 = vshll.u32 %v1746, 16
    %v1964 = vrot.slane %v1962, 5
    %v1965 = vor.u32 %v1961, %v1964
    %v1966 = vrot.slane %v1965, 4
    %v1968 = vshll.u32 %v1747, 16
    %v1970 = vrot.slane %v1968, 5
    %v1971 = vsel %vm588, %v1966, %v1970
    %v1972 = vunpack.c.l.b16 %v1761
    %v1973 = vunpack.c.l.b16 %v1775
    %v1974 = vunpack.c.l.b16 %v1789
    %v1975 = vunpack.c.l.b16 %v1803
    %v1976 = vunpack.c.l.b16 %v1817
    %v1977 = vunpack.c.l.b16 %v1831
    %v1978 = vunpack.c.l.b16 %v1845
    %v1979 = vunpack.c.l.b16 %v1859
    %v1980 = vunpack.c.l.b16 %v1873
    %v1981 = vunpack.c.l.b16 %v1887
    %v1982 = vunpack.c.l.b16 %v1901
    %v1983 = vunpack.c.l.b16 %v1915
    %v1984 = vunpack.c.l.b16 %v1929
    %v1985 = vunpack.c.l.b16 %v1943
    %v1986 = vunpack.c.l.b16 %v1957
    %v1987 = vunpack.c.l.b16 %v1971
    %v1988 = vpack.c.b16 %v1973, %v1972
    %v1989 = vpack.c.b16 %v1975, %v1974
    %v1990 = vpack.c.b16 %v1977, %v1976
    %v1991 = vpack.c.b16 %v1979, %v1978
    %v1992 = vpack.c.b16 %v1981, %v1980
    %v1993 = vpack.c.b16 %v1983, %v1982
    %v1994 = vpack.c.b16 %v1985, %v1984
    %v1995 = vpack.c.b16 %v1987, %v1986
    %1996 = vrot.lane.b32.xlu0 %v1988, 96
    %v1997 = vpop.permute.xlu0 %1996
    %1998 = vrot.lane.b32.xlu0 %v1989, 96
    %v1999 = vpop.permute.xlu0 %1998
    %2000 = vrot.lane.b32.xlu0 %v1990, 96
    %v2001 = vpop.permute.xlu0 %2000
    %2002 = vrot.lane.b32.xlu0 %v1991, 96
    %v2003 = vpop.permute.xlu0 %2002
    %2004 = vrot.lane.b32.xlu0 %v1992, 96
    %v2005 = vpop.permute.xlu0 %2004
    %2006 = vrot.lane.b32.xlu0 %v1993, 96
    %v2007 = vpop.permute.xlu0 %2006
    %2008 = vrot.lane.b32.xlu0 %v1994, 96
    %v2009 = vpop.permute.xlu0 %2008
    %2010 = vrot.lane.b32.xlu0 %v1995, 96
    %v2011 = vpop.permute.xlu0 %2010
    %2020 = vst.msk [vmem:[#allocation3 + $0x8] sm:$0xff] %vm1138, %v1997
    %2021 = vst.msk [vmem:[#allocation3 + $0x20] sm:$0xff] %vm1138, %v1999
    %2022 = vst.msk [vmem:[#allocation3 + $0x38] sm:$0xff] %vm1138, %v2001
    %2023 = vst.msk [vmem:[#allocation3 + $0x50] sm:$0xff] %vm1138, %v2003
    %2024 = vst.msk [vmem:[#allocation3 + $0x68] sm:$0xff] %vm1138, %v2005
    %2025 = vst.msk [vmem:[#allocation3 + $0x80] sm:$0xff] %vm1138, %v2007
    %2026 = vst.msk [vmem:[#allocation3 + $0x98] sm:$0xff] %vm1138, %v2009
    %2027 = vst.msk [vmem:[#allocation3 + $0xb0] sm:$0xff] %vm1138, %v2011
    %v2028 = vld [vmem:[%s1627] sm:$0xe]
    %v2029 = vld [vmem:[%s1627 + $0x4] sm:$0x1]
    %v2030 = vld [vmem:[%s1627 + $0x8] sm:$0xe]
    %v2031 = vld [vmem:[%s1627 + $0xc] sm:$0x1]
    %v2032 = vld [vmem:[%s1627 + $0x10] sm:$0xe]
    %v2033 = vld [vmem:[%s1627 + $0x14] sm:$0x1]
    %v2034 = vld [vmem:[%s1627 + $0x18] sm:$0xe]
    %v2035 = vld [vmem:[%s1627 + $0x1c] sm:$0x1]
    %v2036 = vld [vmem:[%s1627 + $0x20] sm:$0xe]
    %v2037 = vld [vmem:[%s1627 + $0x24] sm:$0x1]
    %v2038 = vld [vmem:[%s1627 + $0x28] sm:$0xe]
    %v2039 = vld [vmem:[%s1627 + $0x2c] sm:$0x1]
    %v2040 = vld [vmem:[%s1627 + $0x30] sm:$0xe]
    %v2041 = vld [vmem:[%s1627 + $0x34] sm:$0x1]
    %v2042 = vld [vmem:[%s1627 + $0x38] sm:$0xe]
    %v2043 = vld [vmem:[%s1627 + $0x3c] sm:$0x1]
    %v2044 = vld [vmem:[%s1627 + $0x50] sm:$0xe]
    %v2045 = vld [vmem:[%s1627 + $0x54] sm:$0x1]
    %v2046 = vld [vmem:[%s1627 + $0x58] sm:$0xe]
    %v2047 = vld [vmem:[%s1627 + $0x5c] sm:$0x1]
    %v2048 = vld [vmem:[%s1627 + $0x60] sm:$0xe]
    %v2049 = vld [vmem:[%s1627 + $0x64] sm:$0x1]
    %v2050 = vld [vmem:[%s1627 + $0x68] sm:$0xe]
    %v2051 = vld [vmem:[%s1627 + $0x6c] sm:$0x1]
    %v2052 = vld [vmem:[%s1627 + $0x70] sm:$0xe]
    %v2053 = vld [vmem:[%s1627 + $0x74] sm:$0x1]
    %v2054 = vld [vmem:[%s1627 + $0x78] sm:$0xe]
    %v2055 = vld [vmem:[%s1627 + $0x7c] sm:$0x1]
    %v2056 = vld [vmem:[%s1627 + $0x80] sm:$0xe]
    %v2057 = vld [vmem:[%s1627 + $0x84] sm:$0x1]
    %v2058 = vld [vmem:[%s1627 + $0x88] sm:$0xe]
    %v2059 = vld [vmem:[%s1627 + $0x8c] sm:$0x1]
    %v2092 = vrot.slane %v2028, 5
    %v2093 = vrot.slane %v2092, 4
    %v2094 = vrot.slane %v2029, 5
    %v2095 = vsel %vm936, %v2093, %v2094
    %v2096 = vrot.slane %v2030, 5
    %v2097 = vrot.slane %v2096, 4
    %v2098 = vrot.slane %v2031, 5
    %v2099 = vsel %vm936, %v2097, %v2098
    %v2100 = vrot.slane %v2032, 5
    %v2101 = vrot.slane %v2100, 4
    %v2102 = vrot.slane %v2033, 5
    %v2103 = vsel %vm936, %v2101, %v2102
    %v2104 = vrot.slane %v2034, 5
    %v2105 = vrot.slane %v2104, 4
    %v2106 = vrot.slane %v2035, 5
    %v2107 = vsel %vm936, %v2105, %v2106
    %v2108 = vrot.slane %v2036, 5
    %v2109 = vrot.slane %v2108, 4
    %v2110 = vrot.slane %v2037, 5
    %v2111 = vsel %vm936, %v2109, %v2110
    %v2112 = vrot.slane %v2038, 5
    %v2113 = vrot.slane %v2112, 4
    %v2114 = vrot.slane %v2039, 5
    %v2115 = vsel %vm936, %v2113, %v2114
    %v2116 = vrot.slane %v2040, 5
    %v2117 = vrot.slane %v2116, 4
    %v2118 = vrot.slane %v2041, 5
    %v2119 = vsel %vm936, %v2117, %v2118
    %v2120 = vrot.slane %v2042, 5
    %v2121 = vrot.slane %v2120, 4
    %v2122 = vrot.slane %v2043, 5
    %v2123 = vsel %vm936, %v2121, %v2122
    %v2124 = vrot.slane %v2044, 5
    %v2125 = vrot.slane %v2124, 4
    %v2126 = vrot.slane %v2045, 5
    %v2127 = vsel %vm936, %v2125, %v2126
    %v2128 = vrot.slane %v2046, 5
    %v2129 = vrot.slane %v2128, 4
    %v2130 = vrot.slane %v2047, 5
    %v2131 = vsel %vm936, %v2129, %v2130
    %v2132 = vrot.slane %v2048, 5
    %v2133 = vrot.slane %v2132, 4
    %v2134 = vrot.slane %v2049, 5
    %v2135 = vsel %vm936, %v2133, %v2134
    %v2136 = vrot.slane %v2050, 5
    %v2137 = vrot.slane %v2136, 4
    %v2138 = vrot.slane %v2051, 5
    %v2139 = vsel %vm936, %v2137, %v2138
    %v2140 = vrot.slane %v2052, 5
    %v2141 = vrot.slane %v2140, 4
    %v2142 = vrot.slane %v2053, 5
    %v2143 = vsel %vm936, %v2141, %v2142
    %v2144 = vrot.slane %v2054, 5
    %v2145 = vrot.slane %v2144, 4
    %v2146 = vrot.slane %v2055, 5
    %v2147 = vsel %vm936, %v2145, %v2146
    %v2148 = vrot.slane %v2056, 5
    %v2149 = vrot.slane %v2148, 4
    %v2150 = vrot.slane %v2057, 5
    %v2151 = vsel %vm936, %v2149, %v2150
    %v2152 = vrot.slane %v2058, 5
    %v2153 = vrot.slane %v2152, 4
    %v2154 = vrot.slane %v2059, 5
    %v2155 = vsel %vm936, %v2153, %v2154
    %v2156 = vunpack.c.l.b16 %v2095
    %v2157 = vunpack.c.l.b16 %v2099
    %v2158 = vunpack.c.l.b16 %v2103
    %v2159 = vunpack.c.l.b16 %v2107
    %v2160 = vunpack.c.l.b16 %v2111
    %v2161 = vunpack.c.l.b16 %v2115
    %v2162 = vunpack.c.l.b16 %v2119
    %v2163 = vunpack.c.l.b16 %v2123
    %v2164 = vunpack.c.l.b16 %v2127
    %v2165 = vunpack.c.l.b16 %v2131
    %v2166 = vunpack.c.l.b16 %v2135
    %v2167 = vunpack.c.l.b16 %v2139
    %v2168 = vunpack.c.l.b16 %v2143
    %v2169 = vunpack.c.l.b16 %v2147
    %v2170 = vunpack.c.l.b16 %v2151
    %v2171 = vunpack.c.l.b16 %v2155
    %v2172 = vpack.c.b16 %v2157, %v2156
    %v2173 = vpack.c.b16 %v2159, %v2158
    %v2174 = vpack.c.b16 %v2161, %v2160
    %v2175 = vpack.c.b16 %v2163, %v2162
    %v2176 = vpack.c.b16 %v2165, %v2164
    %v2177 = vpack.c.b16 %v2167, %v2166
    %v2178 = vpack.c.b16 %v2169, %v2168
    %v2179 = vpack.c.b16 %v2171, %v2170
    %2188 = vst.msk [vmem:[#allocation3 + $0x10] sm:$0xff] %vm545, %v2172
    %2189 = vst.msk [vmem:[#allocation3 + $0x28] sm:$0xff] %vm545, %v2173
    %2190 = vst.msk [vmem:[#allocation3 + $0x40] sm:$0xff] %vm545, %v2174
    %2191 = vst.msk [vmem:[#allocation3 + $0x58] sm:$0xff] %vm545, %v2175
    %2192 = vst.msk [vmem:[#allocation3 + $0x70] sm:$0xff] %vm545, %v2176
    %2193 = vst.msk [vmem:[#allocation3 + $0x88] sm:$0xff] %vm545, %v2177
    %2194 = vst.msk [vmem:[#allocation3 + $0xa0] sm:$0xff] %vm545, %v2178
    %2195 = vst.msk [vmem:[#allocation3 + $0xb8] sm:$0xff] %vm545, %v2179
    %v2196 = vld [vmem:[#allocation3] sm:$0xff]
    %v2197 = vld [vmem:[#allocation3 + $0x8] sm:$0xff]
    %v2198 = vld [vmem:[#allocation3 + $0x10] sm:$0xff]
    %v2199 = vld [vmem:[#allocation3 + $0x18] sm:$0xff]
    %v2200 = vld [vmem:[#allocation3 + $0x20] sm:$0xff]
    %v2201 = vld [vmem:[#allocation3 + $0x28] sm:$0xff]
    %v2202 = vld [vmem:[#allocation3 + $0x30] sm:$0xff]
    %v2203 = vld [vmem:[#allocation3 + $0x38] sm:$0xff]
    %v2204 = vld [vmem:[#allocation3 + $0x40] sm:$0xff]
    %v2205 = vld [vmem:[#allocation3 + $0x48] sm:$0xff]
    %v2206 = vld [vmem:[#allocation3 + $0x50] sm:$0xff]
    %v2207 = vld [vmem:[#allocation3 + $0x58] sm:$0xff]
    %v2208 = vld [vmem:[#allocation3 + $0x60] sm:$0xff]
    %v2209 = vld [vmem:[#allocation3 + $0x68] sm:$0xff]
    %v2210 = vld [vmem:[#allocation3 + $0x70] sm:$0xff]
    %v2211 = vld [vmem:[#allocation3 + $0x78] sm:$0xff]
    %v2212 = vld [vmem:[#allocation3 + $0x80] sm:$0xff]
    %v2213 = vld [vmem:[#allocation3 + $0x88] sm:$0xff]
    %v2214 = vld [vmem:[#allocation3 + $0x90] sm:$0xff]
    %v2215 = vld [vmem:[#allocation3 + $0x98] sm:$0xff]
    %v2216 = vld [vmem:[#allocation3 + $0xa0] sm:$0xff]
    %v2217 = vld [vmem:[#allocation3 + $0xa8] sm:$0xff]
    %v2218 = vld [vmem:[#allocation3 + $0xb0] sm:$0xff]
    %v2219 = vld [vmem:[#allocation3 + $0xb8] sm:$0xff]
    %v2220 = vld [vmem:[%s1] sm:$0xf]
    %v2221 = vld [vmem:[%s1 + $0x4] sm:$0xf]
    %v2222 = vld [vmem:[%s1 + $0x8] sm:$0xf]
    %v2223 = vld [vmem:[%s1 + $0xc] sm:$0xf]
    %v2224 = vld [vmem:[%s1 + $0x10] sm:$0xf]
    %v2225 = vld [vmem:[%s1 + $0x14] sm:$0xf]
    %v2226 = vld [vmem:[%s1 + $0x18] sm:$0xf]
    %v2227 = vld [vmem:[%s1 + $0x1c] sm:$0xf]
    %v2228 = vld [vmem:[%s1 + $0x20] sm:$0xf]
    %v2229 = vld [vmem:[%s1 + $0x24] sm:$0xf]
    %v2230 = vld [vmem:[%s1 + $0x28] sm:$0xf]
    %v2231 = vld [vmem:[%s1 + $0x2c] sm:$0xf]
    %v2232 = vld [vmem:[%s1 + $0x30] sm:$0xf]
    %v2233 = vld [vmem:[%s1 + $0x34] sm:$0xf]
    %v2234 = vld [vmem:[%s1 + $0x38] sm:$0xf]
    %v2235 = vld [vmem:[%s1 + $0x3c] sm:$0xf]
    %v2236 = vld [vmem:[%s1 + $0x40] sm:$0xf]
    %v2237 = vld [vmem:[%s1 + $0x44] sm:$0xf]
    %v2238 = vld [vmem:[%s1 + $0x48] sm:$0xf]
    %v2239 = vld [vmem:[%s1 + $0x4c] sm:$0xf]
    %v2240 = vld [vmem:[%s1 + $0x50] sm:$0xf]
    %v2241 = vld [vmem:[%s1 + $0x54] sm:$0xf]
    %v2242 = vld [vmem:[%s1 + $0x58] sm:$0xf]
    %v2243 = vld [vmem:[%s1 + $0x5c] sm:$0xf]
    %v2244 = vld [vmem:[%s1 + $0x60] sm:$0xf]
    %v2245 = vld [vmem:[%s1 + $0x64] sm:$0xf]
    %v2246 = vld [vmem:[%s1 + $0x68] sm:$0xf]
    %v2247 = vld [vmem:[%s1 + $0x6c] sm:$0xf]
    %v2248 = vld [vmem:[%s1 + $0x70] sm:$0xf]
    %v2249 = vld [vmem:[%s1 + $0x74] sm:$0xf]
    %v2250 = vld [vmem:[%s1 + $0x78] sm:$0xf]
    %v2251 = vld [vmem:[%s1 + $0x7c] sm:$0xf]
    %v2252 = vld [vmem:[%s1 + $0x80] sm:$0xf]
    %v2253 = vld [vmem:[%s1 + $0x84] sm:$0xf]
    %v2254 = vld [vmem:[%s1 + $0x88] sm:$0xf]
    %v2255 = vld [vmem:[%s1 + $0x8c] sm:$0xf]
    %v2292 = vunpack.c.l.b16 %v2220
    %v2293 = vunpack.c.l.b16 %v2221
    %v2294 = vunpack.c.l.b16 %v2222
    %v2295 = vunpack.c.l.b16 %v2223
    %v2296 = vunpack.c.l.b16 %v2224
    %v2297 = vunpack.c.l.b16 %v2225
    %v2298 = vunpack.c.l.b16 %v2226
    %v2299 = vunpack.c.l.b16 %v2227
    %v2300 = vunpack.c.l.b16 %v2228
    %v2301 = vunpack.c.l.b16 %v2229
    %v2302 = vunpack.c.l.b16 %v2230
    %v2303 = vunpack.c.l.b16 %v2231
    %v2304 = vunpack.c.l.b16 %v2232
    %v2305 = vunpack.c.l.b16 %v2233
    %v2306 = vunpack.c.l.b16 %v2234
    %v2307 = vunpack.c.l.b16 %v2235
    %v2308 = vunpack.c.l.b16 %v2236
    %v2309 = vunpack.c.l.b16 %v2237
    %v2310 = vunpack.c.l.b16 %v2238
    %v2311 = vunpack.c.l.b16 %v2239
    %v2312 = vunpack.c.l.b16 %v2240
    %v2313 = vunpack.c.l.b16 %v2241
    %v2314 = vunpack.c.l.b16 %v2242
    %v2315 = vunpack.c.l.b16 %v2243
    %v2316 = vunpack.c.l.b16 %v2244
    %v2317 = vunpack.c.l.b16 %v2245
    %v2318 = vunpack.c.l.b16 %v2246
    %v2319 = vunpack.c.l.b16 %v2247
    %v2320 = vunpack.c.l.b16 %v2248
    %v2321 = vunpack.c.l.b16 %v2249
    %v2322 = vunpack.c.l.b16 %v2250
    %v2323 = vunpack.c.l.b16 %v2251
    %v2324 = vunpack.c.l.b16 %v2252
    %v2325 = vunpack.c.l.b16 %v2253
    %v2326 = vunpack.c.l.b16 %v2254
    %v2327 = vunpack.c.l.b16 %v2255
    %v2328 = vpack.c.b16 %v2293, %v2292
    %v2329 = vpack.c.b16 %v2295, %v2294
    %v2330 = vpack.c.b16 %v2297, %v2296
    %v2331 = vpack.c.b16 %v2299, %v2298
    %v2332 = vpack.c.b16 %v2301, %v2300
    %v2333 = vpack.c.b16 %v2303, %v2302
    %v2334 = vpack.c.b16 %v2305, %v2304
    %v2335 = vpack.c.b16 %v2307, %v2306
    %v2336 = vpack.c.b16 %v2309, %v2308
    %v2337 = vpack.c.b16 %v2311, %v2310
    %v2338 = vpack.c.b16 %v2313, %v2312
    %v2339 = vpack.c.b16 %v2315, %v2314
    %v2340 = vpack.c.b16 %v2317, %v2316
    %v2341 = vpack.c.b16 %v2319, %v2318
    %v2342 = vpack.c.b16 %v2321, %v2320
    %v2343 = vpack.c.b16 %v2323, %v2322
    %v2344 = vpack.c.b16 %v2325, %v2324
    %v2345 = vpack.c.b16 %v2327, %v2326
    %v2365 = vsel %vm545, %v2198, 0
    %v2368 = vsel %vm545, %v2201, 0
    %v2371 = vsel %vm545, %v2204, 0
    %v2374 = vsel %vm545, %v2207, 0
    %v2377 = vsel %vm545, %v2210, 0
    %v2380 = vsel %vm545, %v2213, 0
    %v2383 = vsel %vm545, %v2216, 0
    %v2386 = vsel %vm545, %v2219, 0
    %2388 = vmatprep.subr.bf16.mxu0 0
    %2389 = vmatpush1.bf16.msra.mxu0 %v2328
    %2390 = vmatprep.subr.bf16.mxu0 0
    %2391 = vmatpush1.bf16.msra.mxu0 %v2329
    %2392 = vmatprep.subr.bf16.mxu0 0
    %2393 = vmatpush1.bf16.msra.mxu0 %v2330
    %2394 = vmatprep.subr.bf16.mxu0 0
    %2395 = vmatpush1.bf16.msra.mxu0 %v2331
    %2396 = vmatprep.subr.bf16.mxu0 0
    %2397 = vmatpush1.bf16.msra.mxu0 %v2332
    %2398 = vmatprep.subr.bf16.mxu0 0
    %2399 = vmatpush1.bf16.msra.mxu0 %v2333
    %2400 = vmatprep.subr.bf16.mxu0 0
    %2401 = vmatpush1.bf16.msra.mxu0 %v2334
    %2402 = vmatprep.subr.bf16.mxu0 0
    %2403 = vmatpush1.bf16.msra.mxu0 %v2335
    %2404 = vmatprep.subr.bf16.mxu0 0
    %2405 = vmatpush1.bf16.msra.mxu0 %v2336
    %2406 = vmatprep.subr.bf16.mxu0 0
    %2407 = vmatpush1.bf16.msra.mxu0 %v2337
    %2408 = vmatprep.subr.bf16.mxu0 0
    %2409 = vmatpush1.bf16.msra.mxu0 %v2338
    %2410 = vmatprep.subr.bf16.mxu0 0
    %2411 = vmatpush1.bf16.msra.mxu0 %v2339
    %2412 = vmatprep.subr.bf16.mxu0 0
    %2413 = vmatpush1.bf16.msra.mxu0 %v2340
    %2414 = vmatprep.subr.bf16.mxu0 0
    %2415 = vmatpush1.bf16.msra.mxu0 %v2341
    %2416 = vmatprep.subr.bf16.mxu0 0
    %2417 = vmatpush1.bf16.msra.mxu0 %v2342
    %2418 = vmatprep.subr.bf16.mxu0 0
    %2419 = vmatpush1.bf16.msra.mxu0 %v2343
    %2420 = vmatprep.mubr.bf16.mxu0 %v2197
    %2421 = vmatmul.mubr.bf16.gmra.mrb[0].mxu0 %v2196
    %v2422 = vpop.f32.mrb[0].mxu0
    %v2423 = vadd.f32 0.0, %v2422
    %v2424 = vpop.f32.mrb[0].mxu0
    %v2425 = vpop.f32.mrb[0].mxu0
    %v2426 = vadd.f32 0.0, %v2425
    %v2427 = vpop.f32.mrb[0].mxu0
    %2428 = vmatprep.mubr.bf16.mxu0 %v2200
    %2429 = vmatmul.mubr.bf16.gmra.mrb[0].mxu0 %v2199
    %v2430 = vpop.f32.mrb[0].mxu0
    %v2431 = vadd.f32 0.0, %v2430
    %v2432 = vpop.f32.mrb[0].mxu0
    %v2433 = vpop.f32.mrb[0].mxu0
    %v2434 = vadd.f32 0.0, %v2433
    %v2435 = vpop.f32.mrb[0].mxu0
    %2436 = vmatprep.mubr.bf16.mxu0 %v2203
    %2437 = vmatmul.mubr.bf16.gmra.mrb[0].mxu0 %v2202
    %v2438 = vpop.f32.mrb[0].mxu0
    %v2439 = vadd.f32 0.0, %v2438
    %v2440 = vpop.f32.mrb[0].mxu0
    %v2441 = vpop.f32.mrb[0].mxu0
    %v2442 = vadd.f32 0.0, %v2441
    %v2443 = vpop.f32.mrb[0].mxu0
    %2444 = vmatprep.mubr.bf16.mxu0 %v2206
    %2445 = vmatmul.mubr.bf16.gmra.mrb[0].mxu0 %v2205
    %v2446 = vpop.f32.mrb[0].mxu0
    %v2447 = vadd.f32 0.0, %v2446
    %v2448 = vpop.f32.mrb[0].mxu0
    %v2449 = vpop.f32.mrb[0].mxu0
    %v2450 = vadd.f32 0.0, %v2449
    %v2451 = vpop.f32.mrb[0].mxu0
    %2452 = vmatprep.mubr.bf16.mxu0 %v2209
    %2453 = vmatmul.mubr.bf16.gmra.mrb[0].mxu0 %v2208
    %v2454 = vpop.f32.mrb[0].mxu0
    %v2455 = vadd.f32 0.0, %v2454
    %v2456 = vpop.f32.mrb[0].mxu0
    %v2457 = vpop.f32.mrb[0].mxu0
    %v2458 = vadd.f32 0.0, %v2457
    %v2459 = vpop.f32.mrb[0].mxu0
    %2460 = vmatprep.mubr.bf16.mxu0 %v2212
    %2461 = vmatmul.mubr.bf16.gmra.mrb[0].mxu0 %v2211
    %v2462 = vpop.f32.mrb[0].mxu0
    %v2463 = vadd.f32 0.0, %v2462
    %v2464 = vpop.f32.mrb[0].mxu0
    %v2465 = vpop.f32.mrb[0].mxu0
    %v2466 = vadd.f32 0.0, %v2465
    %v2467 = vpop.f32.mrb[0].mxu0
    %2468 = vmatprep.mubr.bf16.mxu0 %v2215
    %2469 = vmatmul.mubr.bf16.gmra.mrb[0].mxu0 %v2214
    %v2470 = vpop.f32.mrb[0].mxu0
    %v2471 = vadd.f32 0.0, %v2470
    %v2472 = vpop.f32.mrb[0].mxu0
    %v2473 = vpop.f32.mrb[0].mxu0
    %v2474 = vadd.f32 0.0, %v2473
    %v2475 = vpop.f32.mrb[0].mxu0
    %2476 = vmatprep.mubr.bf16.mxu0 %v2218
    %2477 = vmatmul.mubr.bf16.gmra.mrb[0].mxu0 %v2217
    %v2478 = vpop.f32.mrb[0].mxu0
    %v2479 = vadd.f32 0.0, %v2478
    %v2480 = vpop.f32.mrb[0].mxu0
    %v2481 = vpop.f32.mrb[0].mxu0
    %v2482 = vadd.f32 0.0, %v2481
    %v2483 = vpop.f32.mrb[0].mxu0
    %2484 = vdwg.mxu0
    %2485 = vmatprep.subr.bf16.mxu0 0
    %2486 = vmatpush1.bf16.msra.mxu0 %v2344
    %2487 = vmatprep.subr.bf16.mxu0 0
    %2488 = vmatpush1.bf16.msra.mxu0 %v2345
    %2489 = vmatprep.subr.bf16.mxu0 0
    %2490 = vmatpush1.bf16.msra.mxu0 0
    %2491 = vmatprep.subr.bf16.mxu0 0
    %2492 = vmatpush1.bf16.msra.mxu0 0
    %2493 = vmatprep.subr.bf16.mxu0 0
    %2494 = vmatpush1.bf16.msra.mxu0 0
    %2495 = vmatprep.subr.bf16.mxu0 0
    %2496 = vmatpush1.bf16.msra.mxu0 0
    %2497 = vmatprep.subr.bf16.mxu0 0
    %2498 = vmatpush1.bf16.msra.mxu0 0
    %2499 = vmatprep.subr.bf16.mxu0 0
    %2500 = vmatpush1.bf16.msra.mxu0 0
    %2501 = vmatprep.subr.bf16.mxu0 0
    %2502 = vmatpush1.bf16.msra.mxu0 0
    %2503 = vmatprep.subr.bf16.mxu0 0
    %2504 = vmatpush1.bf16.msra.mxu0 0
    %2505 = vmatprep.subr.bf16.mxu0 0
    %2506 = vmatpush1.bf16.msra.mxu0 0
    %2507 = vmatprep.subr.bf16.mxu0 0
    %2508 = vmatpush1.bf16.msra.mxu0 0
    %2509 = vmatprep.subr.bf16.mxu0 0
    %2510 = vmatpush1.bf16.msra.mxu0 0
    %2511 = vmatprep.subr.bf16.mxu0 0
    %2512 = vmatpush1.bf16.msra.mxu0 0
    %2513 = vmatprep.subr.bf16.mxu0 0
    %2514 = vmatpush1.bf16.msra.mxu0 0
    %2515 = vmatprep.subr.bf16.mxu0 0
    %2516 = vmatpush1.bf16.msra.mxu0 0
    %2517 = vmatprep.mubr.bf16.mxu0 0
    %2518 = vmatmul.mubr.bf16.gmra.mrb[0].mxu0 %v2365
    %v2519 = vpop.f32.mrb[0].mxu0
    %v2520 = vadd.f32 %v2423, %v2519
    %v2521 = vpop.f32.mrb[0].mxu0
    %v2522 = vpop.f32.mrb[0].mxu0
    %v2523 = vadd.f32 %v2426, %v2522
    %v2524 = vpop.f32.mrb[0].mxu0
    %2525 = vmatprep.mubr.bf16.mxu0 0
    %2526 = vmatmul.mubr.bf16.gmra.mrb[0].mxu0 %v2368
    %v2527 = vpop.f32.mrb[0].mxu0
    %v2528 = vadd.f32 %v2431, %v2527
    %v2529 = vpop.f32.mrb[0].mxu0
    %v2530 = vpop.f32.mrb[0].mxu0
    %v2531 = vadd.f32 %v2434, %v2530
    %v2532 = vpop.f32.mrb[0].mxu0
    %2533 = vmatprep.mubr.bf16.mxu0 0
    %2534 = vmatmul.mubr.bf16.gmra.mrb[0].mxu0 %v2371
    %v2535 = vpop.f32.mrb[0].mxu0
    %v2536 = vadd.f32 %v2439, %v2535
    %v2537 = vpop.f32.mrb[0].mxu0
    %v2538 = vpop.f32.mrb[0].mxu0
    %v2539 = vadd.f32 %v2442, %v2538
    %v2540 = vpop.f32.mrb[0].mxu0
    %2541 = vmatprep.mubr.bf16.mxu0 0
    %2542 = vmatmul.mubr.bf16.gmra.mrb[0].mxu0 %v2374
    %v2543 = vpop.f32.mrb[0].mxu0
    %v2544 = vadd.f32 %v2447, %v2543
    %v2545 = vpop.f32.mrb[0].mxu0
    %v2546 = vpop.f32.mrb[0].mxu0
    %v2547 = vadd.f32 %v2450, %v2546
    %v2548 = vpop.f32.mrb[0].mxu0
    %2549 = vmatprep.mubr.bf16.mxu0 0
    %2550 = vmatmul.mubr.bf16.gmra.mrb[0].mxu0 %v2377
    %v2551 = vpop.f32.mrb[0].mxu0
    %v2552 = vadd.f32 %v2455, %v2551
    %v2553 = vpop.f32.mrb[0].mxu0
    %v2554 = vpop.f32.mrb[0].mxu0
    %v2555 = vadd.f32 %v2458, %v2554
    %v2556 = vpop.f32.mrb[0].mxu0
    %2557 = vmatprep.mubr.bf16.mxu0 0
    %2558 = vmatmul.mubr.bf16.gmra.mrb[0].mxu0 %v2380
    %v2559 = vpop.f32.mrb[0].mxu0
    %v2560 = vadd.f32 %v2463, %v2559
    %v2561 = vpop.f32.mrb[0].mxu0
    %v2562 = vpop.f32.mrb[0].mxu0
    %v2563 = vadd.f32 %v2466, %v2562
    %v2564 = vpop.f32.mrb[0].mxu0
    %2565 = vmatprep.mubr.bf16.mxu0 0
    %2566 = vmatmul.mubr.bf16.gmra.mrb[0].mxu0 %v2383
    %v2567 = vpop.f32.mrb[0].mxu0
    %v2568 = vadd.f32 %v2471, %v2567
    %v2569 = vpop.f32.mrb[0].mxu0
    %v2570 = vpop.f32.mrb[0].mxu0
    %v2571 = vadd.f32 %v2474, %v2570
    %v2572 = vpop.f32.mrb[0].mxu0
    %2573 = vmatprep.mubr.bf16.mxu0 0
    %2574 = vmatmul.mubr.bf16.gmra.mrb[0].mxu0 %v2386
    %v2575 = vpop.f32.mrb[0].mxu0
    %v2576 = vadd.f32 %v2479, %v2575
    %v2577 = vpop.f32.mrb[0].mxu0
    %v2578 = vpop.f32.mrb[0].mxu0
    %v2579 = vadd.f32 %v2482, %v2578
    %v2580 = vpop.f32.mrb[0].mxu0
    %2581 = vdwg.mxu0
    %v2582 = vsel %vm545, %v2520, 0.0
    %v2583 = vsel %vm545, %v2523, 0.0
    %v2584 = vadd.f32 %v2582, %v2583
    %v2585 = vsel %vm545, %v2528, 0.0
    %v2586 = vadd.f32 %v2584, %v2585
    %v2587 = vsel %vm545, %v2531, 0.0
    %v2588 = vadd.f32 %v2586, %v2587
    %v2589 = vsel %vm545, %v2536, 0.0
    %v2590 = vadd.f32 %v2588, %v2589
    %v2591 = vsel %vm545, %v2539, 0.0
    %v2592 = vadd.f32 %v2590, %v2591
    %v2593 = vsel %vm545, %v2544, 0.0
    %v2594 = vadd.f32 %v2592, %v2593
    %v2595 = vsel %vm545, %v2547, 0.0
    %v2596 = vadd.f32 %v2594, %v2595
    %v2597 = vsel %vm545, %v2552, 0.0
    %v2598 = vadd.f32 %v2596, %v2597
    %v2599 = vsel %vm545, %v2555, 0.0
    %v2600 = vadd.f32 %v2598, %v2599
    %v2601 = vsel %vm545, %v2560, 0.0
    %v2602 = vadd.f32 %v2600, %v2601
    %v2603 = vsel %vm545, %v2563, 0.0
    %v2604 = vadd.f32 %v2602, %v2603
    %v2605 = vsel %vm545, %v2568, 0.0
    %v2606 = vadd.f32 %v2604, %v2605
    %v2607 = vsel %vm545, %v2571, 0.0
    %v2608 = vadd.f32 %v2606, %v2607
    %v2609 = vsel %vm545, %v2576, 0.0
    %v2610 = vadd.f32 %v2608, %v2609
    %v2611 = vsel %vm545, %v2579, 0.0
    %v2612 = vadd.f32 %v2610, %v2611
    %v2613 = vrot.slane %v2612, 4
    %v2614 = vadd.f32 %v2612, %v2613
    %v2615 = vrot.slane %v2614, 2
    %v2616 = vadd.f32 %v2614, %v2615
    %v2617 = vrot.slane %v2616, 1
    %v2618 = vadd.f32 %v2616, %v2617
    %v2619 = vmul.f32 %v2520, %v2520
    %v2620 = vmul.f32 %v2523, %v2523
    %v2621 = vmul.f32 %v2528, %v2528
    %v2622 = vmul.f32 %v2531, %v2531
    %v2623 = vmul.f32 %v2536, %v2536
    %v2624 = vmul.f32 %v2539, %v2539
    %v2625 = vmul.f32 %v2544, %v2544
    %v2626 = vmul.f32 %v2547, %v2547
    %v2627 = vmul.f32 %v2552, %v2552
    %v2628 = vmul.f32 %v2555, %v2555
    %v2629 = vmul.f32 %v2560, %v2560
    %v2630 = vmul.f32 %v2563, %v2563
    %v2631 = vmul.f32 %v2568, %v2568
    %v2632 = vmul.f32 %v2571, %v2571
    %v2633 = vmul.f32 %v2576, %v2576
    %v2634 = vmul.f32 %v2579, %v2579
    %v2635 = vsel %vm545, %v2619, 0.0
    %v2636 = vsel %vm545, %v2620, 0.0
    %v2637 = vadd.f32 %v2635, %v2636
    %v2638 = vsel %vm545, %v2621, 0.0
    %v2639 = vadd.f32 %v2637, %v2638
    %v2640 = vsel %vm545, %v2622, 0.0
    %v2641 = vadd.f32 %v2639, %v2640
    %v2642 = vsel %vm545, %v2623, 0.0
    %v2643 = vadd.f32 %v2641, %v2642
    %v2644 = vsel %vm545, %v2624, 0.0
    %v2645 = vadd.f32 %v2643, %v2644
    %v2646 = vsel %vm545, %v2625, 0.0
    %v2647 = vadd.f32 %v2645, %v2646
    %v2648 = vsel %vm545, %v2626, 0.0
    %v2649 = vadd.f32 %v2647, %v2648
    %v2650 = vsel %vm545, %v2627, 0.0
    %v2651 = vadd.f32 %v2649, %v2650
    %v2652 = vsel %vm545, %v2628, 0.0
    %v2653 = vadd.f32 %v2651, %v2652
    %v2654 = vsel %vm545, %v2629, 0.0
    %v2655 = vadd.f32 %v2653, %v2654
    %v2656 = vsel %vm545, %v2630, 0.0
    %v2657 = vadd.f32 %v2655, %v2656
    %v2658 = vsel %vm545, %v2631, 0.0
    %v2659 = vadd.f32 %v2657, %v2658
    %v2660 = vsel %vm545, %v2632, 0.0
    %v2661 = vadd.f32 %v2659, %v2660
    %v2662 = vsel %vm545, %v2633, 0.0
    %v2663 = vadd.f32 %v2661, %v2662
    %v2664 = vsel %vm545, %v2634, 0.0
    %v2665 = vadd.f32 %v2663, %v2664
    %v2666 = vrot.slane %v2665, 4
    %v2667 = vadd.f32 %v2665, %v2666
    %v2668 = vrot.slane %v2667, 2
    %v2669 = vadd.f32 %v2667, %v2668
    %v2670 = vrot.slane %v2669, 1
    %v2671 = vadd.f32 %v2669, %v2670
    %v2672 = vmul.f32 %v2618, 0.0078125
    %v2673 = vmul.f32 %v2671, 0.0078125
    %v2674 = vmul.f32 %v2672, %v2672
    %v2675 = vsub.f32 %v2673, %v2674
    %v2676 = vadd.f32 %v2675, 1e-05
    %v2677 = vrsqrt.pop %v2676
    %v2678 = vmul.f32 %v2677, %v479
    %v2679 = vmul.f32 %v2672, %v2678
    %v2680 = vsub.f32 %v480, %v2679
    %v2681 = vlaneseq
    %v2682 = vshrl.u32 %v2681, 7
    %v2683 = vsub.s32 0, %v2682
    %v2684 = vrot.slane %v2678, %v2683
    %v2685 = vmul.f32 %v2520, %v2684
    %v2686 = vmul.f32 %v2523, %v2684
    %v2687 = vmul.f32 %v2528, %v2684
    %v2688 = vmul.f32 %v2531, %v2684
    %v2689 = vmul.f32 %v2536, %v2684
    %v2690 = vmul.f32 %v2539, %v2684
    %v2691 = vmul.f32 %v2544, %v2684
    %v2692 = vmul.f32 %v2547, %v2684
    %v2693 = vmul.f32 %v2552, %v2684
    %v2694 = vmul.f32 %v2555, %v2684
    %v2695 = vmul.f32 %v2560, %v2684
    %v2696 = vmul.f32 %v2563, %v2684
    %v2697 = vmul.f32 %v2568, %v2684
    %v2698 = vmul.f32 %v2571, %v2684
    %v2699 = vmul.f32 %v2576, %v2684
    %v2700 = vmul.f32 %v2579, %v2684
    %v2702 = vlaneseq
    %v2703 = vshrl.u32 %v2702, 7
    %v2704 = vsub.s32 0, %v2703
    %v2705 = vrot.slane %v2680, %v2704
    %v2707 = vadd.f32 %v2685, %v2705
    %v2708 = vadd.f32 %v2686, %v2705
    %v2709 = vadd.f32 %v2687, %v2705
    %v2710 = vadd.f32 %v2688, %v2705
    %v2711 = vadd.f32 %v2689, %v2705
    %v2712 = vadd.f32 %v2690, %v2705
    %v2713 = vadd.f32 %v2691, %v2705
    %v2714 = vadd.f32 %v2692, %v2705
    %v2715 = vadd.f32 %v2693, %v2705
    %v2716 = vadd.f32 %v2694, %v2705
    %v2717 = vadd.f32 %v2695, %v2705
    %v2718 = vadd.f32 %v2696, %v2705
    %v2719 = vadd.f32 %v2697, %v2705
    %v2720 = vadd.f32 %v2698, %v2705
    %v2721 = vadd.f32 %v2699, %v2705
    %v2722 = vadd.f32 %v2700, %v2705
    %v2723 = vmax.f32 %v2707, 0.0
    %v2724 = vmax.f32 %v2708, 0.0
    %v2725 = vmax.f32 %v2709, 0.0
    %v2726 = vmax.f32 %v2710, 0.0
    %v2727 = vmax.f32 %v2711, 0.0
    %v2728 = vmax.f32 %v2712, 0.0
    %v2729 = vmax.f32 %v2713, 0.0
    %v2730 = vmax.f32 %v2714, 0.0
    %v2731 = vmax.f32 %v2715, 0.0
    %v2732 = vmax.f32 %v2716, 0.0
    %v2733 = vmax.f32 %v2717, 0.0
    %v2734 = vmax.f32 %v2718, 0.0
    %v2735 = vmax.f32 %v2719, 0.0
    %v2736 = vmax.f32 %v2720, 0.0
    %v2737 = vmax.f32 %v2721, 0.0
    %v2738 = vmax.f32 %v2722, 0.0
    %v2739 = vpack.c.bf16 %v2723, %v2723
    %v2740 = vpack.c.bf16 %v2724, %v2724
    %v2741 = vpack.c.bf16 %v2725, %v2725
    %v2742 = vpack.c.bf16 %v2726, %v2726
    %v2743 = vpack.c.bf16 %v2727, %v2727
    %v2744 = vpack.c.bf16 %v2728, %v2728
    %v2745 = vpack.c.bf16 %v2729, %v2729
    %v2746 = vpack.c.bf16 %v2730, %v2730
    %v2747 = vpack.c.bf16 %v2731, %v2731
    %v2748 = vpack.c.bf16 %v2732, %v2732
    %v2749 = vpack.c.bf16 %v2733, %v2733
    %v2750 = vpack.c.bf16 %v2734, %v2734
    %v2751 = vpack.c.bf16 %v2735, %v2735
    %v2752 = vpack.c.bf16 %v2736, %v2736
    %v2753 = vpack.c.bf16 %v2737, %v2737
    %v2754 = vpack.c.bf16 %v2738, %v2738
    %v2771 = vunpack.c.l.b16 %v2739
    %v2772 = vunpack.c.l.b16 %v2740
    %v2773 = vunpack.c.l.b16 %v2741
    %v2774 = vunpack.c.l.b16 %v2742
    %v2775 = vunpack.c.l.b16 %v2743
    %v2776 = vunpack.c.l.b16 %v2744
    %v2777 = vunpack.c.l.b16 %v2745
    %v2778 = vunpack.c.l.b16 %v2746
    %v2779 = vunpack.c.l.b16 %v2747
    %v2780 = vunpack.c.l.b16 %v2748
    %v2781 = vunpack.c.l.b16 %v2749
    %v2782 = vunpack.c.l.b16 %v2750
    %v2783 = vunpack.c.l.b16 %v2751
    %v2784 = vunpack.c.l.b16 %v2752
    %v2785 = vunpack.c.l.b16 %v2753
    %v2786 = vunpack.c.l.b16 %v2754
    %v2787 = vpack.c.b16 %v2771, %v2771
    %v2788 = vpack.c.b16 %v2772, %v2772
    %v2789 = vpack.c.b16 %v2773, %v2773
    %v2790 = vpack.c.b16 %v2774, %v2774
    %v2791 = vpack.c.b16 %v2775, %v2775
    %v2792 = vpack.c.b16 %v2776, %v2776
    %v2793 = vpack.c.b16 %v2777, %v2777
    %v2794 = vpack.c.b16 %v2778, %v2778
    %v2795 = vpack.c.b16 %v2779, %v2779
    %v2796 = vpack.c.b16 %v2780, %v2780
    %v2797 = vpack.c.b16 %v2781, %v2781
    %v2798 = vpack.c.b16 %v2782, %v2782
    %v2799 = vpack.c.b16 %v2783, %v2783
    %v2800 = vpack.c.b16 %v2784, %v2784
    %v2801 = vpack.c.b16 %v2785, %v2785
    %v2802 = vpack.c.b16 %v2786, %v2786
    %v2804 = vshrl.u32 %v2787, 16
    %v2806 = vrot.slane %v2804, 7
    %v2807 = vshll.u32 %v2787, 16
    %v2809 = vor.u32 %v2806, %v2807
    %v2810 = vrot.slane %v2806, 4
    %v2812 = vshrl.u32 %v2788, 16
    %v2814 = vrot.slane %v2812, 7
    %v2815 = vshll.u32 %v2788, 16
    %v2817 = vor.u32 %v2814, %v2815
    %v2818 = vrot.slane %v2814, 4
    %v2820 = vshrl.u32 %v2789, 16
    %v2822 = vrot.slane %v2820, 7
    %v2823 = vshll.u32 %v2789, 16
    %v2825 = vor.u32 %v2822, %v2823
    %v2826 = vrot.slane %v2822, 4
    %v2828 = vshrl.u32 %v2790, 16
    %v2830 = vrot.slane %v2828, 7
    %v2831 = vshll.u32 %v2790, 16
    %v2833 = vor.u32 %v2830, %v2831
    %v2834 = vrot.slane %v2830, 4
    %v2836 = vshrl.u32 %v2791, 16
    %v2838 = vrot.slane %v2836, 7
    %v2839 = vshll.u32 %v2791, 16
    %v2841 = vor.u32 %v2838, %v2839
    %v2842 = vrot.slane %v2838, 4
    %v2844 = vshrl.u32 %v2792, 16
    %v2846 = vrot.slane %v2844, 7
    %v2847 = vshll.u32 %v2792, 16
    %v2849 = vor.u32 %v2846, %v2847
    %v2850 = vrot.slane %v2846, 4
    %v2852 = vshrl.u32 %v2793, 16
    %v2854 = vrot.slane %v2852, 7
    %v2855 = vshll.u32 %v2793, 16
    %v2857 = vor.u32 %v2854, %v2855
    %v2858 = vrot.slane %v2854, 4
    %v2860 = vshrl.u32 %v2794, 16
    %v2862 = vrot.slane %v2860, 7
    %v2863 = vshll.u32 %v2794, 16
    %v2865 = vor.u32 %v2862, %v2863
    %v2866 = vrot.slane %v2862, 4
    %v2868 = vshrl.u32 %v2795, 16
    %v2870 = vrot.slane %v2868, 7
    %v2871 = vshll.u32 %v2795, 16
    %v2873 = vor.u32 %v2870, %v2871
    %v2874 = vrot.slane %v2870, 4
    %v2876 = vshrl.u32 %v2796, 16
    %v2878 = vrot.slane %v2876, 7
    %v2879 = vshll.u32 %v2796, 16
    %v2881 = vor.u32 %v2878, %v2879
    %v2882 = vrot.slane %v2878, 4
    %v2884 = vshrl.u32 %v2797, 16
    %v2886 = vrot.slane %v2884, 7
    %v2887 = vshll.u32 %v2797, 16
    %v2889 = vor.u32 %v2886, %v2887
    %v2890 = vrot.slane %v2886, 4
    %v2892 = vshrl.u32 %v2798, 16
    %v2894 = vrot.slane %v2892, 7
    %v2895 = vshll.u32 %v2798, 16
    %v2897 = vor.u32 %v2894, %v2895
    %v2898 = vrot.slane %v2894, 4
    %v2900 = vshrl.u32 %v2799, 16
    %v2902 = vrot.slane %v2900, 7
    %v2903 = vshll.u32 %v2799, 16
    %v2905 = vor.u32 %v2902, %v2903
    %v2906 = vrot.slane %v2902, 4
    %v2908 = vshrl.u32 %v2800, 16
    %v2910 = vrot.slane %v2908, 7
    %v2911 = vshll.u32 %v2800, 16
    %v2913 = vor.u32 %v2910, %v2911
    %v2914 = vrot.slane %v2910, 4
    %v2916 = vshrl.u32 %v2801, 16
    %v2918 = vrot.slane %v2916, 7
    %v2919 = vshll.u32 %v2801, 16
    %v2921 = vor.u32 %v2918, %v2919
    %v2922 = vrot.slane %v2918, 4
    %v2924 = vshrl.u32 %v2802, 16
    %v2926 = vrot.slane %v2924, 7
    %v2927 = vshll.u32 %v2802, 16
    %v2929 = vor.u32 %v2926, %v2927
    %v2930 = vrot.slane %v2926, 4
    %v2963 = vld [vmem:[%s39] sm:$0xf]
    %v2964 = vsel %vm382, %v2809, %v2963
    %2965 = vst [vmem:[%s39] sm:$0xf] %v2964
    %v2966 = vld [vmem:[%s39 + $0x4] sm:$0x1]
    %v2967 = vsel %vm42, %v2810, %v2966
    %2968 = vst [vmem:[%s39 + $0x4] sm:$0x1] %v2967
    %v2969 = vld [vmem:[%s39 + $0x8] sm:$0xf]
    %v2970 = vsel %vm382, %v2817, %v2969
    %2971 = vst [vmem:[%s39 + $0x8] sm:$0xf] %v2970
    %v2972 = vld [vmem:[%s39 + $0xc] sm:$0x1]
    %v2973 = vsel %vm42, %v2818, %v2972
    %2974 = vst [vmem:[%s39 + $0xc] sm:$0x1] %v2973
    %v2975 = vld [vmem:[%s39 + $0x10] sm:$0xf]
    %v2976 = vsel %vm382, %v2825, %v2975
    %2977 = vst [vmem:[%s39 + $0x10] sm:$0xf] %v2976
    %v2978 = vld [vmem:[%s39 + $0x14] sm:$0x1]
    %v2979 = vsel %vm42, %v2826, %v2978
    %2980 = vst [vmem:[%s39 + $0x14] sm:$0x1] %v2979
    %v2981 = vld [vmem:[%s39 + $0x18] sm:$0xf]
    %v2982 = vsel %vm382, %v2833, %v2981
    %2983 = vst [vmem:[%s39 + $0x18] sm:$0xf] %v2982
    %v2984 = vld [vmem:[%s39 + $0x1c] sm:$0x1]
    %v2985 = vsel %vm42, %v2834, %v2984
    %2986 = vst [vmem:[%s39 + $0x1c] sm:$0x1] %v2985
    %v2987 = vld [vmem:[%s39 + $0x20] sm:$0xf]
    %v2988 = vsel %vm382, %v2841, %v2987
    %2989 = vst [vmem:[%s39 + $0x20] sm:$0xf] %v2988
    %v2990 = vld [vmem:[%s39 + $0x24] sm:$0x1]
    %v2991 = vsel %vm42, %v2842, %v2990
    %2992 = vst [vmem:[%s39 + $0x24] sm:$0x1] %v2991
    %v2993 = vld [vmem:[%s39 + $0x28] sm:$0xf]
    %v2994 = vsel %vm382, %v2849, %v2993
    %2995 = vst [vmem:[%s39 + $0x28] sm:$0xf] %v2994
    %v2996 = vld [vmem:[%s39 + $0x2c] sm:$0x1]
    %v2997 = vsel %vm42, %v2850, %v2996
    %2998 = vst [vmem:[%s39 + $0x2c] sm:$0x1] %v2997
    %v2999 = vld [vmem:[%s39 + $0x30] sm:$0xf]
    %v3000 = vsel %vm382, %v2857, %v2999
    %3001 = vst [vmem:[%s39 + $0x30] sm:$0xf] %v3000
    %v3002 = vld [vmem:[%s39 + $0x34] sm:$0x1]
    %v3003 = vsel %vm42, %v2858, %v3002
    %3004 = vst [vmem:[%s39 + $0x34] sm:$0x1] %v3003
    %v3005 = vld [vmem:[%s39 + $0x38] sm:$0xf]
    %v3006 = vsel %vm382, %v2865, %v3005
    %3007 = vst [vmem:[%s39 + $0x38] sm:$0xf] %v3006
    %v3008 = vld [vmem:[%s39 + $0x3c] sm:$0x1]
    %v3009 = vsel %vm42, %v2866, %v3008
    %3010 = vst [vmem:[%s39 + $0x3c] sm:$0x1] %v3009
    %v3011 = vld [vmem:[%s39 + $0x50] sm:$0xf]
    %v3012 = vsel %vm382, %v2873, %v3011
    %3013 = vst [vmem:[%s39 + $0x50] sm:$0xf] %v3012
    %v3014 = vld [vmem:[%s39 + $0x54] sm:$0x1]
    %v3015 = vsel %vm42, %v2874, %v3014
    %3016 = vst [vmem:[%s39 + $0x54] sm:$0x1] %v3015
    %v3017 = vld [vmem:[%s39 + $0x58] sm:$0xf]
    %v3018 = vsel %vm382, %v2881, %v3017
    %3019 = vst [vmem:[%s39 + $0x58] sm:$0xf] %v3018
    %v3020 = vld [vmem:[%s39 + $0x5c] sm:$0x1]
    %v3021 = vsel %vm42, %v2882, %v3020
    %3022 = vst [vmem:[%s39 + $0x5c] sm:$0x1] %v3021
    %v3023 = vld [vmem:[%s39 + $0x60] sm:$0xf]
    %v3024 = vsel %vm382, %v2889, %v3023
    %3025 = vst [vmem:[%s39 + $0x60] sm:$0xf] %v3024
    %v3026 = vld [vmem:[%s39 + $0x64] sm:$0x1]
    %v3027 = vsel %vm42, %v2890, %v3026
    %3028 = vst [vmem:[%s39 + $0x64] sm:$0x1] %v3027
    %v3029 = vld [vmem:[%s39 + $0x68] sm:$0xf]
    %v3030 = vsel %vm382, %v2897, %v3029
    %3031 = vst [vmem:[%s39 + $0x68] sm:$0xf] %v3030
    %v3032 = vld [vmem:[%s39 + $0x6c] sm:$0x1]
    %v3033 = vsel %vm42, %v2898, %v3032
    %3034 = vst [vmem:[%s39 + $0x6c] sm:$0x1] %v3033
    %v3035 = vld [vmem:[%s39 + $0x70] sm:$0xf]
    %v3036 = vsel %vm382, %v2905, %v3035
    %3037 = vst [vmem:[%s39 + $0x70] sm:$0xf] %v3036
    %v3038 = vld [vmem:[%s39 + $0x74] sm:$0x1]
    %v3039 = vsel %vm42, %v2906, %v3038
    %3040 = vst [vmem:[%s39 + $0x74] sm:$0x1] %v3039
    %v3041 = vld [vmem:[%s39 + $0x78] sm:$0xf]
    %v3042 = vsel %vm382, %v2913, %v3041
    %3043 = vst [vmem:[%s39 + $0x78] sm:$0xf] %v3042
    %v3044 = vld [vmem:[%s39 + $0x7c] sm:$0x1]
    %v3045 = vsel %vm42, %v2914, %v3044
    %3046 = vst [vmem:[%s39 + $0x7c] sm:$0x1] %v3045
    %v3047 = vld [vmem:[%s39 + $0x80] sm:$0xf]
    %v3048 = vsel %vm382, %v2921, %v3047
    %3049 = vst [vmem:[%s39 + $0x80] sm:$0xf] %v3048
    %v3050 = vld [vmem:[%s39 + $0x84] sm:$0x1]
    %v3051 = vsel %vm42, %v2922, %v3050
    %3052 = vst [vmem:[%s39 + $0x84] sm:$0x1] %v3051
    %v3053 = vld [vmem:[%s39 + $0x88] sm:$0xf]
    %v3054 = vsel %vm382, %v2929, %v3053
    %3055 = vst [vmem:[%s39 + $0x88] sm:$0xf] %v3054
    %v3056 = vld [vmem:[%s39 + $0x8c] sm:$0x1]
    %v3057 = vsel %vm42, %v2930, %v3056
    %3058 = vst [vmem:[%s39 + $0x8c] sm:$0x1] %v3057
    %v3059 = vld [vmem:[%s5] sm:$0x1]
    %v3060 = vld [vmem:[%s6] sm:$0x1]
    %v3061 = vld [vmem:[#allocation2] sm:$0xf]
    %v3062 = vld [vmem:[#allocation2 + $0x8] sm:$0xf]
    %v3063 = vld [vmem:[#allocation2 + $0x10] sm:$0xf]
    %v3064 = vld [vmem:[#allocation2 + $0x18] sm:$0xf]
    %v3065 = vld [vmem:[#allocation2 + $0x20] sm:$0xf]
    %v3066 = vld [vmem:[#allocation2 + $0x28] sm:$0xf]
    %v3067 = vld [vmem:[#allocation2 + $0x30] sm:$0xf]
    %v3068 = vld [vmem:[#allocation2 + $0x38] sm:$0xf]
    %v3069 = vld [vmem:[#allocation2 + $0x50] sm:$0xf]
    %v3070 = vld [vmem:[#allocation2 + $0x58] sm:$0xf]
    %v3071 = vld [vmem:[#allocation2 + $0x60] sm:$0xf]
    %v3072 = vld [vmem:[#allocation2 + $0x68] sm:$0xf]
    %v3073 = vld [vmem:[#allocation2 + $0x70] sm:$0xf]
    %v3074 = vld [vmem:[#allocation2 + $0x78] sm:$0xf]
    %v3075 = vld [vmem:[#allocation2 + $0x80] sm:$0xf]
    %v3076 = vld [vmem:[#allocation2 + $0x88] sm:$0xf]
    %v3093 = vunpack.c.l.b16 %v3061
    %v3094 = vunpack.c.l.b16 %v3062
    %v3095 = vunpack.c.l.b16 %v3063
    %v3096 = vunpack.c.l.b16 %v3064
    %v3097 = vunpack.c.l.b16 %v3065
    %v3098 = vunpack.c.l.b16 %v3066
    %v3099 = vunpack.c.l.b16 %v3067
    %v3100 = vunpack.c.l.b16 %v3068
    %v3101 = vunpack.c.l.b16 %v3069
    %v3102 = vunpack.c.l.b16 %v3070
    %v3103 = vunpack.c.l.b16 %v3071
    %v3104 = vunpack.c.l.b16 %v3072
    %v3105 = vunpack.c.l.b16 %v3073
    %v3106 = vunpack.c.l.b16 %v3074
    %v3107 = vunpack.c.l.b16 %v3075
    %v3108 = vunpack.c.l.b16 %v3076
    %v3109 = vpack.c.b16 %v3094, %v3093
    %v3110 = vpack.c.b16 %v3096, %v3095
    %v3111 = vpack.c.b16 %v3098, %v3097
    %v3112 = vpack.c.b16 %v3100, %v3099
    %v3113 = vpack.c.b16 %v3102, %v3101
    %v3114 = vpack.c.b16 %v3104, %v3103
    %v3115 = vpack.c.b16 %v3106, %v3105
    %v3116 = vpack.c.b16 %v3108, %v3107
    %3125 = vst.msk [vmem:[#allocation3] sm:$0xff] %vm545, %v3109
    %3126 = vst.msk [vmem:[#allocation3 + $0x18] sm:$0xff] %vm545, %v3110
    %3127 = vst.msk [vmem:[#allocation3 + $0x30] sm:$0xff] %vm545, %v3111
    %3128 = vst.msk [vmem:[#allocation3 + $0x48] sm:$0xff] %vm545, %v3112
    %3129 = vst.msk [vmem:[#allocation3 + $0x60] sm:$0xff] %vm545, %v3113
    %3130 = vst.msk [vmem:[#allocation3 + $0x78] sm:$0xff] %vm545, %v3114
    %3131 = vst.msk [vmem:[#allocation3 + $0x90] sm:$0xff] %vm545, %v3115
    %3132 = vst.msk [vmem:[#allocation3 + $0xa8] sm:$0xff] %vm545, %v3116
    %v3133 = vld [vmem:[#allocation2] sm:$0xf]
    %v3134 = vld [vmem:[#allocation2 + $0x4] sm:$0x1]
    %v3135 = vld [vmem:[#allocation2 + $0x8] sm:$0xf]
    %v3136 = vld [vmem:[#allocation2 + $0xc] sm:$0x1]
    %v3137 = vld [vmem:[#allocation2 + $0x10] sm:$0xf]
    %v3138 = vld [vmem:[#allocation2 + $0x14] sm:$0x1]
    %v3139 = vld [vmem:[#allocation2 + $0x18] sm:$0xf]
    %v3140 = vld [vmem:[#allocation2 + $0x1c] sm:$0x1]
    %v3141 = vld [vmem:[#allocation2 + $0x20] sm:$0xf]
    %v3142 = vld [vmem:[#allocation2 + $0x24] sm:$0x1]
    %v3143 = vld [vmem:[#allocation2 + $0x28] sm:$0xf]
    %v3144 = vld [vmem:[#allocation2 + $0x2c] sm:$0x1]
    %v3145 = vld [vmem:[#allocation2 + $0x30] sm:$0xf]
    %v3146 = vld [vmem:[#allocation2 + $0x34] sm:$0x1]
    %v3147 = vld [vmem:[#allocation2 + $0x38] sm:$0xf]
    %v3148 = vld [vmem:[#allocation2 + $0x3c] sm:$0x1]
    %v3149 = vld [vmem:[#allocation2 + $0x50] sm:$0xf]
    %v3150 = vld [vmem:[#allocation2 + $0x54] sm:$0x1]
    %v3151 = vld [vmem:[#allocation2 + $0x58] sm:$0xf]
    %v3152 = vld [vmem:[#allocation2 + $0x5c] sm:$0x1]
    %v3153 = vld [vmem:[#allocation2 + $0x60] sm:$0xf]
    %v3154 = vld [vmem:[#allocation2 + $0x64] sm:$0x1]
    %v3155 = vld [vmem:[#allocation2 + $0x68] sm:$0xf]
    %v3156 = vld [vmem:[#allocation2 + $0x6c] sm:$0x1]
    %v3157 = vld [vmem:[#allocation2 + $0x70] sm:$0xf]
    %v3158 = vld [vmem:[#allocation2 + $0x74] sm:$0x1]
    %v3159 = vld [vmem:[#allocation2 + $0x78] sm:$0xf]
    %v3160 = vld [vmem:[#allocation2 + $0x7c] sm:$0x1]
    %v3161 = vld [vmem:[#allocation2 + $0x80] sm:$0xf]
    %v3162 = vld [vmem:[#allocation2 + $0x84] sm:$0x1]
    %v3163 = vld [vmem:[#allocation2 + $0x88] sm:$0xf]
    %v3164 = vld [vmem:[#allocation2 + $0x8c] sm:$0x1]
    %v3166 = vshrl.u32 %v3133, 16
    %v3168 = vrot.slane %v3166, 4
    %v3169 = vshll.u32 %v3133, 16
    %v3171 = vrot.slane %v3169, 5
    %v3172 = vor.u32 %v3168, %v3171
    %v3173 = vrot.slane %v3172, 4
    %v3175 = vshll.u32 %v3134, 16
    %v3177 = vrot.slane %v3175, 5
    %v3178 = vsel %vm588, %v3173, %v3177
    %v3180 = vshrl.u32 %v3135, 16
    %v3182 = vrot.slane %v3180, 4
    %v3183 = vshll.u32 %v3135, 16
    %v3185 = vrot.slane %v3183, 5
    %v3186 = vor.u32 %v3182, %v3185
    %v3187 = vrot.slane %v3186, 4
    %v3189 = vshll.u32 %v3136, 16
    %v3191 = vrot.slane %v3189, 5
    %v3192 = vsel %vm588, %v3187, %v3191
    %v3194 = vshrl.u32 %v3137, 16
    %v3196 = vrot.slane %v3194, 4
    %v3197 = vshll.u32 %v3137, 16
    %v3199 = vrot.slane %v3197, 5
    %v3200 = vor.u32 %v3196, %v3199
    %v3201 = vrot.slane %v3200, 4
    %v3203 = vshll.u32 %v3138, 16
    %v3205 = vrot.slane %v3203, 5
    %v3206 = vsel %vm588, %v3201, %v3205
    %v3208 = vshrl.u32 %v3139, 16
    %v3210 = vrot.slane %v3208, 4
    %v3211 = vshll.u32 %v3139, 16
    %v3213 = vrot.slane %v3211, 5
    %v3214 = vor.u32 %v3210, %v3213
    %v3215 = vrot.slane %v3214, 4
    %v3217 = vshll.u32 %v3140, 16
    %v3219 = vrot.slane %v3217, 5
    %v3220 = vsel %vm588, %v3215, %v3219
    %v3222 = vshrl.u32 %v3141, 16
    %v3224 = vrot.slane %v3222, 4
    %v3225 = vshll.u32 %v3141, 16
    %v3227 = vrot.slane %v3225, 5
    %v3228 = vor.u32 %v3224, %v3227
    %v3229 = vrot.slane %v3228, 4
    %v3231 = vshll.u32 %v3142, 16
    %v3233 = vrot.slane %v3231, 5
    %v3234 = vsel %vm588, %v3229, %v3233
    %v3236 = vshrl.u32 %v3143, 16
    %v3238 = vrot.slane %v3236, 4
    %v3239 = vshll.u32 %v3143, 16
    %v3241 = vrot.slane %v3239, 5
    %v3242 = vor.u32 %v3238, %v3241
    %v3243 = vrot.slane %v3242, 4
    %v3245 = vshll.u32 %v3144, 16
    %v3247 = vrot.slane %v3245, 5
    %v3248 = vsel %vm588, %v3243, %v3247
    %v3250 = vshrl.u32 %v3145, 16
    %v3252 = vrot.slane %v3250, 4
    %v3253 = vshll.u32 %v3145, 16
    %v3255 = vrot.slane %v3253, 5
    %v3256 = vor.u32 %v3252, %v3255
    %v3257 = vrot.slane %v3256, 4
    %v3259 = vshll.u32 %v3146, 16
    %v3261 = vrot.slane %v3259, 5
    %v3262 = vsel %vm588, %v3257, %v3261
    %v3264 = vshrl.u32 %v3147, 16
    %v3266 = vrot.slane %v3264, 4
    %v3267 = vshll.u32 %v3147, 16
    %v3269 = vrot.slane %v3267, 5
    %v3270 = vor.u32 %v3266, %v3269
    %v3271 = vrot.slane %v3270, 4
    %v3273 = vshll.u32 %v3148, 16
    %v3275 = vrot.slane %v3273, 5
    %v3276 = vsel %vm588, %v3271, %v3275
    %v3278 = vshrl.u32 %v3149, 16
    %v3280 = vrot.slane %v3278, 4
    %v3281 = vshll.u32 %v3149, 16
    %v3283 = vrot.slane %v3281, 5
    %v3284 = vor.u32 %v3280, %v3283
    %v3285 = vrot.slane %v3284, 4
    %v3287 = vshll.u32 %v3150, 16
    %v3289 = vrot.slane %v3287, 5
    %v3290 = vsel %vm588, %v3285, %v3289
    %v3292 = vshrl.u32 %v3151, 16
    %v3294 = vrot.slane %v3292, 4
    %v3295 = vshll.u32 %v3151, 16
    %v3297 = vrot.slane %v3295, 5
    %v3298 = vor.u32 %v3294, %v3297
    %v3299 = vrot.slane %v3298, 4
    %v3301 = vshll.u32 %v3152, 16
    %v3303 = vrot.slane %v3301, 5
    %v3304 = vsel %vm588, %v3299, %v3303
    %v3306 = vshrl.u32 %v3153, 16
    %v3308 = vrot.slane %v3306, 4
    %v3309 = vshll.u32 %v3153, 16
    %v3311 = vrot.slane %v3309, 5
    %v3312 = vor.u32 %v3308, %v3311
    %v3313 = vrot.slane %v3312, 4
    %v3315 = vshll.u32 %v3154, 16
    %v3317 = vrot.slane %v3315, 5
    %v3318 = vsel %vm588, %v3313, %v3317
    %v3320 = vshrl.u32 %v3155, 16
    %v3322 = vrot.slane %v3320, 4
    %v3323 = vshll.u32 %v3155, 16
    %v3325 = vrot.slane %v3323, 5
    %v3326 = vor.u32 %v3322, %v3325
    %v3327 = vrot.slane %v3326, 4
    %v3329 = vshll.u32 %v3156, 16
    %v3331 = vrot.slane %v3329, 5
    %v3332 = vsel %vm588, %v3327, %v3331
    %v3334 = vshrl.u32 %v3157, 16
    %v3336 = vrot.slane %v3334, 4
    %v3337 = vshll.u32 %v3157, 16
    %v3339 = vrot.slane %v3337, 5
    %v3340 = vor.u32 %v3336, %v3339
    %v3341 = vrot.slane %v3340, 4
    %v3343 = vshll.u32 %v3158, 16
    %v3345 = vrot.slane %v3343, 5
    %v3346 = vsel %vm588, %v3341, %v3345
    %v3348 = vshrl.u32 %v3159, 16
    %v3350 = vrot.slane %v3348, 4
    %v3351 = vshll.u32 %v3159, 16
    %v3353 = vrot.slane %v3351, 5
    %v3354 = vor.u32 %v3350, %v3353
    %v3355 = vrot.slane %v3354, 4
    %v3357 = vshll.u32 %v3160, 16
    %v3359 = vrot.slane %v3357, 5
    %v3360 = vsel %vm588, %v3355, %v3359
    %v3362 = vshrl.u32 %v3161, 16
    %v3364 = vrot.slane %v3362, 4
    %v3365 = vshll.u32 %v3161, 16
    %v3367 = vrot.slane %v3365, 5
    %v3368 = vor.u32 %v3364, %v3367
    %v3369 = vrot.slane %v3368, 4
    %v3371 = vshll.u32 %v3162, 16
    %v3373 = vrot.slane %v3371, 5
    %v3374 = vsel %vm588, %v3369, %v3373
    %v3376 = vshrl.u32 %v3163, 16
    %v3378 = vrot.slane %v3376, 4
    %v3379 = vshll.u32 %v3163, 16
    %v3381 = vrot.slane %v3379, 5
    %v3382 = vor.u32 %v3378, %v3381
    %v3383 = vrot.slane %v3382, 4
    %v3385 = vshll.u32 %v3164, 16
    %v3387 = vrot.slane %v3385, 5
    %v3388 = vsel %vm588, %v3383, %v3387
    %v3389 = vunpack.c.l.b16 %v3178
    %v3390 = vunpack.c.l.b16 %v3192
    %v3391 = vunpack.c.l.b16 %v3206
    %v3392 = vunpack.c.l.b16 %v3220
    %v3393 = vunpack.c.l.b16 %v3234
    %v3394 = vunpack.c.l.b16 %v3248
    %v3395 = vunpack.c.l.b16 %v3262
    %v3396 = vunpack.c.l.b16 %v3276
    %v3397 = vunpack.c.l.b16 %v3290
    %v3398 = vunpack.c.l.b16 %v3304
    %v3399 = vunpack.c.l.b16 %v3318
    %v3400 = vunpack.c.l.b16 %v3332
    %v3401 = vunpack.c.l.b16 %v3346
    %v3402 = vunpack.c.l.b16 %v3360
    %v3403 = vunpack.c.l.b16 %v3374
    %v3404 = vunpack.c.l.b16 %v3388
    %v3405 = vpack.c.b16 %v3390, %v3389
    %v3406 = vpack.c.b16 %v3392, %v3391
    %v3407 = vpack.c.b16 %v3394, %v3393
    %v3408 = vpack.c.b16 %v3396, %v3395
    %v3409 = vpack.c.b16 %v3398, %v3397
    %v3410 = vpack.c.b16 %v3400, %v3399
    %v3411 = vpack.c.b16 %v3402, %v3401
    %v3412 = vpack.c.b16 %v3404, %v3403
    %3413 = vrot.lane.b32.xlu0 %v3405, 32
    %v3414 = vpop.permute.xlu0 %3413
    %3415 = vrot.lane.b32.xlu0 %v3406, 32
    %v3416 = vpop.permute.xlu0 %3415
    %3417 = vrot.lane.b32.xlu0 %v3407, 32
    %v3418 = vpop.permute.xlu0 %3417
    %3419 = vrot.lane.b32.xlu0 %v3408, 32
    %v3420 = vpop.permute.xlu0 %3419
    %3421 = vrot.lane.b32.xlu0 %v3409, 32
    %v3422 = vpop.permute.xlu0 %3421
    %3423 = vrot.lane.b32.xlu0 %v3410, 32
    %v3424 = vpop.permute.xlu0 %3423
    %3425 = vrot.lane.b32.xlu0 %v3411, 32
    %v3426 = vpop.permute.xlu0 %3425
    %3427 = vrot.lane.b32.xlu0 %v3412, 32
    %v3428 = vpop.permute.xlu0 %3427
    %3437 = vst.msk [vmem:[#allocation3] sm:$0xff] %vm861, %v3414
    %3438 = vst.msk [vmem:[#allocation3 + $0x18] sm:$0xff] %vm861, %v3416
    %3439 = vst.msk [vmem:[#allocation3 + $0x30] sm:$0xff] %vm861, %v3418
    %3440 = vst.msk [vmem:[#allocation3 + $0x48] sm:$0xff] %vm861, %v3420
    %3441 = vst.msk [vmem:[#allocation3 + $0x60] sm:$0xff] %vm861, %v3422
    %3442 = vst.msk [vmem:[#allocation3 + $0x78] sm:$0xff] %vm861, %v3424
    %3443 = vst.msk [vmem:[#allocation3 + $0x90] sm:$0xff] %vm861, %v3426
    %3444 = vst.msk [vmem:[#allocation3 + $0xa8] sm:$0xff] %vm861, %v3428
    %v3445 = vld [vmem:[#allocation2] sm:$0xe]
    %v3446 = vld [vmem:[#allocation2 + $0x4] sm:$0x1]
    %v3447 = vld [vmem:[#allocation2 + $0x8] sm:$0xe]
    %v3448 = vld [vmem:[#allocation2 + $0xc] sm:$0x1]
    %v3449 = vld [vmem:[#allocation2 + $0x10] sm:$0xe]
    %v3450 = vld [vmem:[#allocation2 + $0x14] sm:$0x1]
    %v3451 = vld [vmem:[#allocation2 + $0x18] sm:$0xe]
    %v3452 = vld [vmem:[#allocation2 + $0x1c] sm:$0x1]
    %v3453 = vld [vmem:[#allocation2 + $0x20] sm:$0xe]
    %v3454 = vld [vmem:[#allocation2 + $0x24] sm:$0x1]
    %v3455 = vld [vmem:[#allocation2 + $0x28] sm:$0xe]
    %v3456 = vld [vmem:[#allocation2 + $0x2c] sm:$0x1]
    %v3457 = vld [vmem:[#allocation2 + $0x30] sm:$0xe]
    %v3458 = vld [vmem:[#allocation2 + $0x34] sm:$0x1]
    %v3459 = vld [vmem:[#allocation2 + $0x38] sm:$0xe]
    %v3460 = vld [vmem:[#allocation2 + $0x3c] sm:$0x1]
    %v3461 = vld [vmem:[#allocation2 + $0x50] sm:$0xe]
    %v3462 = vld [vmem:[#allocation2 + $0x54] sm:$0x1]
    %v3463 = vld [vmem:[#allocation2 + $0x58] sm:$0xe]
    %v3464 = vld [vmem:[#allocation2 + $0x5c] sm:$0x1]
    %v3465 = vld [vmem:[#allocation2 + $0x60] sm:$0xe]
    %v3466 = vld [vmem:[#allocation2 + $0x64] sm:$0x1]
    %v3467 = vld [vmem:[#allocation2 + $0x68] sm:$0xe]
    %v3468 = vld [vmem:[#allocation2 + $0x6c] sm:$0x1]
    %v3469 = vld [vmem:[#allocation2 + $0x70] sm:$0xe]
    %v3470 = vld [vmem:[#allocation2 + $0x74] sm:$0x1]
    %v3471 = vld [vmem:[#allocation2 + $0x78] sm:$0xe]
    %v3472 = vld [vmem:[#allocation2 + $0x7c] sm:$0x1]
    %v3473 = vld [vmem:[#allocation2 + $0x80] sm:$0xe]
    %v3474 = vld [vmem:[#allocation2 + $0x84] sm:$0x1]
    %v3475 = vld [vmem:[#allocation2 + $0x88] sm:$0xe]
    %v3476 = vld [vmem:[#allocation2 + $0x8c] sm:$0x1]
    %v3509 = vrot.slane %v3445, 5
    %v3510 = vrot.slane %v3509, 4
    %v3511 = vrot.slane %v3446, 5
    %v3512 = vsel %vm936, %v3510, %v3511
    %v3513 = vrot.slane %v3447, 5
    %v3514 = vrot.slane %v3513, 4
    %v3515 = vrot.slane %v3448, 5
    %v3516 = vsel %vm936, %v3514, %v3515
    %v3517 = vrot.slane %v3449, 5
    %v3518 = vrot.slane %v3517, 4
    %v3519 = vrot.slane %v3450, 5
    %v3520 = vsel %vm936, %v3518, %v3519
    %v3521 = vrot.slane %v3451, 5
    %v3522 = vrot.slane %v3521, 4
    %v3523 = vrot.slane %v3452, 5
    %v3524 = vsel %vm936, %v3522, %v3523
    %v3525 = vrot.slane %v3453, 5
    %v3526 = vrot.slane %v3525, 4
    %v3527 = vrot.slane %v3454, 5
    %v3528 = vsel %vm936, %v3526, %v3527
    %v3529 = vrot.slane %v3455, 5
    %v3530 = vrot.slane %v3529, 4
    %v3531 = vrot.slane %v3456, 5
    %v3532 = vsel %vm936, %v3530, %v3531
    %v3533 = vrot.slane %v3457, 5
    %v3534 = vrot.slane %v3533, 4
    %v3535 = vrot.slane %v3458, 5
    %v3536 = vsel %vm936, %v3534, %v3535
    %v3537 = vrot.slane %v3459, 5
    %v3538 = vrot.slane %v3537, 4
    %v3539 = vrot.slane %v3460, 5
    %v3540 = vsel %vm936, %v3538, %v3539
    %v3541 = vrot.slane %v3461, 5
    %v3542 = vrot.slane %v3541, 4
    %v3543 = vrot.slane %v3462, 5
    %v3544 = vsel %vm936, %v3542, %v3543
    %v3545 = vrot.slane %v3463, 5
    %v3546 = vrot.slane %v3545, 4
    %v3547 = vrot.slane %v3464, 5
    %v3548 = vsel %vm936, %v3546, %v3547
    %v3549 = vrot.slane %v3465, 5
    %v3550 = vrot.slane %v3549, 4
    %v3551 = vrot.slane %v3466, 5
    %v3552 = vsel %vm936, %v3550, %v3551
    %v3553 = vrot.slane %v3467, 5
    %v3554 = vrot.slane %v3553, 4
    %v3555 = vrot.slane %v3468, 5
    %v3556 = vsel %vm936, %v3554, %v3555
    %v3557 = vrot.slane %v3469, 5
    %v3558 = vrot.slane %v3557, 4
    %v3559 = vrot.slane %v3470, 5
    %v3560 = vsel %vm936, %v3558, %v3559
    %v3561 = vrot.slane %v3471, 5
    %v3562 = vrot.slane %v3561, 4
    %v3563 = vrot.slane %v3472, 5
    %v3564 = vsel %vm936, %v3562, %v3563
    %v3565 = vrot.slane %v3473, 5
    %v3566 = vrot.slane %v3565, 4
    %v3567 = vrot.slane %v3474, 5
    %v3568 = vsel %vm936, %v3566, %v3567
    %v3569 = vrot.slane %v3475, 5
    %v3570 = vrot.slane %v3569, 4
    %v3571 = vrot.slane %v3476, 5
    %v3572 = vsel %vm936, %v3570, %v3571
    %v3573 = vunpack.c.l.b16 %v3512
    %v3574 = vunpack.c.l.b16 %v3516
    %v3575 = vunpack.c.l.b16 %v3520
    %v3576 = vunpack.c.l.b16 %v3524
    %v3577 = vunpack.c.l.b16 %v3528
    %v3578 = vunpack.c.l.b16 %v3532
    %v3579 = vunpack.c.l.b16 %v3536
    %v3580 = vunpack.c.l.b16 %v3540
    %v3581 = vunpack.c.l.b16 %v3544
    %v3582 = vunpack.c.l.b16 %v3548
    %v3583 = vunpack.c.l.b16 %v3552
    %v3584 = vunpack.c.l.b16 %v3556
    %v3585 = vunpack.c.l.b16 %v3560
    %v3586 = vunpack.c.l.b16 %v3564
    %v3587 = vunpack.c.l.b16 %v3568
    %v3588 = vunpack.c.l.b16 %v3572
    %v3589 = vpack.c.b16 %v3574, %v3573
    %v3590 = vpack.c.b16 %v3576, %v3575
    %v3591 = vpack.c.b16 %v3578, %v3577
    %v3592 = vpack.c.b16 %v3580, %v3579
    %v3593 = vpack.c.b16 %v3582, %v3581
    %v3594 = vpack.c.b16 %v3584, %v3583
    %v3595 = vpack.c.b16 %v3586, %v3585
    %v3596 = vpack.c.b16 %v3588, %v3587
    %3597 = vrot.lane.b32.xlu0 %v3589, 64
    %v3598 = vpop.permute.xlu0 %3597
    %3599 = vrot.lane.b32.xlu0 %v3590, 64
    %v3600 = vpop.permute.xlu0 %3599
    %3601 = vrot.lane.b32.xlu0 %v3591, 64
    %v3602 = vpop.permute.xlu0 %3601
    %3603 = vrot.lane.b32.xlu0 %v3592, 64
    %v3604 = vpop.permute.xlu0 %3603
    %3605 = vrot.lane.b32.xlu0 %v3593, 64
    %v3606 = vpop.permute.xlu0 %3605
    %3607 = vrot.lane.b32.xlu0 %v3594, 64
    %v3608 = vpop.permute.xlu0 %3607
    %3609 = vrot.lane.b32.xlu0 %v3595, 64
    %v3610 = vpop.permute.xlu0 %3609
    %3611 = vrot.lane.b32.xlu0 %v3596, 64
    %v3612 = vpop.permute.xlu0 %3611
    %3621 = vst.msk [vmem:[#allocation3] sm:$0xff] %vm1049, %v3598
    %3622 = vst.msk [vmem:[#allocation3 + $0x18] sm:$0xff] %vm1049, %v3600
    %3623 = vst.msk [vmem:[#allocation3 + $0x30] sm:$0xff] %vm1049, %v3602
    %3624 = vst.msk [vmem:[#allocation3 + $0x48] sm:$0xff] %vm1049, %v3604
    %3625 = vst.msk [vmem:[#allocation3 + $0x60] sm:$0xff] %vm1049, %v3606
    %3626 = vst.msk [vmem:[#allocation3 + $0x78] sm:$0xff] %vm1049, %v3608
    %3627 = vst.msk [vmem:[#allocation3 + $0x90] sm:$0xff] %vm1049, %v3610
    %3628 = vst.msk [vmem:[#allocation3 + $0xa8] sm:$0xff] %vm1049, %v3612
    %v3629 = vld [vmem:[%s39] sm:$0xf]
    %v3630 = vld [vmem:[%s39 + $0x8] sm:$0xf]
    %v3631 = vld [vmem:[%s39 + $0x10] sm:$0xf]
    %v3632 = vld [vmem:[%s39 + $0x18] sm:$0xf]
    %v3633 = vld [vmem:[%s39 + $0x20] sm:$0xf]
    %v3634 = vld [vmem:[%s39 + $0x28] sm:$0xf]
    %v3635 = vld [vmem:[%s39 + $0x30] sm:$0xf]
    %v3636 = vld [vmem:[%s39 + $0x38] sm:$0xf]
    %v3637 = vld [vmem:[%s39 + $0x50] sm:$0xf]
    %v3638 = vld [vmem:[%s39 + $0x58] sm:$0xf]
    %v3639 = vld [vmem:[%s39 + $0x60] sm:$0xf]
    %v3640 = vld [vmem:[%s39 + $0x68] sm:$0xf]
    %v3641 = vld [vmem:[%s39 + $0x70] sm:$0xf]
    %v3642 = vld [vmem:[%s39 + $0x78] sm:$0xf]
    %v3643 = vld [vmem:[%s39 + $0x80] sm:$0xf]
    %v3644 = vld [vmem:[%s39 + $0x88] sm:$0xf]
    %v3661 = vunpack.c.l.b16 %v3629
    %v3662 = vunpack.c.l.b16 %v3630
    %v3663 = vunpack.c.l.b16 %v3631
    %v3664 = vunpack.c.l.b16 %v3632
    %v3665 = vunpack.c.l.b16 %v3633
    %v3666 = vunpack.c.l.b16 %v3634
    %v3667 = vunpack.c.l.b16 %v3635
    %v3668 = vunpack.c.l.b16 %v3636
    %v3669 = vunpack.c.l.b16 %v3637
    %v3670 = vunpack.c.l.b16 %v3638
    %v3671 = vunpack.c.l.b16 %v3639
    %v3672 = vunpack.c.l.b16 %v3640
    %v3673 = vunpack.c.l.b16 %v3641
    %v3674 = vunpack.c.l.b16 %v3642
    %v3675 = vunpack.c.l.b16 %v3643
    %v3676 = vunpack.c.l.b16 %v3644
    %v3677 = vpack.c.b16 %v3662, %v3661
    %v3678 = vpack.c.b16 %v3664, %v3663
    %v3679 = vpack.c.b16 %v3666, %v3665
    %v3680 = vpack.c.b16 %v3668, %v3667
    %v3681 = vpack.c.b16 %v3670, %v3669
    %v3682 = vpack.c.b16 %v3672, %v3671
    %v3683 = vpack.c.b16 %v3674, %v3673
    %v3684 = vpack.c.b16 %v3676, %v3675
    %3685 = vrot.lane.b32.xlu0 %v3677, 96
    %v3686 = vpop.permute.xlu0 %3685
    %3687 = vrot.lane.b32.xlu0 %v3678, 96
    %v3688 = vpop.permute.xlu0 %3687
    %3689 = vrot.lane.b32.xlu0 %v3679, 96
    %v3690 = vpop.permute.xlu0 %3689
    %3691 = vrot.lane.b32.xlu0 %v3680, 96
    %v3692 = vpop.permute.xlu0 %3691
    %3693 = vrot.lane.b32.xlu0 %v3681, 96
    %v3694 = vpop.permute.xlu0 %3693
    %3695 = vrot.lane.b32.xlu0 %v3682, 96
    %v3696 = vpop.permute.xlu0 %3695
    %3697 = vrot.lane.b32.xlu0 %v3683, 96
    %v3698 = vpop.permute.xlu0 %3697
    %3699 = vrot.lane.b32.xlu0 %v3684, 96
    %v3700 = vpop.permute.xlu0 %3699
    %3709 = vst.msk [vmem:[#allocation3] sm:$0xff] %vm1138, %v3686
    %3710 = vst.msk [vmem:[#allocation3 + $0x18] sm:$0xff] %vm1138, %v3688
    %3711 = vst.msk [vmem:[#allocation3 + $0x30] sm:$0xff] %vm1138, %v3690
    %3712 = vst.msk [vmem:[#allocation3 + $0x48] sm:$0xff] %vm1138, %v3692
    %3713 = vst.msk [vmem:[#allocation3 + $0x60] sm:$0xff] %vm1138, %v3694
    %3714 = vst.msk [vmem:[#allocation3 + $0x78] sm:$0xff] %vm1138, %v3696
    %3715 = vst.msk [vmem:[#allocation3 + $0x90] sm:$0xff] %vm1138, %v3698
    %3716 = vst.msk [vmem:[#allocation3 + $0xa8] sm:$0xff] %vm1138, %v3700
    %v3717 = vld [vmem:[%s39] sm:$0xf]
    %v3718 = vld [vmem:[%s39 + $0x4] sm:$0x1]
    %v3719 = vld [vmem:[%s39 + $0x8] sm:$0xf]
    %v3720 = vld [vmem:[%s39 + $0xc] sm:$0x1]
    %v3721 = vld [vmem:[%s39 + $0x10] sm:$0xf]
    %v3722 = vld [vmem:[%s39 + $0x14] sm:$0x1]
    %v3723 = vld [vmem:[%s39 + $0x18] sm:$0xf]
    %v3724 = vld [vmem:[%s39 + $0x1c] sm:$0x1]
    %v3725 = vld [vmem:[%s39 + $0x20] sm:$0xf]
    %v3726 = vld [vmem:[%s39 + $0x24] sm:$0x1]
    %v3727 = vld [vmem:[%s39 + $0x28] sm:$0xf]
    %v3728 = vld [vmem:[%s39 + $0x2c] sm:$0x1]
    %v3729 = vld [vmem:[%s39 + $0x30] sm:$0xf]
    %v3730 = vld [vmem:[%s39 + $0x34] sm:$0x1]
    %v3731 = vld [vmem:[%s39 + $0x38] sm:$0xf]
    %v3732 = vld [vmem:[%s39 + $0x3c] sm:$0x1]
    %v3733 = vld [vmem:[%s39 + $0x50] sm:$0xf]
    %v3734 = vld [vmem:[%s39 + $0x54] sm:$0x1]
    %v3735 = vld [vmem:[%s39 + $0x58] sm:$0xf]
    %v3736 = vld [vmem:[%s39 + $0x5c] sm:$0x1]
    %v3737 = vld [vmem:[%s39 + $0x60] sm:$0xf]
    %v3738 = vld [vmem:[%s39 + $0x64] sm:$0x1]
    %v3739 = vld [vmem:[%s39 + $0x68] sm:$0xf]
    %v3740 = vld [vmem:[%s39 + $0x6c] sm:$0x1]
    %v3741 = vld [vmem:[%s39 + $0x70] sm:$0xf]
    %v3742 = vld [vmem:[%s39 + $0x74] sm:$0x1]
    %v3743 = vld [vmem:[%s39 + $0x78] sm:$0xf]
    %v3744 = vld [vmem:[%s39 + $0x7c] sm:$0x1]
    %v3745 = vld [vmem:[%s39 + $0x80] sm:$0xf]
    %v3746 = vld [vmem:[%s39 + $0x84] sm:$0x1]
    %v3747 = vld [vmem:[%s39 + $0x88] sm:$0xf]
    %v3748 = vld [vmem:[%s39 + $0x8c] sm:$0x1]
    %v3750 = vshrl.u32 %v3717, 16
    %v3752 = vrot.slane %v3750, 4
    %v3753 = vshll.u32 %v3717, 16
    %v3755 = vrot.slane %v3753, 5
    %v3756 = vor.u32 %v3752, %v3755
    %v3757 = vrot.slane %v3756, 4
    %v3759 = vshll.u32 %v3718, 16
    %v3761 = vrot.slane %v3759, 5
    %v3762 = vsel %vm588, %v3757, %v3761
    %v3764 = vshrl.u32 %v3719, 16
    %v3766 = vrot.slane %v3764, 4
    %v3767 = vshll.u32 %v3719, 16
    %v3769 = vrot.slane %v3767, 5
    %v3770 = vor.u32 %v3766, %v3769
    %v3771 = vrot.slane %v3770, 4
    %v3773 = vshll.u32 %v3720, 16
    %v3775 = vrot.slane %v3773, 5
    %v3776 = vsel %vm588, %v3771, %v3775
    %v3778 = vshrl.u32 %v3721, 16
    %v3780 = vrot.slane %v3778, 4
    %v3781 = vshll.u32 %v3721, 16
    %v3783 = vrot.slane %v3781, 5
    %v3784 = vor.u32 %v3780, %v3783
    %v3785 = vrot.slane %v3784, 4
    %v3787 = vshll.u32 %v3722, 16
    %v3789 = vrot.slane %v3787, 5
    %v3790 = vsel %vm588, %v3785, %v3789
    %v3792 = vshrl.u32 %v3723, 16
    %v3794 = vrot.slane %v3792, 4
    %v3795 = vshll.u32 %v3723, 16
    %v3797 = vrot.slane %v3795, 5
    %v3798 = vor.u32 %v3794, %v3797
    %v3799 = vrot.slane %v3798, 4
    %v3801 = vshll.u32 %v3724, 16
    %v3803 = vrot.slane %v3801, 5
    %v3804 = vsel %vm588, %v3799, %v3803
    %v3806 = vshrl.u32 %v3725, 16
    %v3808 = vrot.slane %v3806, 4
    %v3809 = vshll.u32 %v3725, 16
    %v3811 = vrot.slane %v3809, 5
    %v3812 = vor.u32 %v3808, %v3811
    %v3813 = vrot.slane %v3812, 4
    %v3815 = vshll.u32 %v3726, 16
    %v3817 = vrot.slane %v3815, 5
    %v3818 = vsel %vm588, %v3813, %v3817
    %v3820 = vshrl.u32 %v3727, 16
    %v3822 = vrot.slane %v3820, 4
    %v3823 = vshll.u32 %v3727, 16
    %v3825 = vrot.slane %v3823, 5
    %v3826 = vor.u32 %v3822, %v3825
    %v3827 = vrot.slane %v3826, 4
    %v3829 = vshll.u32 %v3728, 16
    %v3831 = vrot.slane %v3829, 5
    %v3832 = vsel %vm588, %v3827, %v3831
    %v3834 = vshrl.u32 %v3729, 16
    %v3836 = vrot.slane %v3834, 4
    %v3837 = vshll.u32 %v3729, 16
    %v3839 = vrot.slane %v3837, 5
    %v3840 = vor.u32 %v3836, %v3839
    %v3841 = vrot.slane %v3840, 4
    %v3843 = vshll.u32 %v3730, 16
    %v3845 = vrot.slane %v3843, 5
    %v3846 = vsel %vm588, %v3841, %v3845
    %v3848 = vshrl.u32 %v3731, 16
    %v3850 = vrot.slane %v3848, 4
    %v3851 = vshll.u32 %v3731, 16
    %v3853 = vrot.slane %v3851, 5
    %v3854 = vor.u32 %v3850, %v3853
    %v3855 = vrot.slane %v3854, 4
    %v3857 = vshll.u32 %v3732, 16
    %v3859 = vrot.slane %v3857, 5
    %v3860 = vsel %vm588, %v3855, %v3859
    %v3862 = vshrl.u32 %v3733, 16
    %v3864 = vrot.slane %v3862, 4
    %v3865 = vshll.u32 %v3733, 16
    %v3867 = vrot.slane %v3865, 5
    %v3868 = vor.u32 %v3864, %v3867
    %v3869 = vrot.slane %v3868, 4
    %v3871 = vshll.u32 %v3734, 16
    %v3873 = vrot.slane %v3871, 5
    %v3874 = vsel %vm588, %v3869, %v3873
    %v3876 = vshrl.u32 %v3735, 16
    %v3878 = vrot.slane %v3876, 4
    %v3879 = vshll.u32 %v3735, 16
    %v3881 = vrot.slane %v3879, 5
    %v3882 = vor.u32 %v3878, %v3881
    %v3883 = vrot.slane %v3882, 4
    %v3885 = vshll.u32 %v3736, 16
    %v3887 = vrot.slane %v3885, 5
    %v3888 = vsel %vm588, %v3883, %v3887
    %v3890 = vshrl.u32 %v3737, 16
    %v3892 = vrot.slane %v3890, 4
    %v3893 = vshll.u32 %v3737, 16
    %v3895 = vrot.slane %v3893, 5
    %v3896 = vor.u32 %v3892, %v3895
    %v3897 = vrot.slane %v3896, 4
    %v3899 = vshll.u32 %v3738, 16
    %v3901 = vrot.slane %v3899, 5
    %v3902 = vsel %vm588, %v3897, %v3901
    %v3904 = vshrl.u32 %v3739, 16
    %v3906 = vrot.slane %v3904, 4
    %v3907 = vshll.u32 %v3739, 16
    %v3909 = vrot.slane %v3907, 5
    %v3910 = vor.u32 %v3906, %v3909
    %v3911 = vrot.slane %v3910, 4
    %v3913 = vshll.u32 %v3740, 16
    %v3915 = vrot.slane %v3913, 5
    %v3916 = vsel %vm588, %v3911, %v3915
    %v3918 = vshrl.u32 %v3741, 16
    %v3920 = vrot.slane %v3918, 4
    %v3921 = vshll.u32 %v3741, 16
    %v3923 = vrot.slane %v3921, 5
    %v3924 = vor.u32 %v3920, %v3923
    %v3925 = vrot.slane %v3924, 4
    %v3927 = vshll.u32 %v3742, 16
    %v3929 = vrot.slane %v3927, 5
    %v3930 = vsel %vm588, %v3925, %v3929
    %v3932 = vshrl.u32 %v3743, 16
    %v3934 = vrot.slane %v3932, 4
    %v3935 = vshll.u32 %v3743, 16
    %v3937 = vrot.slane %v3935, 5
    %v3938 = vor.u32 %v3934, %v3937
    %v3939 = vrot.slane %v3938, 4
    %v3941 = vshll.u32 %v3744, 16
    %v3943 = vrot.slane %v3941, 5
    %v3944 = vsel %vm588, %v3939, %v3943
    %v3946 = vshrl.u32 %v3745, 16
    %v3948 = vrot.slane %v3946, 4
    %v3949 = vshll.u32 %v3745, 16
    %v3951 = vrot.slane %v3949, 5
    %v3952 = vor.u32 %v3948, %v3951
    %v3953 = vrot.slane %v3952, 4
    %v3955 = vshll.u32 %v3746, 16
    %v3957 = vrot.slane %v3955, 5
    %v3958 = vsel %vm588, %v3953, %v3957
    %v3960 = vshrl.u32 %v3747, 16
    %v3962 = vrot.slane %v3960, 4
    %v3963 = vshll.u32 %v3747, 16
    %v3965 = vrot.slane %v3963, 5
    %v3966 = vor.u32 %v3962, %v3965
    %v3967 = vrot.slane %v3966, 4
    %v3969 = vshll.u32 %v3748, 16
    %v3971 = vrot.slane %v3969, 5
    %v3972 = vsel %vm588, %v3967, %v3971
    %v3973 = vunpack.c.l.b16 %v3762
    %v3974 = vunpack.c.l.b16 %v3776
    %v3975 = vunpack.c.l.b16 %v3790
    %v3976 = vunpack.c.l.b16 %v3804
    %v3977 = vunpack.c.l.b16 %v3818
    %v3978 = vunpack.c.l.b16 %v3832
    %v3979 = vunpack.c.l.b16 %v3846
    %v3980 = vunpack.c.l.b16 %v3860
    %v3981 = vunpack.c.l.b16 %v3874
    %v3982 = vunpack.c.l.b16 %v3888
    %v3983 = vunpack.c.l.b16 %v3902
    %v3984 = vunpack.c.l.b16 %v3916
    %v3985 = vunpack.c.l.b16 %v3930
    %v3986 = vunpack.c.l.b16 %v3944
    %v3987 = vunpack.c.l.b16 %v3958
    %v3988 = vunpack.c.l.b16 %v3972
    %v3989 = vpack.c.b16 %v3974, %v3973
    %v3990 = vpack.c.b16 %v3976, %v3975
    %v3991 = vpack.c.b16 %v3978, %v3977
    %v3992 = vpack.c.b16 %v3980, %v3979
    %v3993 = vpack.c.b16 %v3982, %v3981
    %v3994 = vpack.c.b16 %v3984, %v3983
    %v3995 = vpack.c.b16 %v3986, %v3985
    %v3996 = vpack.c.b16 %v3988, %v3987
    %4005 = vst.msk [vmem:[#allocation3 + $0x8] sm:$0xff] %vm545, %v3989
    %4006 = vst.msk [vmem:[#allocation3 + $0x20] sm:$0xff] %vm545, %v3990
    %4007 = vst.msk [vmem:[#allocation3 + $0x38] sm:$0xff] %vm545, %v3991
    %4008 = vst.msk [vmem:[#allocation3 + $0x50] sm:$0xff] %vm545, %v3992
    %4009 = vst.msk [vmem:[#allocation3 + $0x68] sm:$0xff] %vm545, %v3993
    %4010 = vst.msk [vmem:[#allocation3 + $0x80] sm:$0xff] %vm545, %v3994
    %4011 = vst.msk [vmem:[#allocation3 + $0x98] sm:$0xff] %vm545, %v3995
    %4012 = vst.msk [vmem:[#allocation3 + $0xb0] sm:$0xff] %vm545, %v3996
    %v4013 = vld [vmem:[%s39] sm:$0xe]
    %v4014 = vld [vmem:[%s39 + $0x4] sm:$0x1]
    %v4015 = vld [vmem:[%s39 + $0x8] sm:$0xe]
    %v4016 = vld [vmem:[%s39 + $0xc] sm:$0x1]
    %v4017 = vld [vmem:[%s39 + $0x10] sm:$0xe]
    %v4018 = vld [vmem:[%s39 + $0x14] sm:$0x1]
    %v4019 = vld [vmem:[%s39 + $0x18] sm:$0xe]
    %v4020 = vld [vmem:[%s39 + $0x1c] sm:$0x1]
    %v4021 = vld [vmem:[%s39 + $0x20] sm:$0xe]
    %v4022 = vld [vmem:[%s39 + $0x24] sm:$0x1]
    %v4023 = vld [vmem:[%s39 + $0x28] sm:$0xe]
    %v4024 = vld [vmem:[%s39 + $0x2c] sm:$0x1]
    %v4025 = vld [vmem:[%s39 + $0x30] sm:$0xe]
    %v4026 = vld [vmem:[%s39 + $0x34] sm:$0x1]
    %v4027 = vld [vmem:[%s39 + $0x38] sm:$0xe]
    %v4028 = vld [vmem:[%s39 + $0x3c] sm:$0x1]
    %v4029 = vld [vmem:[%s39 + $0x50] sm:$0xe]
    %v4030 = vld [vmem:[%s39 + $0x54] sm:$0x1]
    %v4031 = vld [vmem:[%s39 + $0x58] sm:$0xe]
    %v4032 = vld [vmem:[%s39 + $0x5c] sm:$0x1]
    %v4033 = vld [vmem:[%s39 + $0x60] sm:$0xe]
    %v4034 = vld [vmem:[%s39 + $0x64] sm:$0x1]
    %v4035 = vld [vmem:[%s39 + $0x68] sm:$0xe]
    %v4036 = vld [vmem:[%s39 + $0x6c] sm:$0x1]
    %v4037 = vld [vmem:[%s39 + $0x70] sm:$0xe]
    %v4038 = vld [vmem:[%s39 + $0x74] sm:$0x1]
    %v4039 = vld [vmem:[%s39 + $0x78] sm:$0xe]
    %v4040 = vld [vmem:[%s39 + $0x7c] sm:$0x1]
    %v4041 = vld [vmem:[%s39 + $0x80] sm:$0xe]
    %v4042 = vld [vmem:[%s39 + $0x84] sm:$0x1]
    %v4043 = vld [vmem:[%s39 + $0x88] sm:$0xe]
    %v4044 = vld [vmem:[%s39 + $0x8c] sm:$0x1]
    %v4077 = vrot.slane %v4013, 5
    %v4078 = vrot.slane %v4077, 4
    %v4079 = vrot.slane %v4014, 5
    %v4080 = vsel %vm936, %v4078, %v4079
    %v4081 = vrot.slane %v4015, 5
    %v4082 = vrot.slane %v4081, 4
    %v4083 = vrot.slane %v4016, 5
    %v4084 = vsel %vm936, %v4082, %v4083
    %v4085 = vrot.slane %v4017, 5
    %v4086 = vrot.slane %v4085, 4
    %v4087 = vrot.slane %v4018, 5
    %v4088 = vsel %vm936, %v4086, %v4087
    %v4089 = vrot.slane %v4019, 5
    %v4090 = vrot.slane %v4089, 4
    %v4091 = vrot.slane %v4020, 5
    %v4092 = vsel %vm936, %v4090, %v4091
    %v4093 = vrot.slane %v4021, 5
    %v4094 = vrot.slane %v4093, 4
    %v4095 = vrot.slane %v4022, 5
    %v4096 = vsel %vm936, %v4094, %v4095
    %v4097 = vrot.slane %v4023, 5
    %v4098 = vrot.slane %v4097, 4
    %v4099 = vrot.slane %v4024, 5
    %v4100 = vsel %vm936, %v4098, %v4099
    %v4101 = vrot.slane %v4025, 5
    %v4102 = vrot.slane %v4101, 4
    %v4103 = vrot.slane %v4026, 5
    %v4104 = vsel %vm936, %v4102, %v4103
    %v4105 = vrot.slane %v4027, 5
    %v4106 = vrot.slane %v4105, 4
    %v4107 = vrot.slane %v4028, 5
    %v4108 = vsel %vm936, %v4106, %v4107
    %v4109 = vrot.slane %v4029, 5
    %v4110 = vrot.slane %v4109, 4
    %v4111 = vrot.slane %v4030, 5
    %v4112 = vsel %vm936, %v4110, %v4111
    %v4113 = vrot.slane %v4031, 5
    %v4114 = vrot.slane %v4113, 4
    %v4115 = vrot.slane %v4032, 5
    %v4116 = vsel %vm936, %v4114, %v4115
    %v4117 = vrot.slane %v4033, 5
    %v4118 = vrot.slane %v4117, 4
    %v4119 = vrot.slane %v4034, 5
    %v4120 = vsel %vm936, %v4118, %v4119
    %v4121 = vrot.slane %v4035, 5
    %v4122 = vrot.slane %v4121, 4
    %v4123 = vrot.slane %v4036, 5
    %v4124 = vsel %vm936, %v4122, %v4123
    %v4125 = vrot.slane %v4037, 5
    %v4126 = vrot.slane %v4125, 4
    %v4127 = vrot.slane %v4038, 5
    %v4128 = vsel %vm936, %v4126, %v4127
    %v4129 = vrot.slane %v4039, 5
    %v4130 = vrot.slane %v4129, 4
    %v4131 = vrot.slane %v4040, 5
    %v4132 = vsel %vm936, %v4130, %v4131
    %v4133 = vrot.slane %v4041, 5
    %v4134 = vrot.slane %v4133, 4
    %v4135 = vrot.slane %v4042, 5
    %v4136 = vsel %vm936, %v4134, %v4135
    %v4137 = vrot.slane %v4043, 5
    %v4138 = vrot.slane %v4137, 4
    %v4139 = vrot.slane %v4044, 5
    %v4140 = vsel %vm936, %v4138, %v4139
    %v4141 = vunpack.c.l.b16 %v4080
    %v4142 = vunpack.c.l.b16 %v4084
    %v4143 = vunpack.c.l.b16 %v4088
    %v4144 = vunpack.c.l.b16 %v4092
    %v4145 = vunpack.c.l.b16 %v4096
    %v4146 = vunpack.c.l.b16 %v4100
    %v4147 = vunpack.c.l.b16 %v4104
    %v4148 = vunpack.c.l.b16 %v4108
    %v4149 = vunpack.c.l.b16 %v4112
    %v4150 = vunpack.c.l.b16 %v4116
    %v4151 = vunpack.c.l.b16 %v4120
    %v4152 = vunpack.c.l.b16 %v4124
    %v4153 = vunpack.c.l.b16 %v4128
    %v4154 = vunpack.c.l.b16 %v4132
    %v4155 = vunpack.c.l.b16 %v4136
    %v4156 = vunpack.c.l.b16 %v4140
    %v4157 = vpack.c.b16 %v4142, %v4141
    %v4158 = vpack.c.b16 %v4144, %v4143
    %v4159 = vpack.c.b16 %v4146, %v4145
    %v4160 = vpack.c.b16 %v4148, %v4147
    %v4161 = vpack.c.b16 %v4150, %v4149
    %v4162 = vpack.c.b16 %v4152, %v4151
    %v4163 = vpack.c.b16 %v4154, %v4153
    %v4164 = vpack.c.b16 %v4156, %v4155
    %4165 = vrot.lane.b32.xlu0 %v4157, 32
    %v4166 = vpop.permute.xlu0 %4165
    %4167 = vrot.lane.b32.xlu0 %v4158, 32
    %v4168 = vpop.permute.xlu0 %4167
    %4169 = vrot.lane.b32.xlu0 %v4159, 32
    %v4170 = vpop.permute.xlu0 %4169
    %4171 = vrot.lane.b32.xlu0 %v4160, 32
    %v4172 = vpop.permute.xlu0 %4171
    %4173 = vrot.lane.b32.xlu0 %v4161, 32
    %v4174 = vpop.permute.xlu0 %4173
    %4175 = vrot.lane.b32.xlu0 %v4162, 32
    %v4176 = vpop.permute.xlu0 %4175
    %4177 = vrot.lane.b32.xlu0 %v4163, 32
    %v4178 = vpop.permute.xlu0 %4177
    %4179 = vrot.lane.b32.xlu0 %v4164, 32
    %v4180 = vpop.permute.xlu0 %4179
    %4189 = vst.msk [vmem:[#allocation3 + $0x8] sm:$0xff] %vm861, %v4166
    %4190 = vst.msk [vmem:[#allocation3 + $0x20] sm:$0xff] %vm861, %v4168
    %4191 = vst.msk [vmem:[#allocation3 + $0x38] sm:$0xff] %vm861, %v4170
    %4192 = vst.msk [vmem:[#allocation3 + $0x50] sm:$0xff] %vm861, %v4172
    %4193 = vst.msk [vmem:[#allocation3 + $0x68] sm:$0xff] %vm861, %v4174
    %4194 = vst.msk [vmem:[#allocation3 + $0x80] sm:$0xff] %vm861, %v4176
    %4195 = vst.msk [vmem:[#allocation3 + $0x98] sm:$0xff] %vm861, %v4178
    %4196 = vst.msk [vmem:[#allocation3 + $0xb0] sm:$0xff] %vm861, %v4180
    %v4197 = vld [vmem:[%s1627] sm:$0xf]
    %v4198 = vld [vmem:[%s1627 + $0x8] sm:$0xf]
    %v4199 = vld [vmem:[%s1627 + $0x10] sm:$0xf]
    %v4200 = vld [vmem:[%s1627 + $0x18] sm:$0xf]
    %v4201 = vld [vmem:[%s1627 + $0x20] sm:$0xf]
    %v4202 = vld [vmem:[%s1627 + $0x28] sm:$0xf]
    %v4203 = vld [vmem:[%s1627 + $0x30] sm:$0xf]
    %v4204 = vld [vmem:[%s1627 + $0x38] sm:$0xf]
    %v4205 = vld [vmem:[%s1627 + $0x50] sm:$0xf]
    %v4206 = vld [vmem:[%s1627 + $0x58] sm:$0xf]
    %v4207 = vld [vmem:[%s1627 + $0x60] sm:$0xf]
    %v4208 = vld [vmem:[%s1627 + $0x68] sm:$0xf]
    %v4209 = vld [vmem:[%s1627 + $0x70] sm:$0xf]
    %v4210 = vld [vmem:[%s1627 + $0x78] sm:$0xf]
    %v4211 = vld [vmem:[%s1627 + $0x80] sm:$0xf]
    %v4212 = vld [vmem:[%s1627 + $0x88] sm:$0xf]
    %v4229 = vunpack.c.l.b16 %v4197
    %v4230 = vunpack.c.l.b16 %v4198
    %v4231 = vunpack.c.l.b16 %v4199
    %v4232 = vunpack.c.l.b16 %v4200
    %v4233 = vunpack.c.l.b16 %v4201
    %v4234 = vunpack.c.l.b16 %v4202
    %v4235 = vunpack.c.l.b16 %v4203
    %v4236 = vunpack.c.l.b16 %v4204
    %v4237 = vunpack.c.l.b16 %v4205
    %v4238 = vunpack.c.l.b16 %v4206
    %v4239 = vunpack.c.l.b16 %v4207
    %v4240 = vunpack.c.l.b16 %v4208
    %v4241 = vunpack.c.l.b16 %v4209
    %v4242 = vunpack.c.l.b16 %v4210
    %v4243 = vunpack.c.l.b16 %v4211
    %v4244 = vunpack.c.l.b16 %v4212
    %v4245 = vpack.c.b16 %v4230, %v4229
    %v4246 = vpack.c.b16 %v4232, %v4231
    %v4247 = vpack.c.b16 %v4234, %v4233
    %v4248 = vpack.c.b16 %v4236, %v4235
    %v4249 = vpack.c.b16 %v4238, %v4237
    %v4250 = vpack.c.b16 %v4240, %v4239
    %v4251 = vpack.c.b16 %v4242, %v4241
    %v4252 = vpack.c.b16 %v4244, %v4243
    %4253 = vrot.lane.b32.xlu0 %v4245, 64
    %v4254 = vpop.permute.xlu0 %4253
    %4255 = vrot.lane.b32.xlu0 %v4246, 64
    %v4256 = vpop.permute.xlu0 %4255
    %4257 = vrot.lane.b32.xlu0 %v4247, 64
    %v4258 = vpop.permute.xlu0 %4257
    %4259 = vrot.lane.b32.xlu0 %v4248, 64
    %v4260 = vpop.permute.xlu0 %4259
    %4261 = vrot.lane.b32.xlu0 %v4249, 64
    %v4262 = vpop.permute.xlu0 %4261
    %4263 = vrot.lane.b32.xlu0 %v4250, 64
    %v4264 = vpop.permute.xlu0 %4263
    %4265 = vrot.lane.b32.xlu0 %v4251, 64
    %v4266 = vpop.permute.xlu0 %4265
    %4267 = vrot.lane.b32.xlu0 %v4252, 64
    %v4268 = vpop.permute.xlu0 %4267
    %4277 = vst.msk [vmem:[#allocation3 + $0x8] sm:$0xff] %vm1049, %v4254
    %4278 = vst.msk [vmem:[#allocation3 + $0x20] sm:$0xff] %vm1049, %v4256
    %4279 = vst.msk [vmem:[#allocation3 + $0x38] sm:$0xff] %vm1049, %v4258
    %4280 = vst.msk [vmem:[#allocation3 + $0x50] sm:$0xff] %vm1049, %v4260
    %4281 = vst.msk [vmem:[#allocation3 + $0x68] sm:$0xff] %vm1049, %v4262
    %4282 = vst.msk [vmem:[#allocation3 + $0x80] sm:$0xff] %vm1049, %v4264
    %4283 = vst.msk [vmem:[#allocation3 + $0x98] sm:$0xff] %vm1049, %v4266
    %4284 = vst.msk [vmem:[#allocation3 + $0xb0] sm:$0xff] %vm1049, %v4268
    %v4285 = vld [vmem:[%s1627] sm:$0xf]
    %v4286 = vld [vmem:[%s1627 + $0x4] sm:$0x1]
    %v4287 = vld [vmem:[%s1627 + $0x8] sm:$0xf]
    %v4288 = vld [vmem:[%s1627 + $0xc] sm:$0x1]
    %v4289 = vld [vmem:[%s1627 + $0x10] sm:$0xf]
    %v4290 = vld [vmem:[%s1627 + $0x14] sm:$0x1]
    %v4291 = vld [vmem:[%s1627 + $0x18] sm:$0xf]
    %v4292 = vld [vmem:[%s1627 + $0x1c] sm:$0x1]
    %v4293 = vld [vmem:[%s1627 + $0x20] sm:$0xf]
    %v4294 = vld [vmem:[%s1627 + $0x24] sm:$0x1]
    %v4295 = vld [vmem:[%s1627 + $0x28] sm:$0xf]
    %v4296 = vld [vmem:[%s1627 + $0x2c] sm:$0x1]
    %v4297 = vld [vmem:[%s1627 + $0x30] sm:$0xf]
    %v4298 = vld [vmem:[%s1627 + $0x34] sm:$0x1]
    %v4299 = vld [vmem:[%s1627 + $0x38] sm:$0xf]
    %v4300 = vld [vmem:[%s1627 + $0x3c] sm:$0x1]
    %v4301 = vld [vmem:[%s1627 + $0x50] sm:$0xf]
    %v4302 = vld [vmem:[%s1627 + $0x54] sm:$0x1]
    %v4303 = vld [vmem:[%s1627 + $0x58] sm:$0xf]
    %v4304 = vld [vmem:[%s1627 + $0x5c] sm:$0x1]
    %v4305 = vld [vmem:[%s1627 + $0x60] sm:$0xf]
    %v4306 = vld [vmem:[%s1627 + $0x64] sm:$0x1]
    %v4307 = vld [vmem:[%s1627 + $0x68] sm:$0xf]
    %v4308 = vld [vmem:[%s1627 + $0x6c] sm:$0x1]
    %v4309 = vld [vmem:[%s1627 + $0x70] sm:$0xf]
    %v4310 = vld [vmem:[%s1627 + $0x74] sm:$0x1]
    %v4311 = vld [vmem:[%s1627 + $0x78] sm:$0xf]
    %v4312 = vld [vmem:[%s1627 + $0x7c] sm:$0x1]
    %v4313 = vld [vmem:[%s1627 + $0x80] sm:$0xf]
    %v4314 = vld [vmem:[%s1627 + $0x84] sm:$0x1]
    %v4315 = vld [vmem:[%s1627 + $0x88] sm:$0xf]
    %v4316 = vld [vmem:[%s1627 + $0x8c] sm:$0x1]
    %v4318 = vshrl.u32 %v4285, 16
    %v4320 = vrot.slane %v4318, 4
    %v4321 = vshll.u32 %v4285, 16
    %v4323 = vrot.slane %v4321, 5
    %v4324 = vor.u32 %v4320, %v4323
    %v4325 = vrot.slane %v4324, 4
    %v4327 = vshll.u32 %v4286, 16
    %v4329 = vrot.slane %v4327, 5
    %v4330 = vsel %vm588, %v4325, %v4329
    %v4332 = vshrl.u32 %v4287, 16
    %v4334 = vrot.slane %v4332, 4
    %v4335 = vshll.u32 %v4287, 16
    %v4337 = vrot.slane %v4335, 5
    %v4338 = vor.u32 %v4334, %v4337
    %v4339 = vrot.slane %v4338, 4
    %v4341 = vshll.u32 %v4288, 16
    %v4343 = vrot.slane %v4341, 5
    %v4344 = vsel %vm588, %v4339, %v4343
    %v4346 = vshrl.u32 %v4289, 16
    %v4348 = vrot.slane %v4346, 4
    %v4349 = vshll.u32 %v4289, 16
    %v4351 = vrot.slane %v4349, 5
    %v4352 = vor.u32 %v4348, %v4351
    %v4353 = vrot.slane %v4352, 4
    %v4355 = vshll.u32 %v4290, 16
    %v4357 = vrot.slane %v4355, 5
    %v4358 = vsel %vm588, %v4353, %v4357
    %v4360 = vshrl.u32 %v4291, 16
    %v4362 = vrot.slane %v4360, 4
    %v4363 = vshll.u32 %v4291, 16
    %v4365 = vrot.slane %v4363, 5
    %v4366 = vor.u32 %v4362, %v4365
    %v4367 = vrot.slane %v4366, 4
    %v4369 = vshll.u32 %v4292, 16
    %v4371 = vrot.slane %v4369, 5
    %v4372 = vsel %vm588, %v4367, %v4371
    %v4374 = vshrl.u32 %v4293, 16
    %v4376 = vrot.slane %v4374, 4
    %v4377 = vshll.u32 %v4293, 16
    %v4379 = vrot.slane %v4377, 5
    %v4380 = vor.u32 %v4376, %v4379
    %v4381 = vrot.slane %v4380, 4
    %v4383 = vshll.u32 %v4294, 16
    %v4385 = vrot.slane %v4383, 5
    %v4386 = vsel %vm588, %v4381, %v4385
    %v4388 = vshrl.u32 %v4295, 16
    %v4390 = vrot.slane %v4388, 4
    %v4391 = vshll.u32 %v4295, 16
    %v4393 = vrot.slane %v4391, 5
    %v4394 = vor.u32 %v4390, %v4393
    %v4395 = vrot.slane %v4394, 4
    %v4397 = vshll.u32 %v4296, 16
    %v4399 = vrot.slane %v4397, 5
    %v4400 = vsel %vm588, %v4395, %v4399
    %v4402 = vshrl.u32 %v4297, 16
    %v4404 = vrot.slane %v4402, 4
    %v4405 = vshll.u32 %v4297, 16
    %v4407 = vrot.slane %v4405, 5
    %v4408 = vor.u32 %v4404, %v4407
    %v4409 = vrot.slane %v4408, 4
    %v4411 = vshll.u32 %v4298, 16
    %v4413 = vrot.slane %v4411, 5
    %v4414 = vsel %vm588, %v4409, %v4413
    %v4416 = vshrl.u32 %v4299, 16
    %v4418 = vrot.slane %v4416, 4
    %v4419 = vshll.u32 %v4299, 16
    %v4421 = vrot.slane %v4419, 5
    %v4422 = vor.u32 %v4418, %v4421
    %v4423 = vrot.slane %v4422, 4
    %v4425 = vshll.u32 %v4300, 16
    %v4427 = vrot.slane %v4425, 5
    %v4428 = vsel %vm588, %v4423, %v4427
    %v4430 = vshrl.u32 %v4301, 16
    %v4432 = vrot.slane %v4430, 4
    %v4433 = vshll.u32 %v4301, 16
    %v4435 = vrot.slane %v4433, 5
    %v4436 = vor.u32 %v4432, %v4435
    %v4437 = vrot.slane %v4436, 4
    %v4439 = vshll.u32 %v4302, 16
    %v4441 = vrot.slane %v4439, 5
    %v4442 = vsel %vm588, %v4437, %v4441
    %v4444 = vshrl.u32 %v4303, 16
    %v4446 = vrot.slane %v4444, 4
    %v4447 = vshll.u32 %v4303, 16
    %v4449 = vrot.slane %v4447, 5
    %v4450 = vor.u32 %v4446, %v4449
    %v4451 = vrot.slane %v4450, 4
    %v4453 = vshll.u32 %v4304, 16
    %v4455 = vrot.slane %v4453, 5
    %v4456 = vsel %vm588, %v4451, %v4455
    %v4458 = vshrl.u32 %v4305, 16
    %v4460 = vrot.slane %v4458, 4
    %v4461 = vshll.u32 %v4305, 16
    %v4463 = vrot.slane %v4461, 5
    %v4464 = vor.u32 %v4460, %v4463
    %v4465 = vrot.slane %v4464, 4
    %v4467 = vshll.u32 %v4306, 16
    %v4469 = vrot.slane %v4467, 5
    %v4470 = vsel %vm588, %v4465, %v4469
    %v4472 = vshrl.u32 %v4307, 16
    %v4474 = vrot.slane %v4472, 4
    %v4475 = vshll.u32 %v4307, 16
    %v4477 = vrot.slane %v4475, 5
    %v4478 = vor.u32 %v4474, %v4477
    %v4479 = vrot.slane %v4478, 4
    %v4481 = vshll.u32 %v4308, 16
    %v4483 = vrot.slane %v4481, 5
    %v4484 = vsel %vm588, %v4479, %v4483
    %v4486 = vshrl.u32 %v4309, 16
    %v4488 = vrot.slane %v4486, 4
    %v4489 = vshll.u32 %v4309, 16
    %v4491 = vrot.slane %v4489, 5
    %v4492 = vor.u32 %v4488, %v4491
    %v4493 = vrot.slane %v4492, 4
    %v4495 = vshll.u32 %v4310, 16
    %v4497 = vrot.slane %v4495, 5
    %v4498 = vsel %vm588, %v4493, %v4497
    %v4500 = vshrl.u32 %v4311, 16
    %v4502 = vrot.slane %v4500, 4
    %v4503 = vshll.u32 %v4311, 16
    %v4505 = vrot.slane %v4503, 5
    %v4506 = vor.u32 %v4502, %v4505
    %v4507 = vrot.slane %v4506, 4
    %v4509 = vshll.u32 %v4312, 16
    %v4511 = vrot.slane %v4509, 5
    %v4512 = vsel %vm588, %v4507, %v4511
    %v4514 = vshrl.u32 %v4313, 16
    %v4516 = vrot.slane %v4514, 4
    %v4517 = vshll.u32 %v4313, 16
    %v4519 = vrot.slane %v4517, 5
    %v4520 = vor.u32 %v4516, %v4519
    %v4521 = vrot.slane %v4520, 4
    %v4523 = vshll.u32 %v4314, 16
    %v4525 = vrot.slane %v4523, 5
    %v4526 = vsel %vm588, %v4521, %v4525
    %v4528 = vshrl.u32 %v4315, 16
    %v4530 = vrot.slane %v4528, 4
    %v4531 = vshll.u32 %v4315, 16
    %v4533 = vrot.slane %v4531, 5
    %v4534 = vor.u32 %v4530, %v4533
    %v4535 = vrot.slane %v4534, 4
    %v4537 = vshll.u32 %v4316, 16
    %v4539 = vrot.slane %v4537, 5
    %v4540 = vsel %vm588, %v4535, %v4539
    %v4541 = vunpack.c.l.b16 %v4330
    %v4542 = vunpack.c.l.b16 %v4344
    %v4543 = vunpack.c.l.b16 %v4358
    %v4544 = vunpack.c.l.b16 %v4372
    %v4545 = vunpack.c.l.b16 %v4386
    %v4546 = vunpack.c.l.b16 %v4400
    %v4547 = vunpack.c.l.b16 %v4414
    %v4548 = vunpack.c.l.b16 %v4428
    %v4549 = vunpack.c.l.b16 %v4442
    %v4550 = vunpack.c.l.b16 %v4456
    %v4551 = vunpack.c.l.b16 %v4470
    %v4552 = vunpack.c.l.b16 %v4484
    %v4553 = vunpack.c.l.b16 %v4498
    %v4554 = vunpack.c.l.b16 %v4512
    %v4555 = vunpack.c.l.b16 %v4526
    %v4556 = vunpack.c.l.b16 %v4540
    %v4557 = vpack.c.b16 %v4542, %v4541
    %v4558 = vpack.c.b16 %v4544, %v4543
    %v4559 = vpack.c.b16 %v4546, %v4545
    %v4560 = vpack.c.b16 %v4548, %v4547
    %v4561 = vpack.c.b16 %v4550, %v4549
    %v4562 = vpack.c.b16 %v4552, %v4551
    %v4563 = vpack.c.b16 %v4554, %v4553
    %v4564 = vpack.c.b16 %v4556, %v4555
    %4565 = vrot.lane.b32.xlu0 %v4557, 96
    %v4566 = vpop.permute.xlu0 %4565
    %4567 = vrot.lane.b32.xlu0 %v4558, 96
    %v4568 = vpop.permute.xlu0 %4567
    %4569 = vrot.lane.b32.xlu0 %v4559, 96
    %v4570 = vpop.permute.xlu0 %4569
    %4571 = vrot.lane.b32.xlu0 %v4560, 96
    %v4572 = vpop.permute.xlu0 %4571
    %4573 = vrot.lane.b32.xlu0 %v4561, 96
    %v4574 = vpop.permute.xlu0 %4573
    %4575 = vrot.lane.b32.xlu0 %v4562, 96
    %v4576 = vpop.permute.xlu0 %4575
    %4577 = vrot.lane.b32.xlu0 %v4563, 96
    %v4578 = vpop.permute.xlu0 %4577
    %4579 = vrot.lane.b32.xlu0 %v4564, 96
    %v4580 = vpop.permute.xlu0 %4579
    %4589 = vst.msk [vmem:[#allocation3 + $0x8] sm:$0xff] %vm1138, %v4566
    %4590 = vst.msk [vmem:[#allocation3 + $0x20] sm:$0xff] %vm1138, %v4568
    %4591 = vst.msk [vmem:[#allocation3 + $0x38] sm:$0xff] %vm1138, %v4570
    %4592 = vst.msk [vmem:[#allocation3 + $0x50] sm:$0xff] %vm1138, %v4572
    %4593 = vst.msk [vmem:[#allocation3 + $0x68] sm:$0xff] %vm1138, %v4574
    %4594 = vst.msk [vmem:[#allocation3 + $0x80] sm:$0xff] %vm1138, %v4576
    %4595 = vst.msk [vmem:[#allocation3 + $0x98] sm:$0xff] %vm1138, %v4578
    %4596 = vst.msk [vmem:[#allocation3 + $0xb0] sm:$0xff] %vm1138, %v4580
    %v4597 = vld [vmem:[%s1627] sm:$0xe]
    %v4598 = vld [vmem:[%s1627 + $0x4] sm:$0x1]
    %v4599 = vld [vmem:[%s1627 + $0x8] sm:$0xe]
    %v4600 = vld [vmem:[%s1627 + $0xc] sm:$0x1]
    %v4601 = vld [vmem:[%s1627 + $0x10] sm:$0xe]
    %v4602 = vld [vmem:[%s1627 + $0x14] sm:$0x1]
    %v4603 = vld [vmem:[%s1627 + $0x18] sm:$0xe]
    %v4604 = vld [vmem:[%s1627 + $0x1c] sm:$0x1]
    %v4605 = vld [vmem:[%s1627 + $0x20] sm:$0xe]
    %v4606 = vld [vmem:[%s1627 + $0x24] sm:$0x1]
    %v4607 = vld [vmem:[%s1627 + $0x28] sm:$0xe]
    %v4608 = vld [vmem:[%s1627 + $0x2c] sm:$0x1]
    %v4609 = vld [vmem:[%s1627 + $0x30] sm:$0xe]
    %v4610 = vld [vmem:[%s1627 + $0x34] sm:$0x1]
    %v4611 = vld [vmem:[%s1627 + $0x38] sm:$0xe]
    %v4612 = vld [vmem:[%s1627 + $0x3c] sm:$0x1]
    %v4613 = vld [vmem:[%s1627 + $0x50] sm:$0xe]
    %v4614 = vld [vmem:[%s1627 + $0x54] sm:$0x1]
    %v4615 = vld [vmem:[%s1627 + $0x58] sm:$0xe]
    %v4616 = vld [vmem:[%s1627 + $0x5c] sm:$0x1]
    %v4617 = vld [vmem:[%s1627 + $0x60] sm:$0xe]
    %v4618 = vld [vmem:[%s1627 + $0x64] sm:$0x1]
    %v4619 = vld [vmem:[%s1627 + $0x68] sm:$0xe]
    %v4620 = vld [vmem:[%s1627 + $0x6c] sm:$0x1]
    %v4621 = vld [vmem:[%s1627 + $0x70] sm:$0xe]
    %v4622 = vld [vmem:[%s1627 + $0x74] sm:$0x1]
    %v4623 = vld [vmem:[%s1627 + $0x78] sm:$0xe]
    %v4624 = vld [vmem:[%s1627 + $0x7c] sm:$0x1]
    %v4625 = vld [vmem:[%s1627 + $0x80] sm:$0xe]
    %v4626 = vld [vmem:[%s1627 + $0x84] sm:$0x1]
    %v4627 = vld [vmem:[%s1627 + $0x88] sm:$0xe]
    %v4628 = vld [vmem:[%s1627 + $0x8c] sm:$0x1]
    %v4661 = vrot.slane %v4597, 5
    %v4662 = vrot.slane %v4661, 4
    %v4663 = vrot.slane %v4598, 5
    %v4664 = vsel %vm936, %v4662, %v4663
    %v4665 = vrot.slane %v4599, 5
    %v4666 = vrot.slane %v4665, 4
    %v4667 = vrot.slane %v4600, 5
    %v4668 = vsel %vm936, %v4666, %v4667
    %v4669 = vrot.slane %v4601, 5
    %v4670 = vrot.slane %v4669, 4
    %v4671 = vrot.slane %v4602, 5
    %v4672 = vsel %vm936, %v4670, %v4671
    %v4673 = vrot.slane %v4603, 5
    %v4674 = vrot.slane %v4673, 4
    %v4675 = vrot.slane %v4604, 5
    %v4676 = vsel %vm936, %v4674, %v4675
    %v4677 = vrot.slane %v4605, 5
    %v4678 = vrot.slane %v4677, 4
    %v4679 = vrot.slane %v4606, 5
    %v4680 = vsel %vm936, %v4678, %v4679
    %v4681 = vrot.slane %v4607, 5
    %v4682 = vrot.slane %v4681, 4
    %v4683 = vrot.slane %v4608, 5
    %v4684 = vsel %vm936, %v4682, %v4683
    %v4685 = vrot.slane %v4609, 5
    %v4686 = vrot.slane %v4685, 4
    %v4687 = vrot.slane %v4610, 5
    %v4688 = vsel %vm936, %v4686, %v4687
    %v4689 = vrot.slane %v4611, 5
    %v4690 = vrot.slane %v4689, 4
    %v4691 = vrot.slane %v4612, 5
    %v4692 = vsel %vm936, %v4690, %v4691
    %v4693 = vrot.slane %v4613, 5
    %v4694 = vrot.slane %v4693, 4
    %v4695 = vrot.slane %v4614, 5
    %v4696 = vsel %vm936, %v4694, %v4695
    %v4697 = vrot.slane %v4615, 5
    %v4698 = vrot.slane %v4697, 4
    %v4699 = vrot.slane %v4616, 5
    %v4700 = vsel %vm936, %v4698, %v4699
    %v4701 = vrot.slane %v4617, 5
    %v4702 = vrot.slane %v4701, 4
    %v4703 = vrot.slane %v4618, 5
    %v4704 = vsel %vm936, %v4702, %v4703
    %v4705 = vrot.slane %v4619, 5
    %v4706 = vrot.slane %v4705, 4
    %v4707 = vrot.slane %v4620, 5
    %v4708 = vsel %vm936, %v4706, %v4707
    %v4709 = vrot.slane %v4621, 5
    %v4710 = vrot.slane %v4709, 4
    %v4711 = vrot.slane %v4622, 5
    %v4712 = vsel %vm936, %v4710, %v4711
    %v4713 = vrot.slane %v4623, 5
    %v4714 = vrot.slane %v4713, 4
    %v4715 = vrot.slane %v4624, 5
    %v4716 = vsel %vm936, %v4714, %v4715
    %v4717 = vrot.slane %v4625, 5
    %v4718 = vrot.slane %v4717, 4
    %v4719 = vrot.slane %v4626, 5
    %v4720 = vsel %vm936, %v4718, %v4719
    %v4721 = vrot.slane %v4627, 5
    %v4722 = vrot.slane %v4721, 4
    %v4723 = vrot.slane %v4628, 5
    %v4724 = vsel %vm936, %v4722, %v4723
    %v4725 = vunpack.c.l.b16 %v4664
    %v4726 = vunpack.c.l.b16 %v4668
    %v4727 = vunpack.c.l.b16 %v4672
    %v4728 = vunpack.c.l.b16 %v4676
    %v4729 = vunpack.c.l.b16 %v4680
    %v4730 = vunpack.c.l.b16 %v4684
    %v4731 = vunpack.c.l.b16 %v4688
    %v4732 = vunpack.c.l.b16 %v4692
    %v4733 = vunpack.c.l.b16 %v4696
    %v4734 = vunpack.c.l.b16 %v4700
    %v4735 = vunpack.c.l.b16 %v4704
    %v4736 = vunpack.c.l.b16 %v4708
    %v4737 = vunpack.c.l.b16 %v4712
    %v4738 = vunpack.c.l.b16 %v4716
    %v4739 = vunpack.c.l.b16 %v4720
    %v4740 = vunpack.c.l.b16 %v4724
    %v4741 = vpack.c.b16 %v4726, %v4725
    %v4742 = vpack.c.b16 %v4728, %v4727
    %v4743 = vpack.c.b16 %v4730, %v4729
    %v4744 = vpack.c.b16 %v4732, %v4731
    %v4745 = vpack.c.b16 %v4734, %v4733
    %v4746 = vpack.c.b16 %v4736, %v4735
    %v4747 = vpack.c.b16 %v4738, %v4737
    %v4748 = vpack.c.b16 %v4740, %v4739
    %4757 = vst.msk [vmem:[#allocation3 + $0x10] sm:$0xff] %vm545, %v4741
    %4758 = vst.msk [vmem:[#allocation3 + $0x28] sm:$0xff] %vm545, %v4742
    %4759 = vst.msk [vmem:[#allocation3 + $0x40] sm:$0xff] %vm545, %v4743
    %4760 = vst.msk [vmem:[#allocation3 + $0x58] sm:$0xff] %vm545, %v4744
    %4761 = vst.msk [vmem:[#allocation3 + $0x70] sm:$0xff] %vm545, %v4745
    %4762 = vst.msk [vmem:[#allocation3 + $0x88] sm:$0xff] %vm545, %v4746
    %4763 = vst.msk [vmem:[#allocation3 + $0xa0] sm:$0xff] %vm545, %v4747
    %4764 = vst.msk [vmem:[#allocation3 + $0xb8] sm:$0xff] %vm545, %v4748
    %v4765 = vld [vmem:[#allocation3] sm:$0xff]
    %v4766 = vld [vmem:[#allocation3 + $0x8] sm:$0xff]
    %v4767 = vld [vmem:[#allocation3 + $0x10] sm:$0xff]
    %v4768 = vld [vmem:[#allocation3 + $0x18] sm:$0xff]
    %v4769 = vld [vmem:[#allocation3 + $0x20] sm:$0xff]
    %v4770 = vld [vmem:[#allocation3 + $0x28] sm:$0xff]
    %v4771 = vld [vmem:[#allocation3 + $0x30] sm:$0xff]
    %v4772 = vld [vmem:[#allocation3 + $0x38] sm:$0xff]
    %v4773 = vld [vmem:[#allocation3 + $0x40] sm:$0xff]
    %v4774 = vld [vmem:[#allocation3 + $0x48] sm:$0xff]
    %v4775 = vld [vmem:[#allocation3 + $0x50] sm:$0xff]
    %v4776 = vld [vmem:[#allocation3 + $0x58] sm:$0xff]
    %v4777 = vld [vmem:[#allocation3 + $0x60] sm:$0xff]
    %v4778 = vld [vmem:[#allocation3 + $0x68] sm:$0xff]
    %v4779 = vld [vmem:[#allocation3 + $0x70] sm:$0xff]
    %v4780 = vld [vmem:[#allocation3 + $0x78] sm:$0xff]
    %v4781 = vld [vmem:[#allocation3 + $0x80] sm:$0xff]
    %v4782 = vld [vmem:[#allocation3 + $0x88] sm:$0xff]
    %v4783 = vld [vmem:[#allocation3 + $0x90] sm:$0xff]
    %v4784 = vld [vmem:[#allocation3 + $0x98] sm:$0xff]
    %v4785 = vld [vmem:[#allocation3 + $0xa0] sm:$0xff]
    %v4786 = vld [vmem:[#allocation3 + $0xa8] sm:$0xff]
    %v4787 = vld [vmem:[#allocation3 + $0xb0] sm:$0xff]
    %v4788 = vld [vmem:[#allocation3 + $0xb8] sm:$0xff]
    %v4789 = vld [vmem:[%s4] sm:$0xf]
    %v4790 = vld [vmem:[%s4 + $0x4] sm:$0xf]
    %v4791 = vld [vmem:[%s4 + $0x8] sm:$0xf]
    %v4792 = vld [vmem:[%s4 + $0xc] sm:$0xf]
    %v4793 = vld [vmem:[%s4 + $0x10] sm:$0xf]
    %v4794 = vld [vmem:[%s4 + $0x14] sm:$0xf]
    %v4795 = vld [vmem:[%s4 + $0x18] sm:$0xf]
    %v4796 = vld [vmem:[%s4 + $0x1c] sm:$0xf]
    %v4797 = vld [vmem:[%s4 + $0x20] sm:$0xf]
    %v4798 = vld [vmem:[%s4 + $0x24] sm:$0xf]
    %v4799 = vld [vmem:[%s4 + $0x28] sm:$0xf]
    %v4800 = vld [vmem:[%s4 + $0x2c] sm:$0xf]
    %v4801 = vld [vmem:[%s4 + $0x30] sm:$0xf]
    %v4802 = vld [vmem:[%s4 + $0x34] sm:$0xf]
    %v4803 = vld [vmem:[%s4 + $0x38] sm:$0xf]
    %v4804 = vld [vmem:[%s4 + $0x3c] sm:$0xf]
    %v4805 = vld [vmem:[%s4 + $0x40] sm:$0xf]
    %v4806 = vld [vmem:[%s4 + $0x44] sm:$0xf]
    %v4807 = vld [vmem:[%s4 + $0x48] sm:$0xf]
    %v4808 = vld [vmem:[%s4 + $0x4c] sm:$0xf]
    %v4809 = vld [vmem:[%s4 + $0x50] sm:$0xf]
    %v4810 = vld [vmem:[%s4 + $0x54] sm:$0xf]
    %v4811 = vld [vmem:[%s4 + $0x58] sm:$0xf]
    %v4812 = vld [vmem:[%s4 + $0x5c] sm:$0xf]
    %v4813 = vld [vmem:[%s4 + $0x60] sm:$0xf]
    %v4814 = vld [vmem:[%s4 + $0x64] sm:$0xf]
    %v4815 = vld [vmem:[%s4 + $0x68] sm:$0xf]
    %v4816 = vld [vmem:[%s4 + $0x6c] sm:$0xf]
    %v4817 = vld [vmem:[%s4 + $0x70] sm:$0xf]
    %v4818 = vld [vmem:[%s4 + $0x74] sm:$0xf]
    %v4819 = vld [vmem:[%s4 + $0x78] sm:$0xf]
    %v4820 = vld [vmem:[%s4 + $0x7c] sm:$0xf]
    %v4821 = vld [vmem:[%s4 + $0x80] sm:$0xf]
    %v4822 = vld [vmem:[%s4 + $0x84] sm:$0xf]
    %v4823 = vld [vmem:[%s4 + $0x88] sm:$0xf]
    %v4824 = vld [vmem:[%s4 + $0x8c] sm:$0xf]
    %v4861 = vunpack.c.l.b16 %v4789
    %v4862 = vunpack.c.l.b16 %v4790
    %v4863 = vunpack.c.l.b16 %v4791
    %v4864 = vunpack.c.l.b16 %v4792
    %v4865 = vunpack.c.l.b16 %v4793
    %v4866 = vunpack.c.l.b16 %v4794
    %v4867 = vunpack.c.l.b16 %v4795
    %v4868 = vunpack.c.l.b16 %v4796
    %v4869 = vunpack.c.l.b16 %v4797
    %v4870 = vunpack.c.l.b16 %v4798
    %v4871 = vunpack.c.l.b16 %v4799
    %v4872 = vunpack.c.l.b16 %v4800
    %v4873 = vunpack.c.l.b16 %v4801
    %v4874 = vunpack.c.l.b16 %v4802
    %v4875 = vunpack.c.l.b16 %v4803
    %v4876 = vunpack.c.l.b16 %v4804
    %v4877 = vunpack.c.l.b16 %v4805
    %v4878 = vunpack.c.l.b16 %v4806
    %v4879 = vunpack.c.l.b16 %v4807
    %v4880 = vunpack.c.l.b16 %v4808
    %v4881 = vunpack.c.l.b16 %v4809
    %v4882 = vunpack.c.l.b16 %v4810
    %v4883 = vunpack.c.l.b16 %v4811
    %v4884 = vunpack.c.l.b16 %v4812
    %v4885 = vunpack.c.l.b16 %v4813
    %v4886 = vunpack.c.l.b16 %v4814
    %v4887 = vunpack.c.l.b16 %v4815
    %v4888 = vunpack.c.l.b16 %v4816
    %v4889 = vunpack.c.l.b16 %v4817
    %v4890 = vunpack.c.l.b16 %v4818
    %v4891 = vunpack.c.l.b16 %v4819
    %v4892 = vunpack.c.l.b16 %v4820
    %v4893 = vunpack.c.l.b16 %v4821
    %v4894 = vunpack.c.l.b16 %v4822
    %v4895 = vunpack.c.l.b16 %v4823
    %v4896 = vunpack.c.l.b16 %v4824
    %v4897 = vpack.c.b16 %v4862, %v4861
    %v4898 = vpack.c.b16 %v4864, %v4863
    %v4899 = vpack.c.b16 %v4866, %v4865
    %v4900 = vpack.c.b16 %v4868, %v4867
    %v4901 = vpack.c.b16 %v4870, %v4869
    %v4902 = vpack.c.b16 %v4872, %v4871
    %v4903 = vpack.c.b16 %v4874, %v4873
    %v4904 = vpack.c.b16 %v4876, %v4875
    %v4905 = vpack.c.b16 %v4878, %v4877
    %v4906 = vpack.c.b16 %v4880, %v4879
    %v4907 = vpack.c.b16 %v4882, %v4881
    %v4908 = vpack.c.b16 %v4884, %v4883
    %v4909 = vpack.c.b16 %v4886, %v4885
    %v4910 = vpack.c.b16 %v4888, %v4887
    %v4911 = vpack.c.b16 %v4890, %v4889
    %v4912 = vpack.c.b16 %v4892, %v4891
    %v4913 = vpack.c.b16 %v4894, %v4893
    %v4914 = vpack.c.b16 %v4896, %v4895
    %v4934 = vsel %vm545, %v4767, 0
    %v4937 = vsel %vm545, %v4770, 0
    %v4940 = vsel %vm545, %v4773, 0
    %v4943 = vsel %vm545, %v4776, 0
    %v4946 = vsel %vm545, %v4779, 0
    %v4949 = vsel %vm545, %v4782, 0
    %v4952 = vsel %vm545, %v4785, 0
    %v4955 = vsel %vm545, %v4788, 0
    %4957 = vmatprep.subr.bf16.mxu0 0
    %4958 = vmatpush1.bf16.msra.mxu0 %v4897
    %4959 = vmatprep.subr.bf16.mxu0 0
    %4960 = vmatpush1.bf16.msra.mxu0 %v4898
    %4961 = vmatprep.subr.bf16.mxu0 0
    %4962 = vmatpush1.bf16.msra.mxu0 %v4899
    %4963 = vmatprep.subr.bf16.mxu0 0
    %4964 = vmatpush1.bf16.msra.mxu0 %v4900
    %4965 = vmatprep.subr.bf16.mxu0 0
    %4966 = vmatpush1.bf16.msra.mxu0 %v4901
    %4967 = vmatprep.subr.bf16.mxu0 0
    %4968 = vmatpush1.bf16.msra.mxu0 %v4902
    %4969 = vmatprep.subr.bf16.mxu0 0
    %4970 = vmatpush1.bf16.msra.mxu0 %v4903
    %4971 = vmatprep.subr.bf16.mxu0 0
    %4972 = vmatpush1.bf16.msra.mxu0 %v4904
    %4973 = vmatprep.subr.bf16.mxu0 0
    %4974 = vmatpush1.bf16.msra.mxu0 %v4905
    %4975 = vmatprep.subr.bf16.mxu0 0
    %4976 = vmatpush1.bf16.msra.mxu0 %v4906
    %4977 = vmatprep.subr.bf16.mxu0 0
    %4978 = vmatpush1.bf16.msra.mxu0 %v4907
    %4979 = vmatprep.subr.bf16.mxu0 0
    %4980 = vmatpush1.bf16.msra.mxu0 %v4908
    %4981 = vmatprep.subr.bf16.mxu0 0
    %4982 = vmatpush1.bf16.msra.mxu0 %v4909
    %4983 = vmatprep.subr.bf16.mxu0 0
    %4984 = vmatpush1.bf16.msra.mxu0 %v4910
    %4985 = vmatprep.subr.bf16.mxu0 0
    %4986 = vmatpush1.bf16.msra.mxu0 %v4911
    %4987 = vmatprep.subr.bf16.mxu0 0
    %4988 = vmatpush1.bf16.msra.mxu0 %v4912
    %4989 = vmatprep.mubr.bf16.mxu0 %v4766
    %4990 = vmatmul.mubr.bf16.gmra.mrb[0].mxu0 %v4765
    %v4991 = vpop.f32.mrb[0].mxu0
    %v4992 = vadd.f32 0.0, %v4991
    %v4993 = vpop.f32.mrb[0].mxu0
    %v4994 = vpop.f32.mrb[0].mxu0
    %v4995 = vadd.f32 0.0, %v4994
    %v4996 = vpop.f32.mrb[0].mxu0
    %4997 = vmatprep.mubr.bf16.mxu0 %v4769
    %4998 = vmatmul.mubr.bf16.gmra.mrb[0].mxu0 %v4768
    %v4999 = vpop.f32.mrb[0].mxu0
    %v5000 = vadd.f32 0.0, %v4999
    %v5001 = vpop.f32.mrb[0].mxu0
    %v5002 = vpop.f32.mrb[0].mxu0
    %v5003 = vadd.f32 0.0, %v5002
    %v5004 = vpop.f32.mrb[0].mxu0
    %5005 = vmatprep.mubr.bf16.mxu0 %v4772
    %5006 = vmatmul.mubr.bf16.gmra.mrb[0].mxu0 %v4771
    %v5007 = vpop.f32.mrb[0].mxu0
    %v5008 = vadd.f32 0.0, %v5007
    %v5009 = vpop.f32.mrb[0].mxu0
    %v5010 = vpop.f32.mrb[0].mxu0
    %v5011 = vadd.f32 0.0, %v5010
    %v5012 = vpop.f32.mrb[0].mxu0
    %5013 = vmatprep.mubr.bf16.mxu0 %v4775
    %5014 = vmatmul.mubr.bf16.gmra.mrb[0].mxu0 %v4774
    %v5015 = vpop.f32.mrb[0].mxu0
    %v5016 = vadd.f32 0.0, %v5015
    %v5017 = vpop.f32.mrb[0].mxu0
    %v5018 = vpop.f32.mrb[0].mxu0
    %v5019 = vadd.f32 0.0, %v5018
    %v5020 = vpop.f32.mrb[0].mxu0
    %5021 = vmatprep.mubr.bf16.mxu0 %v4778
    %5022 = vmatmul.mubr.bf16.gmra.mrb[0].mxu0 %v4777
    %v5023 = vpop.f32.mrb[0].mxu0
    %v5024 = vadd.f32 0.0, %v5023
    %v5025 = vpop.f32.mrb[0].mxu0
    %v5026 = vpop.f32.mrb[0].mxu0
    %v5027 = vadd.f32 0.0, %v5026
    %v5028 = vpop.f32.mrb[0].mxu0
    %5029 = vmatprep.mubr.bf16.mxu0 %v4781
    %5030 = vmatmul.mubr.bf16.gmra.mrb[0].mxu0 %v4780
    %v5031 = vpop.f32.mrb[0].mxu0
    %v5032 = vadd.f32 0.0, %v5031
    %v5033 = vpop.f32.mrb[0].mxu0
    %v5034 = vpop.f32.mrb[0].mxu0
    %v5035 = vadd.f32 0.0, %v5034
    %v5036 = vpop.f32.mrb[0].mxu0
    %5037 = vmatprep.mubr.bf16.mxu0 %v4784
    %5038 = vmatmul.mubr.bf16.gmra.mrb[0].mxu0 %v4783
    %v5039 = vpop.f32.mrb[0].mxu0
    %v5040 = vadd.f32 0.0, %v5039
    %v5041 = vpop.f32.mrb[0].mxu0
    %v5042 = vpop.f32.mrb[0].mxu0
    %v5043 = vadd.f32 0.0, %v5042
    %v5044 = vpop.f32.mrb[0].mxu0
    %5045 = vmatprep.mubr.bf16.mxu0 %v4787
    %5046 = vmatmul.mubr.bf16.gmra.mrb[0].mxu0 %v4786
    %v5047 = vpop.f32.mrb[0].mxu0
    %v5048 = vadd.f32 0.0, %v5047
    %v5049 = vpop.f32.mrb[0].mxu0
    %v5050 = vpop.f32.mrb[0].mxu0
    %v5051 = vadd.f32 0.0, %v5050
    %v5052 = vpop.f32.mrb[0].mxu0
    %5053 = vdwg.mxu0
    %5054 = vmatprep.subr.bf16.mxu0 0
    %5055 = vmatpush1.bf16.msra.mxu0 %v4913
    %5056 = vmatprep.subr.bf16.mxu0 0
    %5057 = vmatpush1.bf16.msra.mxu0 %v4914
    %5058 = vmatprep.subr.bf16.mxu0 0
    %5059 = vmatpush1.bf16.msra.mxu0 0
    %5060 = vmatprep.subr.bf16.mxu0 0
    %5061 = vmatpush1.bf16.msra.mxu0 0
    %5062 = vmatprep.subr.bf16.mxu0 0
    %5063 = vmatpush1.bf16.msra.mxu0 0
    %5064 = vmatprep.subr.bf16.mxu0 0
    %5065 = vmatpush1.bf16.msra.mxu0 0
    %5066 = vmatprep.subr.bf16.mxu0 0
    %5067 = vmatpush1.bf16.msra.mxu0 0
    %5068 = vmatprep.subr.bf16.mxu0 0
    %5069 = vmatpush1.bf16.msra.mxu0 0
    %5070 = vmatprep.subr.bf16.mxu0 0
    %5071 = vmatpush1.bf16.msra.mxu0 0
    %5072 = vmatprep.subr.bf16.mxu0 0
    %5073 = vmatpush1.bf16.msra.mxu0 0
    %5074 = vmatprep.subr.bf16.mxu0 0
    %5075 = vmatpush1.bf16.msra.mxu0 0
    %5076 = vmatprep.subr.bf16.mxu0 0
    %5077 = vmatpush1.bf16.msra.mxu0 0
    %5078 = vmatprep.subr.bf16.mxu0 0
    %5079 = vmatpush1.bf16.msra.mxu0 0
    %5080 = vmatprep.subr.bf16.mxu0 0
    %5081 = vmatpush1.bf16.msra.mxu0 0
    %5082 = vmatprep.subr.bf16.mxu0 0
    %5083 = vmatpush1.bf16.msra.mxu0 0
    %5084 = vmatprep.subr.bf16.mxu0 0
    %5085 = vmatpush1.bf16.msra.mxu0 0
    %5086 = vmatprep.mubr.bf16.mxu0 0
    %5087 = vmatmul.mubr.bf16.gmra.mrb[0].mxu0 %v4934
    %v5088 = vpop.f32.mrb[0].mxu0
    %v5089 = vadd.f32 %v4992, %v5088
    %v5090 = vpop.f32.mrb[0].mxu0
    %v5091 = vpop.f32.mrb[0].mxu0
    %v5092 = vadd.f32 %v4995, %v5091
    %v5093 = vpop.f32.mrb[0].mxu0
    %5094 = vmatprep.mubr.bf16.mxu0 0
    %5095 = vmatmul.mubr.bf16.gmra.mrb[0].mxu0 %v4937
    %v5096 = vpop.f32.mrb[0].mxu0
    %v5097 = vadd.f32 %v5000, %v5096
    %v5098 = vpop.f32.mrb[0].mxu0
    %v5099 = vpop.f32.mrb[0].mxu0
    %v5100 = vadd.f32 %v5003, %v5099
    %v5101 = vpop.f32.mrb[0].mxu0
    %5102 = vmatprep.mubr.bf16.mxu0 0
    %5103 = vmatmul.mubr.bf16.gmra.mrb[0].mxu0 %v4940
    %v5104 = vpop.f32.mrb[0].mxu0
    %v5105 = vadd.f32 %v5008, %v5104
    %v5106 = vpop.f32.mrb[0].mxu0
    %v5107 = vpop.f32.mrb[0].mxu0
    %v5108 = vadd.f32 %v5011, %v5107
    %v5109 = vpop.f32.mrb[0].mxu0
    %5110 = vmatprep.mubr.bf16.mxu0 0
    %5111 = vmatmul.mubr.bf16.gmra.mrb[0].mxu0 %v4943
    %v5112 = vpop.f32.mrb[0].mxu0
    %v5113 = vadd.f32 %v5016, %v5112
    %v5114 = vpop.f32.mrb[0].mxu0
    %v5115 = vpop.f32.mrb[0].mxu0
    %v5116 = vadd.f32 %v5019, %v5115
    %v5117 = vpop.f32.mrb[0].mxu0
    %5118 = vmatprep.mubr.bf16.mxu0 0
    %5119 = vmatmul.mubr.bf16.gmra.mrb[0].mxu0 %v4946
    %v5120 = vpop.f32.mrb[0].mxu0
    %v5121 = vadd.f32 %v5024, %v5120
    %v5122 = vpop.f32.mrb[0].mxu0
    %v5123 = vpop.f32.mrb[0].mxu0
    %v5124 = vadd.f32 %v5027, %v5123
    %v5125 = vpop.f32.mrb[0].mxu0
    %5126 = vmatprep.mubr.bf16.mxu0 0
    %5127 = vmatmul.mubr.bf16.gmra.mrb[0].mxu0 %v4949
    %v5128 = vpop.f32.mrb[0].mxu0
    %v5129 = vadd.f32 %v5032, %v5128
    %v5130 = vpop.f32.mrb[0].mxu0
    %v5131 = vpop.f32.mrb[0].mxu0
    %v5132 = vadd.f32 %v5035, %v5131
    %v5133 = vpop.f32.mrb[0].mxu0
    %5134 = vmatprep.mubr.bf16.mxu0 0
    %5135 = vmatmul.mubr.bf16.gmra.mrb[0].mxu0 %v4952
    %v5136 = vpop.f32.mrb[0].mxu0
    %v5137 = vadd.f32 %v5040, %v5136
    %v5138 = vpop.f32.mrb[0].mxu0
    %v5139 = vpop.f32.mrb[0].mxu0
    %v5140 = vadd.f32 %v5043, %v5139
    %v5141 = vpop.f32.mrb[0].mxu0
    %5142 = vmatprep.mubr.bf16.mxu0 0
    %5143 = vmatmul.mubr.bf16.gmra.mrb[0].mxu0 %v4955
    %v5144 = vpop.f32.mrb[0].mxu0
    %v5145 = vadd.f32 %v5048, %v5144
    %v5146 = vpop.f32.mrb[0].mxu0
    %v5147 = vpop.f32.mrb[0].mxu0
    %v5148 = vadd.f32 %v5051, %v5147
    %v5149 = vpop.f32.mrb[0].mxu0
    %5150 = vdwg.mxu0
    %v5151 = vsel %vm545, %v5089, 0.0
    %v5152 = vsel %vm545, %v5092, 0.0
    %v5153 = vadd.f32 %v5151, %v5152
    %v5154 = vsel %vm545, %v5097, 0.0
    %v5155 = vadd.f32 %v5153, %v5154
    %v5156 = vsel %vm545, %v5100, 0.0
    %v5157 = vadd.f32 %v5155, %v5156
    %v5158 = vsel %vm545, %v5105, 0.0
    %v5159 = vadd.f32 %v5157, %v5158
    %v5160 = vsel %vm545, %v5108, 0.0
    %v5161 = vadd.f32 %v5159, %v5160
    %v5162 = vsel %vm545, %v5113, 0.0
    %v5163 = vadd.f32 %v5161, %v5162
    %v5164 = vsel %vm545, %v5116, 0.0
    %v5165 = vadd.f32 %v5163, %v5164
    %v5166 = vsel %vm545, %v5121, 0.0
    %v5167 = vadd.f32 %v5165, %v5166
    %v5168 = vsel %vm545, %v5124, 0.0
    %v5169 = vadd.f32 %v5167, %v5168
    %v5170 = vsel %vm545, %v5129, 0.0
    %v5171 = vadd.f32 %v5169, %v5170
    %v5172 = vsel %vm545, %v5132, 0.0
    %v5173 = vadd.f32 %v5171, %v5172
    %v5174 = vsel %vm545, %v5137, 0.0
    %v5175 = vadd.f32 %v5173, %v5174
    %v5176 = vsel %vm545, %v5140, 0.0
    %v5177 = vadd.f32 %v5175, %v5176
    %v5178 = vsel %vm545, %v5145, 0.0
    %v5179 = vadd.f32 %v5177, %v5178
    %v5180 = vsel %vm545, %v5148, 0.0
    %v5181 = vadd.f32 %v5179, %v5180
    %v5182 = vrot.slane %v5181, 4
    %v5183 = vadd.f32 %v5181, %v5182
    %v5184 = vrot.slane %v5183, 2
    %v5185 = vadd.f32 %v5183, %v5184
    %v5186 = vrot.slane %v5185, 1
    %v5187 = vadd.f32 %v5185, %v5186
    %v5188 = vmul.f32 %v5089, %v5089
    %v5189 = vmul.f32 %v5092, %v5092
    %v5190 = vmul.f32 %v5097, %v5097
    %v5191 = vmul.f32 %v5100, %v5100
    %v5192 = vmul.f32 %v5105, %v5105
    %v5193 = vmul.f32 %v5108, %v5108
    %v5194 = vmul.f32 %v5113, %v5113
    %v5195 = vmul.f32 %v5116, %v5116
    %v5196 = vmul.f32 %v5121, %v5121
    %v5197 = vmul.f32 %v5124, %v5124
    %v5198 = vmul.f32 %v5129, %v5129
    %v5199 = vmul.f32 %v5132, %v5132
    %v5200 = vmul.f32 %v5137, %v5137
    %v5201 = vmul.f32 %v5140, %v5140
    %v5202 = vmul.f32 %v5145, %v5145
    %v5203 = vmul.f32 %v5148, %v5148
    %v5204 = vsel %vm545, %v5188, 0.0
    %v5205 = vsel %vm545, %v5189, 0.0
    %v5206 = vadd.f32 %v5204, %v5205
    %v5207 = vsel %vm545, %v5190, 0.0
    %v5208 = vadd.f32 %v5206, %v5207
    %v5209 = vsel %vm545, %v5191, 0.0
    %v5210 = vadd.f32 %v5208, %v5209
    %v5211 = vsel %vm545, %v5192, 0.0
    %v5212 = vadd.f32 %v5210, %v5211
    %v5213 = vsel %vm545, %v5193, 0.0
    %v5214 = vadd.f32 %v5212, %v5213
    %v5215 = vsel %vm545, %v5194, 0.0
    %v5216 = vadd.f32 %v5214, %v5215
    %v5217 = vsel %vm545, %v5195, 0.0
    %v5218 = vadd.f32 %v5216, %v5217
    %v5219 = vsel %vm545, %v5196, 0.0
    %v5220 = vadd.f32 %v5218, %v5219
    %v5221 = vsel %vm545, %v5197, 0.0
    %v5222 = vadd.f32 %v5220, %v5221
    %v5223 = vsel %vm545, %v5198, 0.0
    %v5224 = vadd.f32 %v5222, %v5223
    %v5225 = vsel %vm545, %v5199, 0.0
    %v5226 = vadd.f32 %v5224, %v5225
    %v5227 = vsel %vm545, %v5200, 0.0
    %v5228 = vadd.f32 %v5226, %v5227
    %v5229 = vsel %vm545, %v5201, 0.0
    %v5230 = vadd.f32 %v5228, %v5229
    %v5231 = vsel %vm545, %v5202, 0.0
    %v5232 = vadd.f32 %v5230, %v5231
    %v5233 = vsel %vm545, %v5203, 0.0
    %v5234 = vadd.f32 %v5232, %v5233
    %v5235 = vrot.slane %v5234, 4
    %v5236 = vadd.f32 %v5234, %v5235
    %v5237 = vrot.slane %v5236, 2
    %v5238 = vadd.f32 %v5236, %v5237
    %v5239 = vrot.slane %v5238, 1
    %v5240 = vadd.f32 %v5238, %v5239
    %v5241 = vmul.f32 %v5187, 0.0078125
    %v5242 = vmul.f32 %v5240, 0.0078125
    %v5243 = vmul.f32 %v5241, %v5241
    %v5244 = vsub.f32 %v5242, %v5243
    %v5245 = vadd.f32 %v5244, 1e-05
    %v5246 = vrsqrt.pop %v5245
    %v5247 = vmul.f32 %v5246, %v3059
    %v5248 = vmul.f32 %v5241, %v5247
    %v5249 = vsub.f32 %v3060, %v5248
    %v5250 = vlaneseq
    %v5251 = vshrl.u32 %v5250, 7
    %v5252 = vsub.s32 0, %v5251
    %v5253 = vrot.slane %v5247, %v5252
    %v5254 = vmul.f32 %v5089, %v5253
    %v5255 = vmul.f32 %v5092, %v5253
    %v5256 = vmul.f32 %v5097, %v5253
    %v5257 = vmul.f32 %v5100, %v5253
    %v5258 = vmul.f32 %v5105, %v5253
    %v5259 = vmul.f32 %v5108, %v5253
    %v5260 = vmul.f32 %v5113, %v5253
    %v5261 = vmul.f32 %v5116, %v5253
    %v5262 = vmul.f32 %v5121, %v5253
    %v5263 = vmul.f32 %v5124, %v5253
    %v5264 = vmul.f32 %v5129, %v5253
    %v5265 = vmul.f32 %v5132, %v5253
    %v5266 = vmul.f32 %v5137, %v5253
    %v5267 = vmul.f32 %v5140, %v5253
    %v5268 = vmul.f32 %v5145, %v5253
    %v5269 = vmul.f32 %v5148, %v5253
    %v5271 = vlaneseq
    %v5272 = vshrl.u32 %v5271, 7
    %v5273 = vsub.s32 0, %v5272
    %v5274 = vrot.slane %v5249, %v5273
    %v5276 = vadd.f32 %v5254, %v5274
    %v5277 = vadd.f32 %v5255, %v5274
    %v5278 = vadd.f32 %v5256, %v5274
    %v5279 = vadd.f32 %v5257, %v5274
    %v5280 = vadd.f32 %v5258, %v5274
    %v5281 = vadd.f32 %v5259, %v5274
    %v5282 = vadd.f32 %v5260, %v5274
    %v5283 = vadd.f32 %v5261, %v5274
    %v5284 = vadd.f32 %v5262, %v5274
    %v5285 = vadd.f32 %v5263, %v5274
    %v5286 = vadd.f32 %v5264, %v5274
    %v5287 = vadd.f32 %v5265, %v5274
    %v5288 = vadd.f32 %v5266, %v5274
    %v5289 = vadd.f32 %v5267, %v5274
    %v5290 = vadd.f32 %v5268, %v5274
    %v5291 = vadd.f32 %v5269, %v5274
    %v5292 = vadd.f32 %v5276, %v141
    %v5293 = vadd.f32 %v5277, %v142
    %v5294 = vadd.f32 %v5278, %v143
    %v5295 = vadd.f32 %v5279, %v144
    %v5296 = vadd.f32 %v5280, %v145
    %v5297 = vadd.f32 %v5281, %v146
    %v5298 = vadd.f32 %v5282, %v147
    %v5299 = vadd.f32 %v5283, %v148
    %v5300 = vadd.f32 %v5284, %v149
    %v5301 = vadd.f32 %v5285, %v150
    %v5302 = vadd.f32 %v5286, %v151
    %v5303 = vadd.f32 %v5287, %v152
    %v5304 = vadd.f32 %v5288, %v153
    %v5305 = vadd.f32 %v5289, %v154
    %v5306 = vadd.f32 %v5290, %v155
    %v5307 = vadd.f32 %v5291, %v156
    %v5308 = vmax.f32 %v5292, 0.0
    %v5309 = vmax.f32 %v5293, 0.0
    %v5310 = vmax.f32 %v5294, 0.0
    %v5311 = vmax.f32 %v5295, 0.0
    %v5312 = vmax.f32 %v5296, 0.0
    %v5313 = vmax.f32 %v5297, 0.0
    %v5314 = vmax.f32 %v5298, 0.0
    %v5315 = vmax.f32 %v5299, 0.0
    %v5316 = vmax.f32 %v5300, 0.0
    %v5317 = vmax.f32 %v5301, 0.0
    %v5318 = vmax.f32 %v5302, 0.0
    %v5319 = vmax.f32 %v5303, 0.0
    %v5320 = vmax.f32 %v5304, 0.0
    %v5321 = vmax.f32 %v5305, 0.0
    %v5322 = vmax.f32 %v5306, 0.0
    %v5323 = vmax.f32 %v5307, 0.0
    %5324 = vst.msk [vmem:[#allocation4] sm:$0xff] %vm545, %v5308
    %5325 = vst.msk [vmem:[#allocation4 + $0x8] sm:$0xff] %vm545, %v5309
    %5326 = vst.msk [vmem:[#allocation4 + $0x10] sm:$0xff] %vm545, %v5310
    %5327 = vst.msk [vmem:[#allocation4 + $0x18] sm:$0xff] %vm545, %v5311
    %5328 = vst.msk [vmem:[#allocation4 + $0x20] sm:$0xff] %vm545, %v5312
    %5329 = vst.msk [vmem:[#allocation4 + $0x28] sm:$0xff] %vm545, %v5313
    %5330 = vst.msk [vmem:[#allocation4 + $0x30] sm:$0xff] %vm545, %v5314
    %5331 = vst.msk [vmem:[#allocation4 + $0x38] sm:$0xff] %vm545, %v5315
    %5332 = vst.msk [vmem:[#allocation4 + $0x40] sm:$0xff] %vm545, %v5316
    %5333 = vst.msk [vmem:[#allocation4 + $0x48] sm:$0xff] %vm545, %v5317
    %5334 = vst.msk [vmem:[#allocation4 + $0x50] sm:$0xff] %vm545, %v5318
    %5335 = vst.msk [vmem:[#allocation4 + $0x58] sm:$0xff] %vm545, %v5319
    %5336 = vst.msk [vmem:[#allocation4 + $0x60] sm:$0xff] %vm545, %v5320
    %5337 = vst.msk [vmem:[#allocation4 + $0x68] sm:$0xff] %vm545, %v5321
    %5338 = vst.msk [vmem:[#allocation4 + $0x70] sm:$0xff] %vm545, %v5322
    %5339 = vst.msk [vmem:[#allocation4 + $0x78] sm:$0xff] %vm545, %v5323
    // Predicated region
    $region30: #{tpu_custom_call.1} parent=1 // pred_check
      _
    $region31: #{tpu_custom_call.1} parent=1 // pred_check_branch
      %5341 = sbr.rel (0) target = $region33
    $region32: #{tpu_custom_call.1} parent=1 // pred_region
      %s5343 = ssub.s32 2048, 2048
      %5344 = vsyncadd [#allocation5], %s5343
      %s5345 = sshll.u32 [#allocation4], 4
      %s5346 = int_to_ptr.vmem [resolvable:$true] %s5345
      %5351 = dma.vmem_to_hbm [thread:$0]  %s5346, 2048, %s7, [#allocation5], 128, 128, 8
    $region33: #{tpu_custom_call.1} parent=1 // pred_fallthru
      _
    // Predicated region
    $region34: #{tpu_custom_call.1} parent=1 // pred_check
      _
    $region35: #{tpu_custom_call.1} parent=1 // pred_check_branch
      %5353 = sbr.rel (0) target = $region37
    $region36: #{tpu_custom_call.1} parent=1 // pred_region
      %5354 = dma.done [#allocation5], 2048
    $region37: #{tpu_custom_call.1} parent=1 // pred_fallthru
      _
    %5355 = vsyncpa [#allocation5], 1

</llo_original>
